<compile_context>
chip_gen: v7x
topology: tpu7x:2x2x1
jax: 0.10.0
libtpu: 0.0.40
codegen_flags: <defaults>
</compile_context>

<pallas_src>
import functools
import math

import jax
import jax.numpy as jnp
from jax.experimental import pallas as pl
from jax.experimental.pallas import tpu as pltpu


# Row layout of the packed "vector slab", shape (10, 3*D):
_ROW_B_IN = 0                       # full 3*D width
_ROW_B_OUT = 1                      # the remaining rows use columns [0:D]
_ROW_B1 = 2
_ROW_B2 = 3
_ROW_LN1_W, _ROW_LN1_B = 4, 5
_ROW_LN2_W, _ROW_LN2_B = 6, 7
_ROW_LNF_W, _ROW_LNF_B = 8, 9
_NUM_VEC_ROWS = 10


# ------------------------------ fused kernel --------------------------------

def _fused_kernel(x_ref, w_ref, vec_ref, o_ref, *, num_heads, eps):
    """Whole forward pass in one grid-less kernel invocation.

    x_ref:   (S, B, D)   activations, sequence-first (PyTorch batch_first=False)
    w_ref:   (D, 6*D)    [W_in^T | W_out^T | W1^T | W2^T] packed slab
    vec_ref: (10, 3*D)   packed biases + LayerNorm params (row layout above)
    o_ref:   (S, B, D)
    """
    s_len, b_sz, d = x_ref.shape
    dh = d // num_heads
    scale = 1.0 / math.sqrt(dh)
    n_tok = s_len * b_sz

    def vec(row):                                  # (1, D) parameter row
        return vec_ref[row:row + 1, :d]

    def layernorm(y, w, b):
        mean = jnp.mean(y, axis=-1, keepdims=True)
        var = jnp.mean(jnp.square(y - mean), axis=-1, keepdims=True)
        return (y - mean) * jax.lax.rsqrt(var + eps) * w + b

    # Token-major view: LN and all projections are per-token, so fold (S, B)
    # into the row (sublane) axis; D stays on lanes.  Batch is re-separated
    # only for the S x S attention dots.
    x2 = x_ref[...].reshape(n_tok, d)              # (S*B, D)

    # --- fused QKV in_proj over ALL tokens in one MXU dot --------------------
    qkv = jnp.dot(x2, w_ref[:, :3 * d],
                  preferred_element_type=jnp.float32) + vec_ref[0:1, :]
    qkv3 = qkv.reshape(s_len, b_sz, 3 * d)

    w_out = w_ref[:, 3 * d:4 * d]                  # (D, D)

    # --- attention: tiny statically-unrolled (batch, head) loop --------------
    # Out-projection fused as an MXU accumulation (no head concat):
    #   ctx_all @ W_out == sum_h ctx_h @ W_out[h*dh:(h+1)*dh, :]
    # NOTE: static unrolling is fine at B*H = 8; switch to
    # lax.fori_loop(..., unroll=True) or a grid axis if heads/seq grow enough
    # to pressure the 64-vreg budget.
    per_batch = []
    for bi in range(b_sz):
        acc = None
        for h in range(num_heads):
            lo = h * dh
            qh = qkv3[:, bi, lo:lo + dh]                     # (S, dh)
            kh = qkv3[:, bi, d + lo:d + lo + dh]             # (S, dh)
            vh = qkv3[:, bi, 2 * d + lo:2 * d + lo + dh]     # (S, dh)
            # Q . K^T contracting on the head dim (no transposed K built).
            s = jax.lax.dot_general(qh, kh, (((1,), (1,)), ((), ())),
                                    preferred_element_type=jnp.float32) * scale
            m = jnp.max(s, axis=-1, keepdims=True)
            p = jnp.exp(s - m)
            l = jnp.sum(p, axis=-1, keepdims=True)
            ctx = jnp.dot(p, vh, preferred_element_type=jnp.float32)
            # Defer softmax normalization to the narrow (S, dh) context; the
            # reciprocal rides the EUP slot.
            ctx = ctx * pl.reciprocal(l, approx=True)
            part = jnp.dot(ctx, w_out[lo:lo + dh, :],
                           preferred_element_type=jnp.float32)
            acc = part if acc is None else acc + part
        per_batch.append(acc)                                # (S, D)
    attn = jnp.stack(per_batch, axis=1).reshape(n_tok, d) + vec(_ROW_B_OUT)

    # --- residual + LN1, FFN (relu), residual + LN2, final model LN ----------
    h1 = layernorm(x2 + attn, vec(_ROW_LN1_W), vec(_ROW_LN1_B))
    ff = jnp.dot(h1, w_ref[:, 4 * d:5 * d],
                 preferred_element_type=jnp.float32) + vec(_ROW_B1)
    ff = jnp.maximum(ff, 0.0)
    ff = jnp.dot(ff, w_ref[:, 5 * d:6 * d],
                 preferred_element_type=jnp.float32) + vec(_ROW_B2)
    h2 = layernorm(h1 + ff, vec(_ROW_LN2_W), vec(_ROW_LN2_B))
    out = layernorm(h2, vec(_ROW_LNF_W), vec(_ROW_LNF_B))

    o_ref[...] = out.reshape(s_len, b_sz, d)


# ------------------------------ wrapper --------------------------------------

def _pack_params(p, final_norm, d):
    """Pack 14 parameter arrays into one weight slab and one vector slab."""
    w_slab = jnp.concatenate(
        [p["w_in_t"], p["w_out_t"], p["w1_t"], p["w2_t"]], axis=1)  # (D, 6D)

    def pad(v):                               # (1, D) -> (1, 3D), zero-padded
        return jnp.pad(v, ((0, 0), (0, 3 * d - v.shape[1])))

    vec_slab = jnp.concatenate(
        [p["b_in"],                                         # row 0 (full 3D)
         pad(p["b_out"]), pad(p["b1"]), pad(p["b2"]),
         pad(p["ln1_w"]), pad(p["ln1_b"]),
         pad(p["ln2_w"]), pad(p["ln2_b"]),
         pad(final_norm["w"]), pad(final_norm["b"])], axis=0)       # (10, 3D)
    return w_slab, vec_slab


def _fused_forward(inp, w_slab, vec_slab, num_heads):
    s_len, b_sz, d = inp.shape
    vmem = pl.BlockSpec(memory_space=pltpu.MemorySpace.VMEM)
    return pl.pallas_call(
        functools.partial(_fused_kernel, num_heads=num_heads, eps=1e-5),
        out_shape=jax.ShapeDtypeStruct((s_len, b_sz, d), jnp.float32),
        in_specs=[vmem, vmem, vmem],
        out_specs=vmem,
    )(inp, w_slab, vec_slab)


def diffusion_transformer(x, audio_features, gaze_direction, head_distance,
                          emotion_offset, layer_params, final_norm,
                          num_heads, guidance_scale=1.0):
    if guidance_scale != 1.0:
        # TODO(synk): the guidance branch of the reference re-concatenates the
        # already hidden_size-wide output and is shape-inconsistent in the
        # original PyTorch code; only guidance_scale == 1.0 is supported.
        raise NotImplementedError("guidance_scale != 1.0 is not supported")
    assert len(layer_params) >= 1

    # Concatenation of the conditioning features is cheap XLA glue.
    inp = jnp.concatenate(
        [x, audio_features, gaze_direction, head_distance, emotion_offset],
        axis=-1)                                   # (S, B, D), sequence-first
    d = inp.shape[-1]

    # Faithful to the reference: every layer consumes `input_features`, so
    # only the LAST layer's output is ever live.  Run exactly that layer,
    # fused with the final LayerNorm, in a single grid-less kernel.
    # (If the model is ever fixed to chain layer outputs, remove this shortcut.)
    w_slab, vec_slab = _pack_params(layer_params[-1], final_norm, d)
    return _fused_forward(inp, w_slab, vec_slab, num_heads)


# ------------------------------- parameters ----------------------------------

def init_params(key, num_layers, hidden):
    d = hidden

    def dense(k, shape, scale=0.1):
        return scale * jax.random.normal(k, shape, jnp.float32)

    layers = []
    keys = jax.random.split(key, num_layers * 8)
    idx = 0
    for _ in range(num_layers):
        p = {
            # stored transposed so kernels compute x @ W^T directly
            "w_in_t": dense(keys[idx + 0], (d, 3 * d)),
            "b_in": dense(keys[idx + 1], (1, 3 * d)),
            "w_out_t": dense(keys[idx + 2], (d, d)),
            "b_out": dense(keys[idx + 3], (1, d)),
            "w1_t": dense(keys[idx + 4], (d, d)),   # dim_feedforward == hidden
            "b1": dense(keys[idx + 5], (1, d)),
            "w2_t": dense(keys[idx + 6], (d, d)),
            "b2": dense(keys[idx + 7], (1, d)),
            "ln1_w": jnp.ones((1, d), jnp.float32),
            "ln1_b": jnp.zeros((1, d), jnp.float32),
            "ln2_w": jnp.ones((1, d), jnp.float32),
            "ln2_b": jnp.zeros((1, d), jnp.float32),
        }
        idx += 8
        layers.append(p)
    final_norm = {"w": jnp.ones((1, d), jnp.float32),
                  "b": jnp.zeros((1, d), jnp.float32)}
    return layers, final_norm


# ---------------------------- pure-JAX reference ------------------------------

def _ln_ref(y, w, b, eps=1e-5):
    mean = y.mean(-1, keepdims=True)
    var = jnp.square(y - mean).mean(-1, keepdims=True)
    return (y - mean) / jnp.sqrt(var + eps) * w + b


def reference_forward(x, audio, gaze, head, emo, layer_params, final_norm,
                      num_heads):
    inp = jnp.concatenate([x, audio, gaze, head, emo], axis=-1)
    s, b, d = inp.shape
    h = num_heads
    dh = d // h

    def layer(src, p):
        x2 = src.reshape(s * b, d)
        qkv = x2 @ p["w_in_t"] + p["b_in"]
        q, k, v = jnp.split(qkv, 3, axis=-1)

        def heads(t):
            return t.reshape(s, b, h, dh).transpose(1, 2, 0, 3)  # (B,H,S,dh)

        qh, kh, vh = heads(q), heads(k), heads(v)
        scores = jnp.einsum("bhsd,bhtd->bhst", qh, kh) / math.sqrt(dh)
        p_attn = jax.nn.softmax(scores, axis=-1)
        ctx = jnp.einsum("bhst,bhtd->bhsd", p_attn, vh)
        ctx = ctx.transpose(2, 0, 1, 3).reshape(s * b, d)
        attn_out = ctx @ p["w_out_t"] + p["b_out"]
        h1 = _ln_ref(x2 + attn_out, p["ln1_w"], p["ln1_b"])
        ff = jnp.maximum(h1 @ p["w1_t"] + p["b1"], 0.0)
        ff = ff @ p["w2_t"] + p["b2"]
        return _ln_ref(h1 + ff, p["ln2_w"], p["ln2_b"]).reshape(s, b, d)

    out = inp
    for p in layer_params:          # faithful: every layer consumes `inp`
        out = layer(inp, p)
    return _ln_ref(out.reshape(s * b, d),
                   final_norm["w"], final_norm["b"]).reshape(s, b, d)


# ----------------------------------- main -------------------------------------

if __name__ == "__main__":
    SEQ, BATCH = 8, 2
    NUM_LAYERS, NUM_HEADS, HIDDEN = 2, 4, 32
    # feature splits must sum to hidden_size for the concat to feed the layers
    D_X, D_AUDIO, D_GAZE, D_HEAD, D_EMO = 16, 8, 4, 2, 2
    assert D_X + D_AUDIO + D_GAZE + D_HEAD + D_EMO == HIDDEN

    key = jax.random.PRNGKey(0)
    k_in, k_par = jax.random.split(key)
    kx, ka, kg, kh, ke = jax.random.split(k_in, 5)

    x = jax.random.normal(kx, (SEQ, BATCH, D_X), jnp.float32)
    audio_features = jax.random.normal(ka, (SEQ, BATCH, D_AUDIO), jnp.float32)
    gaze_direction = jax.random.normal(kg, (SEQ, BATCH, D_GAZE), jnp.float32)
    head_distance = jax.random.normal(kh, (SEQ, BATCH, D_HEAD), jnp.float32)
    emotion_offset = jax.random.normal(ke, (SEQ, BATCH, D_EMO), jnp.float32)

    layer_params, final_norm = init_params(k_par, NUM_LAYERS, HIDDEN)

    fwd = jax.jit(functools.partial(diffusion_transformer,
                                    num_heads=NUM_HEADS, guidance_scale=1.0))
    out = fwd(x, audio_features, gaze_direction, head_distance,
              emotion_offset, layer_params, final_norm)
    out = jax.block_until_ready(out)
    assert out.shape == (SEQ, BATCH, HIDDEN) and out.dtype == jnp.float32

    with jax.default_matmul_precision("highest"):
        ref = reference_forward(x, audio_features, gaze_direction,
                                head_distance, emotion_offset,
                                layer_params, final_norm, NUM_HEADS)
    ref = jax.block_until_ready(ref)

    assert bool(jnp.allclose(out, ref, atol=2e-2, rtol=2e-2)), (
        "Pallas output disagrees with pure-JAX reference")

    print("KERNEL_OK")
</pallas_src>

<mosaic_0001>
module attributes {stable_mosaic.version = 11 : i64} {
  func.func @_fused_kernel(%arg0: memref<8x2x32xf32, #tpu.memory_space<vmem>>, %arg1: memref<32x192xf32, #tpu.memory_space<vmem>>, %arg2: memref<10x96xf32, #tpu.memory_space<vmem>>, %arg3: memref<8x2x32xf32, #tpu.memory_space<vmem>>) attributes {dimension_semantics = [], scalar_prefetch = 0 : i64, scratch_operands = 0 : i64, tpu.core_type = #tpu.core_type<tc>} {
    %c0 = arith.constant 0 : index
    %c0_0 = arith.constant 0 : index
    %c0_1 = arith.constant 0 : index
    %0 = vector.load %arg0[%c0, %c0_0, %c0_1] : memref<8x2x32xf32, #tpu.memory_space<vmem>>, vector<8x2x32xf32>
    %1 = vector.shape_cast %0 : vector<8x2x32xf32> to vector<16x32xf32>
    %c0_2 = arith.constant 0 : index
    %c0_3 = arith.constant 0 : index
    %2 = vector.load %arg1[%c0_2, %c0_3] : memref<32x192xf32, #tpu.memory_space<vmem>>, vector<32x96xf32>
    %cst = arith.constant dense<0.000000e+00> : vector<16x96xf32>
    %3 = tpu.matmul %1, %2, %cst {dimension_numbers = #tpu.dot_dimension_numbers<[1], [0], [0], [1], [0, 0, 1, 1], [], []>} : vector<16x32xf32>, vector<32x96xf32>, vector<16x96xf32> -> vector<16x96xf32>
    %c0_4 = arith.constant 0 : index
    %c0_5 = arith.constant 0 : index
    %4 = vector.load %arg2[%c0_4, %c0_5] : memref<10x96xf32, #tpu.memory_space<vmem>>, vector<1x96xf32>
    %5 = vector.broadcast %4 : vector<1x96xf32> to vector<16x96xf32>
    %6 = arith.addf %3, %5 : vector<16x96xf32>
    %7 = vector.shape_cast %6 : vector<16x96xf32> to vector<8x2x96xf32>
    %c0_6 = arith.constant 0 : index
    %c96 = arith.constant 96 : index
    %8 = vector.load %arg1[%c0_6, %c96] : memref<32x192xf32, #tpu.memory_space<vmem>>, vector<32x32xf32>
    %9 = vector.extract_strided_slice %7 {offsets = [0, 0, 0], sizes = [8, 1, 8], strides = [1, 1, 1]} : vector<8x2x96xf32> to vector<8x1x8xf32>
    %10 = vector.shape_cast %9 : vector<8x1x8xf32> to vector<8x8xf32>
    %11 = vector.extract_strided_slice %7 {offsets = [0, 0, 32], sizes = [8, 1, 8], strides = [1, 1, 1]} : vector<8x2x96xf32> to vector<8x1x8xf32>
    %12 = vector.shape_cast %11 : vector<8x1x8xf32> to vector<8x8xf32>
    %13 = vector.extract_strided_slice %7 {offsets = [0, 0, 64], sizes = [8, 1, 8], strides = [1, 1, 1]} : vector<8x2x96xf32> to vector<8x1x8xf32>
    %14 = vector.shape_cast %13 : vector<8x1x8xf32> to vector<8x8xf32>
    %cst_7 = arith.constant dense<0.000000e+00> : vector<8x8xf32>
    %15 = tpu.matmul %10, %12, %cst_7 {dimension_numbers = #tpu.dot_dimension_numbers<[1], [1], [0], [0], [0, 0, 1, 0], [], []>} : vector<8x8xf32>, vector<8x8xf32>, vector<8x8xf32> -> vector<8x8xf32>
    %cst_8 = arith.constant 0.353553385 : f32
    %16 = vector.broadcast %cst_8 : f32 to vector<8x8xf32>
    %17 = arith.mulf %15, %16 : vector<8x8xf32>
    %cst_9 = arith.constant dense<0xFF800000> : vector<8xf32>
    %18 = vector.multi_reduction <maximumf>, %17, %cst_9 [1] : vector<8x8xf32> to vector<8xf32>
    %19 = vector.shape_cast %18 : vector<8xf32> to vector<8x1xf32>
    %20 = vector.broadcast %19 : vector<8x1xf32> to vector<8x8xf32>
    %21 = arith.subf %17, %20 : vector<8x8xf32>
    %22 = math.exp %21 : vector<8x8xf32>
    %cst_10 = arith.constant dense<0.000000e+00> : vector<8xf32>
    %23 = vector.multi_reduction <add>, %22, %cst_10 [1] : vector<8x8xf32> to vector<8xf32>
    %24 = vector.shape_cast %23 : vector<8xf32> to vector<8x1xf32>
    %cst_11 = arith.constant dense<0.000000e+00> : vector<8x8xf32>
    %25 = tpu.matmul %22, %14, %cst_11 {dimension_numbers = #tpu.dot_dimension_numbers<[1], [0], [0], [1], [0, 0, 1, 1], [], []>} : vector<8x8xf32>, vector<8x8xf32>, vector<8x8xf32> -> vector<8x8xf32>
    %26 = tpu.reciprocal %24 {approx = true} : vector<8x1xf32> -> vector<8x1xf32>
    %27 = vector.broadcast %26 : vector<8x1xf32> to vector<8x8xf32>
    %28 = arith.mulf %25, %27 : vector<8x8xf32>
    %29 = vector.extract_strided_slice %8 {offsets = [0, 0], sizes = [8, 32], strides = [1, 1]} : vector<32x32xf32> to vector<8x32xf32>
    %cst_12 = arith.constant dense<0.000000e+00> : vector<8x32xf32>
    %30 = tpu.matmul %28, %29, %cst_12 {dimension_numbers = #tpu.dot_dimension_numbers<[1], [0], [0], [1], [0, 0, 1, 1], [], []>} : vector<8x8xf32>, vector<8x32xf32>, vector<8x32xf32> -> vector<8x32xf32>
    %31 = vector.extract_strided_slice %7 {offsets = [0, 0, 8], sizes = [8, 1, 8], strides = [1, 1, 1]} : vector<8x2x96xf32> to vector<8x1x8xf32>
    %32 = vector.shape_cast %31 : vector<8x1x8xf32> to vector<8x8xf32>
    %33 = vector.extract_strided_slice %7 {offsets = [0, 0, 40], sizes = [8, 1, 8], strides = [1, 1, 1]} : vector<8x2x96xf32> to vector<8x1x8xf32>
    %34 = vector.shape_cast %33 : vector<8x1x8xf32> to vector<8x8xf32>
    %35 = vector.extract_strided_slice %7 {offsets = [0, 0, 72], sizes = [8, 1, 8], strides = [1, 1, 1]} : vector<8x2x96xf32> to vector<8x1x8xf32>
    %36 = vector.shape_cast %35 : vector<8x1x8xf32> to vector<8x8xf32>
    %cst_13 = arith.constant dense<0.000000e+00> : vector<8x8xf32>
    %37 = tpu.matmul %32, %34, %cst_13 {dimension_numbers = #tpu.dot_dimension_numbers<[1], [1], [0], [0], [0, 0, 1, 0], [], []>} : vector<8x8xf32>, vector<8x8xf32>, vector<8x8xf32> -> vector<8x8xf32>
    %cst_14 = arith.constant 0.353553385 : f32
    %38 = vector.broadcast %cst_14 : f32 to vector<8x8xf32>
    %39 = arith.mulf %37, %38 : vector<8x8xf32>
    %cst_15 = arith.constant dense<0xFF800000> : vector<8xf32>
    %40 = vector.multi_reduction <maximumf>, %39, %cst_15 [1] : vector<8x8xf32> to vector<8xf32>
    %41 = vector.shape_cast %40 : vector<8xf32> to vector<8x1xf32>
    %42 = vector.broadcast %41 : vector<8x1xf32> to vector<8x8xf32>
    %43 = arith.subf %39, %42 : vector<8x8xf32>
    %44 = math.exp %43 : vector<8x8xf32>
    %cst_16 = arith.constant dense<0.000000e+00> : vector<8xf32>
    %45 = vector.multi_reduction <add>, %44, %cst_16 [1] : vector<8x8xf32> to vector<8xf32>
    %46 = vector.shape_cast %45 : vector<8xf32> to vector<8x1xf32>
    %cst_17 = arith.constant dense<0.000000e+00> : vector<8x8xf32>
    %47 = tpu.matmul %44, %36, %cst_17 {dimension_numbers = #tpu.dot_dimension_numbers<[1], [0], [0], [1], [0, 0, 1, 1], [], []>} : vector<8x8xf32>, vector<8x8xf32>, vector<8x8xf32> -> vector<8x8xf32>
    %48 = tpu.reciprocal %46 {approx = true} : vector<8x1xf32> -> vector<8x1xf32>
    %49 = vector.broadcast %48 : vector<8x1xf32> to vector<8x8xf32>
    %50 = arith.mulf %47, %49 : vector<8x8xf32>
    %51 = vector.extract_strided_slice %8 {offsets = [8, 0], sizes = [8, 32], strides = [1, 1]} : vector<32x32xf32> to vector<8x32xf32>
    %cst_18 = arith.constant dense<0.000000e+00> : vector<8x32xf32>
    %52 = tpu.matmul %50, %51, %cst_18 {dimension_numbers = #tpu.dot_dimension_numbers<[1], [0], [0], [1], [0, 0, 1, 1], [], []>} : vector<8x8xf32>, vector<8x32xf32>, vector<8x32xf32> -> vector<8x32xf32>
    %53 = arith.addf %30, %52 : vector<8x32xf32>
    %54 = vector.extract_strided_slice %7 {offsets = [0, 0, 16], sizes = [8, 1, 8], strides = [1, 1, 1]} : vector<8x2x96xf32> to vector<8x1x8xf32>
    %55 = vector.shape_cast %54 : vector<8x1x8xf32> to vector<8x8xf32>
    %56 = vector.extract_strided_slice %7 {offsets = [0, 0, 48], sizes = [8, 1, 8], strides = [1, 1, 1]} : vector<8x2x96xf32> to vector<8x1x8xf32>
    %57 = vector.shape_cast %56 : vector<8x1x8xf32> to vector<8x8xf32>
    %58 = vector.extract_strided_slice %7 {offsets = [0, 0, 80], sizes = [8, 1, 8], strides = [1, 1, 1]} : vector<8x2x96xf32> to vector<8x1x8xf32>
    %59 = vector.shape_cast %58 : vector<8x1x8xf32> to vector<8x8xf32>
    %cst_19 = arith.constant dense<0.000000e+00> : vector<8x8xf32>
    %60 = tpu.matmul %55, %57, %cst_19 {dimension_numbers = #tpu.dot_dimension_numbers<[1], [1], [0], [0], [0, 0, 1, 0], [], []>} : vector<8x8xf32>, vector<8x8xf32>, vector<8x8xf32> -> vector<8x8xf32>
    %cst_20 = arith.constant 0.353553385 : f32
    %61 = vector.broadcast %cst_20 : f32 to vector<8x8xf32>
    %62 = arith.mulf %60, %61 : vector<8x8xf32>
    %cst_21 = arith.constant dense<0xFF800000> : vector<8xf32>
    %63 = vector.multi_reduction <maximumf>, %62, %cst_21 [1] : vector<8x8xf32> to vector<8xf32>
    %64 = vector.shape_cast %63 : vector<8xf32> to vector<8x1xf32>
    %65 = vector.broadcast %64 : vector<8x1xf32> to vector<8x8xf32>
    %66 = arith.subf %62, %65 : vector<8x8xf32>
    %67 = math.exp %66 : vector<8x8xf32>
    %cst_22 = arith.constant dense<0.000000e+00> : vector<8xf32>
    %68 = vector.multi_reduction <add>, %67, %cst_22 [1] : vector<8x8xf32> to vector<8xf32>
    %69 = vector.shape_cast %68 : vector<8xf32> to vector<8x1xf32>
    %cst_23 = arith.constant dense<0.000000e+00> : vector<8x8xf32>
    %70 = tpu.matmul %67, %59, %cst_23 {dimension_numbers = #tpu.dot_dimension_numbers<[1], [0], [0], [1], [0, 0, 1, 1], [], []>} : vector<8x8xf32>, vector<8x8xf32>, vector<8x8xf32> -> vector<8x8xf32>
    %71 = tpu.reciprocal %69 {approx = true} : vector<8x1xf32> -> vector<8x1xf32>
    %72 = vector.broadcast %71 : vector<8x1xf32> to vector<8x8xf32>
    %73 = arith.mulf %70, %72 : vector<8x8xf32>
    %74 = vector.extract_strided_slice %8 {offsets = [16, 0], sizes = [8, 32], strides = [1, 1]} : vector<32x32xf32> to vector<8x32xf32>
    %cst_24 = arith.constant dense<0.000000e+00> : vector<8x32xf32>
    %75 = tpu.matmul %73, %74, %cst_24 {dimension_numbers = #tpu.dot_dimension_numbers<[1], [0], [0], [1], [0, 0, 1, 1], [], []>} : vector<8x8xf32>, vector<8x32xf32>, vector<8x32xf32> -> vector<8x32xf32>
    %76 = arith.addf %53, %75 : vector<8x32xf32>
    %77 = vector.extract_strided_slice %7 {offsets = [0, 0, 24], sizes = [8, 1, 8], strides = [1, 1, 1]} : vector<8x2x96xf32> to vector<8x1x8xf32>
    %78 = vector.shape_cast %77 : vector<8x1x8xf32> to vector<8x8xf32>
    %79 = vector.extract_strided_slice %7 {offsets = [0, 0, 56], sizes = [8, 1, 8], strides = [1, 1, 1]} : vector<8x2x96xf32> to vector<8x1x8xf32>
    %80 = vector.shape_cast %79 : vector<8x1x8xf32> to vector<8x8xf32>
    %81 = vector.extract_strided_slice %7 {offsets = [0, 0, 88], sizes = [8, 1, 8], strides = [1, 1, 1]} : vector<8x2x96xf32> to vector<8x1x8xf32>
    %82 = vector.shape_cast %81 : vector<8x1x8xf32> to vector<8x8xf32>
    %cst_25 = arith.constant dense<0.000000e+00> : vector<8x8xf32>
    %83 = tpu.matmul %78, %80, %cst_25 {dimension_numbers = #tpu.dot_dimension_numbers<[1], [1], [0], [0], [0, 0, 1, 0], [], []>} : vector<8x8xf32>, vector<8x8xf32>, vector<8x8xf32> -> vector<8x8xf32>
    %cst_26 = arith.constant 0.353553385 : f32
    %84 = vector.broadcast %cst_26 : f32 to vector<8x8xf32>
    %85 = arith.mulf %83, %84 : vector<8x8xf32>
    %cst_27 = arith.constant dense<0xFF800000> : vector<8xf32>
    %86 = vector.multi_reduction <maximumf>, %85, %cst_27 [1] : vector<8x8xf32> to vector<8xf32>
    %87 = vector.shape_cast %86 : vector<8xf32> to vector<8x1xf32>
    %88 = vector.broadcast %87 : vector<8x1xf32> to vector<8x8xf32>
    %89 = arith.subf %85, %88 : vector<8x8xf32>
    %90 = math.exp %89 : vector<8x8xf32>
    %cst_28 = arith.constant dense<0.000000e+00> : vector<8xf32>
    %91 = vector.multi_reduction <add>, %90, %cst_28 [1] : vector<8x8xf32> to vector<8xf32>
    %92 = vector.shape_cast %91 : vector<8xf32> to vector<8x1xf32>
    %cst_29 = arith.constant dense<0.000000e+00> : vector<8x8xf32>
    %93 = tpu.matmul %90, %82, %cst_29 {dimension_numbers = #tpu.dot_dimension_numbers<[1], [0], [0], [1], [0, 0, 1, 1], [], []>} : vector<8x8xf32>, vector<8x8xf32>, vector<8x8xf32> -> vector<8x8xf32>
    %94 = tpu.reciprocal %92 {approx = true} : vector<8x1xf32> -> vector<8x1xf32>
    %95 = vector.broadcast %94 : vector<8x1xf32> to vector<8x8xf32>
    %96 = arith.mulf %93, %95 : vector<8x8xf32>
    %97 = vector.extract_strided_slice %8 {offsets = [24, 0], sizes = [8, 32], strides = [1, 1]} : vector<32x32xf32> to vector<8x32xf32>
    %cst_30 = arith.constant dense<0.000000e+00> : vector<8x32xf32>
    %98 = tpu.matmul %96, %97, %cst_30 {dimension_numbers = #tpu.dot_dimension_numbers<[1], [0], [0], [1], [0, 0, 1, 1], [], []>} : vector<8x8xf32>, vector<8x32xf32>, vector<8x32xf32> -> vector<8x32xf32>
    %99 = arith.addf %76, %98 : vector<8x32xf32>
    %100 = vector.extract_strided_slice %7 {offsets = [0, 1, 0], sizes = [8, 1, 8], strides = [1, 1, 1]} : vector<8x2x96xf32> to vector<8x1x8xf32>
    %101 = vector.shape_cast %100 : vector<8x1x8xf32> to vector<8x8xf32>
    %102 = vector.extract_strided_slice %7 {offsets = [0, 1, 32], sizes = [8, 1, 8], strides = [1, 1, 1]} : vector<8x2x96xf32> to vector<8x1x8xf32>
    %103 = vector.shape_cast %102 : vector<8x1x8xf32> to vector<8x8xf32>
    %104 = vector.extract_strided_slice %7 {offsets = [0, 1, 64], sizes = [8, 1, 8], strides = [1, 1, 1]} : vector<8x2x96xf32> to vector<8x1x8xf32>
    %105 = vector.shape_cast %104 : vector<8x1x8xf32> to vector<8x8xf32>
    %cst_31 = arith.constant dense<0.000000e+00> : vector<8x8xf32>
    %106 = tpu.matmul %101, %103, %cst_31 {dimension_numbers = #tpu.dot_dimension_numbers<[1], [1], [0], [0], [0, 0, 1, 0], [], []>} : vector<8x8xf32>, vector<8x8xf32>, vector<8x8xf32> -> vector<8x8xf32>
    %cst_32 = arith.constant 0.353553385 : f32
    %107 = vector.broadcast %cst_32 : f32 to vector<8x8xf32>
    %108 = arith.mulf %106, %107 : vector<8x8xf32>
    %cst_33 = arith.constant dense<0xFF800000> : vector<8xf32>
    %109 = vector.multi_reduction <maximumf>, %108, %cst_33 [1] : vector<8x8xf32> to vector<8xf32>
    %110 = vector.shape_cast %109 : vector<8xf32> to vector<8x1xf32>
    %111 = vector.broadcast %110 : vector<8x1xf32> to vector<8x8xf32>
    %112 = arith.subf %108, %111 : vector<8x8xf32>
    %113 = math.exp %112 : vector<8x8xf32>
    %cst_34 = arith.constant dense<0.000000e+00> : vector<8xf32>
    %114 = vector.multi_reduction <add>, %113, %cst_34 [1] : vector<8x8xf32> to vector<8xf32>
    %115 = vector.shape_cast %114 : vector<8xf32> to vector<8x1xf32>
    %cst_35 = arith.constant dense<0.000000e+00> : vector<8x8xf32>
    %116 = tpu.matmul %113, %105, %cst_35 {dimension_numbers = #tpu.dot_dimension_numbers<[1], [0], [0], [1], [0, 0, 1, 1], [], []>} : vector<8x8xf32>, vector<8x8xf32>, vector<8x8xf32> -> vector<8x8xf32>
    %117 = tpu.reciprocal %115 {approx = true} : vector<8x1xf32> -> vector<8x1xf32>
    %118 = vector.broadcast %117 : vector<8x1xf32> to vector<8x8xf32>
    %119 = arith.mulf %116, %118 : vector<8x8xf32>
    %120 = vector.extract_strided_slice %8 {offsets = [0, 0], sizes = [8, 32], strides = [1, 1]} : vector<32x32xf32> to vector<8x32xf32>
    %cst_36 = arith.constant dense<0.000000e+00> : vector<8x32xf32>
    %121 = tpu.matmul %119, %120, %cst_36 {dimension_numbers = #tpu.dot_dimension_numbers<[1], [0], [0], [1], [0, 0, 1, 1], [], []>} : vector<8x8xf32>, vector<8x32xf32>, vector<8x32xf32> -> vector<8x32xf32>
    %122 = vector.extract_strided_slice %7 {offsets = [0, 1, 8], sizes = [8, 1, 8], strides = [1, 1, 1]} : vector<8x2x96xf32> to vector<8x1x8xf32>
    %123 = vector.shape_cast %122 : vector<8x1x8xf32> to vector<8x8xf32>
    %124 = vector.extract_strided_slice %7 {offsets = [0, 1, 40], sizes = [8, 1, 8], strides = [1, 1, 1]} : vector<8x2x96xf32> to vector<8x1x8xf32>
    %125 = vector.shape_cast %124 : vector<8x1x8xf32> to vector<8x8xf32>
    %126 = vector.extract_strided_slice %7 {offsets = [0, 1, 72], sizes = [8, 1, 8], strides = [1, 1, 1]} : vector<8x2x96xf32> to vector<8x1x8xf32>
    %127 = vector.shape_cast %126 : vector<8x1x8xf32> to vector<8x8xf32>
    %cst_37 = arith.constant dense<0.000000e+00> : vector<8x8xf32>
    %128 = tpu.matmul %123, %125, %cst_37 {dimension_numbers = #tpu.dot_dimension_numbers<[1], [1], [0], [0], [0, 0, 1, 0], [], []>} : vector<8x8xf32>, vector<8x8xf32>, vector<8x8xf32> -> vector<8x8xf32>
    %cst_38 = arith.constant 0.353553385 : f32
    %129 = vector.broadcast %cst_38 : f32 to vector<8x8xf32>
    %130 = arith.mulf %128, %129 : vector<8x8xf32>
    %cst_39 = arith.constant dense<0xFF800000> : vector<8xf32>
    %131 = vector.multi_reduction <maximumf>, %130, %cst_39 [1] : vector<8x8xf32> to vector<8xf32>
    %132 = vector.shape_cast %131 : vector<8xf32> to vector<8x1xf32>
    %133 = vector.broadcast %132 : vector<8x1xf32> to vector<8x8xf32>
    %134 = arith.subf %130, %133 : vector<8x8xf32>
    %135 = math.exp %134 : vector<8x8xf32>
    %cst_40 = arith.constant dense<0.000000e+00> : vector<8xf32>
    %136 = vector.multi_reduction <add>, %135, %cst_40 [1] : vector<8x8xf32> to vector<8xf32>
    %137 = vector.shape_cast %136 : vector<8xf32> to vector<8x1xf32>
    %cst_41 = arith.constant dense<0.000000e+00> : vector<8x8xf32>
    %138 = tpu.matmul %135, %127, %cst_41 {dimension_numbers = #tpu.dot_dimension_numbers<[1], [0], [0], [1], [0, 0, 1, 1], [], []>} : vector<8x8xf32>, vector<8x8xf32>, vector<8x8xf32> -> vector<8x8xf32>
    %139 = tpu.reciprocal %137 {approx = true} : vector<8x1xf32> -> vector<8x1xf32>
    %140 = vector.broadcast %139 : vector<8x1xf32> to vector<8x8xf32>
    %141 = arith.mulf %138, %140 : vector<8x8xf32>
    %142 = vector.extract_strided_slice %8 {offsets = [8, 0], sizes = [8, 32], strides = [1, 1]} : vector<32x32xf32> to vector<8x32xf32>
    %cst_42 = arith.constant dense<0.000000e+00> : vector<8x32xf32>
    %143 = tpu.matmul %141, %142, %cst_42 {dimension_numbers = #tpu.dot_dimension_numbers<[1], [0], [0], [1], [0, 0, 1, 1], [], []>} : vector<8x8xf32>, vector<8x32xf32>, vector<8x32xf32> -> vector<8x32xf32>
    %144 = arith.addf %121, %143 : vector<8x32xf32>
    %145 = vector.extract_strided_slice %7 {offsets = [0, 1, 16], sizes = [8, 1, 8], strides = [1, 1, 1]} : vector<8x2x96xf32> to vector<8x1x8xf32>
    %146 = vector.shape_cast %145 : vector<8x1x8xf32> to vector<8x8xf32>
    %147 = vector.extract_strided_slice %7 {offsets = [0, 1, 48], sizes = [8, 1, 8], strides = [1, 1, 1]} : vector<8x2x96xf32> to vector<8x1x8xf32>
    %148 = vector.shape_cast %147 : vector<8x1x8xf32> to vector<8x8xf32>
    %149 = vector.extract_strided_slice %7 {offsets = [0, 1, 80], sizes = [8, 1, 8], strides = [1, 1, 1]} : vector<8x2x96xf32> to vector<8x1x8xf32>
    %150 = vector.shape_cast %149 : vector<8x1x8xf32> to vector<8x8xf32>
    %cst_43 = arith.constant dense<0.000000e+00> : vector<8x8xf32>
    %151 = tpu.matmul %146, %148, %cst_43 {dimension_numbers = #tpu.dot_dimension_numbers<[1], [1], [0], [0], [0, 0, 1, 0], [], []>} : vector<8x8xf32>, vector<8x8xf32>, vector<8x8xf32> -> vector<8x8xf32>
    %cst_44 = arith.constant 0.353553385 : f32
    %152 = vector.broadcast %cst_44 : f32 to vector<8x8xf32>
    %153 = arith.mulf %151, %152 : vector<8x8xf32>
    %cst_45 = arith.constant dense<0xFF800000> : vector<8xf32>
    %154 = vector.multi_reduction <maximumf>, %153, %cst_45 [1] : vector<8x8xf32> to vector<8xf32>
    %155 = vector.shape_cast %154 : vector<8xf32> to vector<8x1xf32>
    %156 = vector.broadcast %155 : vector<8x1xf32> to vector<8x8xf32>
    %157 = arith.subf %153, %156 : vector<8x8xf32>
    %158 = math.exp %157 : vector<8x8xf32>
    %cst_46 = arith.constant dense<0.000000e+00> : vector<8xf32>
    %159 = vector.multi_reduction <add>, %158, %cst_46 [1] : vector<8x8xf32> to vector<8xf32>
    %160 = vector.shape_cast %159 : vector<8xf32> to vector<8x1xf32>
    %cst_47 = arith.constant dense<0.000000e+00> : vector<8x8xf32>
    %161 = tpu.matmul %158, %150, %cst_47 {dimension_numbers = #tpu.dot_dimension_numbers<[1], [0], [0], [1], [0, 0, 1, 1], [], []>} : vector<8x8xf32>, vector<8x8xf32>, vector<8x8xf32> -> vector<8x8xf32>
    %162 = tpu.reciprocal %160 {approx = true} : vector<8x1xf32> -> vector<8x1xf32>
    %163 = vector.broadcast %162 : vector<8x1xf32> to vector<8x8xf32>
    %164 = arith.mulf %161, %163 : vector<8x8xf32>
    %165 = vector.extract_strided_slice %8 {offsets = [16, 0], sizes = [8, 32], strides = [1, 1]} : vector<32x32xf32> to vector<8x32xf32>
    %cst_48 = arith.constant dense<0.000000e+00> : vector<8x32xf32>
    %166 = tpu.matmul %164, %165, %cst_48 {dimension_numbers = #tpu.dot_dimension_numbers<[1], [0], [0], [1], [0, 0, 1, 1], [], []>} : vector<8x8xf32>, vector<8x32xf32>, vector<8x32xf32> -> vector<8x32xf32>
    %167 = arith.addf %144, %166 : vector<8x32xf32>
    %168 = vector.extract_strided_slice %7 {offsets = [0, 1, 24], sizes = [8, 1, 8], strides = [1, 1, 1]} : vector<8x2x96xf32> to vector<8x1x8xf32>
    %169 = vector.shape_cast %168 : vector<8x1x8xf32> to vector<8x8xf32>
    %170 = vector.extract_strided_slice %7 {offsets = [0, 1, 56], sizes = [8, 1, 8], strides = [1, 1, 1]} : vector<8x2x96xf32> to vector<8x1x8xf32>
    %171 = vector.shape_cast %170 : vector<8x1x8xf32> to vector<8x8xf32>
    %172 = vector.extract_strided_slice %7 {offsets = [0, 1, 88], sizes = [8, 1, 8], strides = [1, 1, 1]} : vector<8x2x96xf32> to vector<8x1x8xf32>
    %173 = vector.shape_cast %172 : vector<8x1x8xf32> to vector<8x8xf32>
    %cst_49 = arith.constant dense<0.000000e+00> : vector<8x8xf32>
    %174 = tpu.matmul %169, %171, %cst_49 {dimension_numbers = #tpu.dot_dimension_numbers<[1], [1], [0], [0], [0, 0, 1, 0], [], []>} : vector<8x8xf32>, vector<8x8xf32>, vector<8x8xf32> -> vector<8x8xf32>
    %cst_50 = arith.constant 0.353553385 : f32
    %175 = vector.broadcast %cst_50 : f32 to vector<8x8xf32>
    %176 = arith.mulf %174, %175 : vector<8x8xf32>
    %cst_51 = arith.constant dense<0xFF800000> : vector<8xf32>
    %177 = vector.multi_reduction <maximumf>, %176, %cst_51 [1] : vector<8x8xf32> to vector<8xf32>
    %178 = vector.shape_cast %177 : vector<8xf32> to vector<8x1xf32>
    %179 = vector.broadcast %178 : vector<8x1xf32> to vector<8x8xf32>
    %180 = arith.subf %176, %179 : vector<8x8xf32>
    %181 = math.exp %180 : vector<8x8xf32>
    %cst_52 = arith.constant dense<0.000000e+00> : vector<8xf32>
    %182 = vector.multi_reduction <add>, %181, %cst_52 [1] : vector<8x8xf32> to vector<8xf32>
    %183 = vector.shape_cast %182 : vector<8xf32> to vector<8x1xf32>
    %cst_53 = arith.constant dense<0.000000e+00> : vector<8x8xf32>
    %184 = tpu.matmul %181, %173, %cst_53 {dimension_numbers = #tpu.dot_dimension_numbers<[1], [0], [0], [1], [0, 0, 1, 1], [], []>} : vector<8x8xf32>, vector<8x8xf32>, vector<8x8xf32> -> vector<8x8xf32>
    %185 = tpu.reciprocal %183 {approx = true} : vector<8x1xf32> -> vector<8x1xf32>
    %186 = vector.broadcast %185 : vector<8x1xf32> to vector<8x8xf32>
    %187 = arith.mulf %184, %186 : vector<8x8xf32>
    %188 = vector.extract_strided_slice %8 {offsets = [24, 0], sizes = [8, 32], strides = [1, 1]} : vector<32x32xf32> to vector<8x32xf32>
    %cst_54 = arith.constant dense<0.000000e+00> : vector<8x32xf32>
    %189 = tpu.matmul %187, %188, %cst_54 {dimension_numbers = #tpu.dot_dimension_numbers<[1], [0], [0], [1], [0, 0, 1, 1], [], []>} : vector<8x8xf32>, vector<8x32xf32>, vector<8x32xf32> -> vector<8x32xf32>
    %190 = arith.addf %167, %189 : vector<8x32xf32>
    %191 = vector.shape_cast %99 : vector<8x32xf32> to vector<8x1x32xf32>
    %192 = vector.shape_cast %190 : vector<8x32xf32> to vector<8x1x32xf32>
    %193 = tpu.concatenate %191, %192 in 1 : vector<8x1x32xf32>, vector<8x1x32xf32> -> vector<8x2x32xf32>
    %194 = vector.shape_cast %193 : vector<8x2x32xf32> to vector<16x32xf32>
    %c1 = arith.constant 1 : index
    %c0_55 = arith.constant 0 : index
    %195 = vector.load %arg2[%c1, %c0_55] : memref<10x96xf32, #tpu.memory_space<vmem>>, vector<1x32xf32>
    %196 = vector.broadcast %195 : vector<1x32xf32> to vector<16x32xf32>
    %197 = arith.addf %194, %196 : vector<16x32xf32>
    %198 = arith.addf %1, %197 : vector<16x32xf32>
    %c4 = arith.constant 4 : index
    %c0_56 = arith.constant 0 : index
    %199 = vector.load %arg2[%c4, %c0_56] : memref<10x96xf32, #tpu.memory_space<vmem>>, vector<1x32xf32>
    %c5 = arith.constant 5 : index
    %c0_57 = arith.constant 0 : index
    %200 = vector.load %arg2[%c5, %c0_57] : memref<10x96xf32, #tpu.memory_space<vmem>>, vector<1x32xf32>
    %cst_58 = arith.constant dense<0.000000e+00> : vector<16xf32>
    %201 = vector.multi_reduction <add>, %198, %cst_58 [1] : vector<16x32xf32> to vector<16xf32>
    %202 = vector.shape_cast %201 : vector<16xf32> to vector<16x1xf32>
    %cst_59 = arith.constant 3.200000e+01 : f32
    %203 = vector.broadcast %cst_59 : f32 to vector<16x1xf32>
    %204 = arith.divf %202, %203 : vector<16x1xf32>
    %205 = vector.broadcast %204 : vector<16x1xf32> to vector<16x32xf32>
    %206 = arith.subf %198, %205 : vector<16x32xf32>
    %207 = arith.mulf %206, %206 : vector<16x32xf32>
    %cst_60 = arith.constant dense<0.000000e+00> : vector<16xf32>
    %208 = vector.multi_reduction <add>, %207, %cst_60 [1] : vector<16x32xf32> to vector<16xf32>
    %209 = vector.shape_cast %208 : vector<16xf32> to vector<16x1xf32>
    %cst_61 = arith.constant 3.200000e+01 : f32
    %210 = vector.broadcast %cst_61 : f32 to vector<16x1xf32>
    %211 = arith.divf %209, %210 : vector<16x1xf32>
    %212 = vector.broadcast %204 : vector<16x1xf32> to vector<16x32xf32>
    %213 = arith.subf %198, %212 : vector<16x32xf32>
    %cst_62 = arith.constant 9.99999974E-6 : f32
    %214 = vector.broadcast %cst_62 : f32 to vector<16x1xf32>
    %215 = arith.addf %211, %214 : vector<16x1xf32>
    %216 = math.rsqrt %215 : vector<16x1xf32>
    %217 = vector.broadcast %216 : vector<16x1xf32> to vector<16x32xf32>
    %218 = arith.mulf %213, %217 : vector<16x32xf32>
    %219 = vector.broadcast %199 : vector<1x32xf32> to vector<16x32xf32>
    %220 = arith.mulf %218, %219 : vector<16x32xf32>
    %221 = vector.broadcast %200 : vector<1x32xf32> to vector<16x32xf32>
    %222 = arith.addf %220, %221 : vector<16x32xf32>
    %c0_63 = arith.constant 0 : index
    %c128 = arith.constant 128 : index
    %223 = vector.load %arg1[%c0_63, %c128] : memref<32x192xf32, #tpu.memory_space<vmem>>, vector<32x32xf32>
    %cst_64 = arith.constant dense<0.000000e+00> : vector<16x32xf32>
    %224 = tpu.matmul %222, %223, %cst_64 {dimension_numbers = #tpu.dot_dimension_numbers<[1], [0], [0], [1], [0, 0, 1, 1], [], []>} : vector<16x32xf32>, vector<32x32xf32>, vector<16x32xf32> -> vector<16x32xf32>
    %c2 = arith.constant 2 : index
    %c0_65 = arith.constant 0 : index
    %225 = vector.load %arg2[%c2, %c0_65] : memref<10x96xf32, #tpu.memory_space<vmem>>, vector<1x32xf32>
    %226 = vector.broadcast %225 : vector<1x32xf32> to vector<16x32xf32>
    %227 = arith.addf %224, %226 : vector<16x32xf32>
    %cst_66 = arith.constant 0.000000e+00 : f32
    %228 = vector.broadcast %cst_66 : f32 to vector<16x32xf32>
    %229 = arith.maximumf %227, %228 : vector<16x32xf32>
    %c0_67 = arith.constant 0 : index
    %c160 = arith.constant 160 : index
    %230 = vector.load %arg1[%c0_67, %c160] : memref<32x192xf32, #tpu.memory_space<vmem>>, vector<32x32xf32>
    %cst_68 = arith.constant dense<0.000000e+00> : vector<16x32xf32>
    %231 = tpu.matmul %229, %230, %cst_68 {dimension_numbers = #tpu.dot_dimension_numbers<[1], [0], [0], [1], [0, 0, 1, 1], [], []>} : vector<16x32xf32>, vector<32x32xf32>, vector<16x32xf32> -> vector<16x32xf32>
    %c3 = arith.constant 3 : index
    %c0_69 = arith.constant 0 : index
    %232 = vector.load %arg2[%c3, %c0_69] : memref<10x96xf32, #tpu.memory_space<vmem>>, vector<1x32xf32>
    %233 = vector.broadcast %232 : vector<1x32xf32> to vector<16x32xf32>
    %234 = arith.addf %231, %233 : vector<16x32xf32>
    %235 = arith.addf %222, %234 : vector<16x32xf32>
    %c6 = arith.constant 6 : index
    %c0_70 = arith.constant 0 : index
    %236 = vector.load %arg2[%c6, %c0_70] : memref<10x96xf32, #tpu.memory_space<vmem>>, vector<1x32xf32>
    %c7 = arith.constant 7 : index
    %c0_71 = arith.constant 0 : index
    %237 = vector.load %arg2[%c7, %c0_71] : memref<10x96xf32, #tpu.memory_space<vmem>>, vector<1x32xf32>
    %cst_72 = arith.constant dense<0.000000e+00> : vector<16xf32>
    %238 = vector.multi_reduction <add>, %235, %cst_72 [1] : vector<16x32xf32> to vector<16xf32>
    %239 = vector.shape_cast %238 : vector<16xf32> to vector<16x1xf32>
    %cst_73 = arith.constant 3.200000e+01 : f32
    %240 = vector.broadcast %cst_73 : f32 to vector<16x1xf32>
    %241 = arith.divf %239, %240 : vector<16x1xf32>
    %242 = vector.broadcast %241 : vector<16x1xf32> to vector<16x32xf32>
    %243 = arith.subf %235, %242 : vector<16x32xf32>
    %244 = arith.mulf %243, %243 : vector<16x32xf32>
    %cst_74 = arith.constant dense<0.000000e+00> : vector<16xf32>
    %245 = vector.multi_reduction <add>, %244, %cst_74 [1] : vector<16x32xf32> to vector<16xf32>
    %246 = vector.shape_cast %245 : vector<16xf32> to vector<16x1xf32>
    %cst_75 = arith.constant 3.200000e+01 : f32
    %247 = vector.broadcast %cst_75 : f32 to vector<16x1xf32>
    %248 = arith.divf %246, %247 : vector<16x1xf32>
    %249 = vector.broadcast %241 : vector<16x1xf32> to vector<16x32xf32>
    %250 = arith.subf %235, %249 : vector<16x32xf32>
    %cst_76 = arith.constant 9.99999974E-6 : f32
    %251 = vector.broadcast %cst_76 : f32 to vector<16x1xf32>
    %252 = arith.addf %248, %251 : vector<16x1xf32>
    %253 = math.rsqrt %252 : vector<16x1xf32>
    %254 = vector.broadcast %253 : vector<16x1xf32> to vector<16x32xf32>
    %255 = arith.mulf %250, %254 : vector<16x32xf32>
    %256 = vector.broadcast %236 : vector<1x32xf32> to vector<16x32xf32>
    %257 = arith.mulf %255, %256 : vector<16x32xf32>
    %258 = vector.broadcast %237 : vector<1x32xf32> to vector<16x32xf32>
    %259 = arith.addf %257, %258 : vector<16x32xf32>
    %c8 = arith.constant 8 : index
    %c0_77 = arith.constant 0 : index
    %260 = vector.load %arg2[%c8, %c0_77] : memref<10x96xf32, #tpu.memory_space<vmem>>, vector<1x32xf32>
    %c9 = arith.constant 9 : index
    %c0_78 = arith.constant 0 : index
    %261 = vector.load %arg2[%c9, %c0_78] : memref<10x96xf32, #tpu.memory_space<vmem>>, vector<1x32xf32>
    %cst_79 = arith.constant dense<0.000000e+00> : vector<16xf32>
    %262 = vector.multi_reduction <add>, %259, %cst_79 [1] : vector<16x32xf32> to vector<16xf32>
    %263 = vector.shape_cast %262 : vector<16xf32> to vector<16x1xf32>
    %cst_80 = arith.constant 3.200000e+01 : f32
    %264 = vector.broadcast %cst_80 : f32 to vector<16x1xf32>
    %265 = arith.divf %263, %264 : vector<16x1xf32>
    %266 = vector.broadcast %265 : vector<16x1xf32> to vector<16x32xf32>
    %267 = arith.subf %259, %266 : vector<16x32xf32>
    %268 = arith.mulf %267, %267 : vector<16x32xf32>
    %cst_81 = arith.constant dense<0.000000e+00> : vector<16xf32>
    %269 = vector.multi_reduction <add>, %268, %cst_81 [1] : vector<16x32xf32> to vector<16xf32>
    %270 = vector.shape_cast %269 : vector<16xf32> to vector<16x1xf32>
    %cst_82 = arith.constant 3.200000e+01 : f32
    %271 = vector.broadcast %cst_82 : f32 to vector<16x1xf32>
    %272 = arith.divf %270, %271 : vector<16x1xf32>
    %273 = vector.broadcast %265 : vector<16x1xf32> to vector<16x32xf32>
    %274 = arith.subf %259, %273 : vector<16x32xf32>
    %cst_83 = arith.constant 9.99999974E-6 : f32
    %275 = vector.broadcast %cst_83 : f32 to vector<16x1xf32>
    %276 = arith.addf %272, %275 : vector<16x1xf32>
    %277 = math.rsqrt %276 : vector<16x1xf32>
    %278 = vector.broadcast %277 : vector<16x1xf32> to vector<16x32xf32>
    %279 = arith.mulf %274, %278 : vector<16x32xf32>
    %280 = vector.broadcast %260 : vector<1x32xf32> to vector<16x32xf32>
    %281 = arith.mulf %279, %280 : vector<16x32xf32>
    %282 = vector.broadcast %261 : vector<1x32xf32> to vector<16x32xf32>
    %283 = arith.addf %281, %282 : vector<16x32xf32>
    %284 = vector.shape_cast %283 : vector<16x32xf32> to vector<8x2x32xf32>
    %c0_84 = arith.constant 0 : index
    %c0_85 = arith.constant 0 : index
    %c0_86 = arith.constant 0 : index
    %285 = vector.load %arg3[%c0_84, %c0_85, %c0_86] : memref<8x2x32xf32, #tpu.memory_space<vmem>>, vector<8x2x32xf32>
    tpu.vector_store %arg3[%c0_84, %c0_85, %c0_86], %284 {strides = array<i32>} : memref<8x2x32xf32, #tpu.memory_space<vmem>>, vector<8x2x32xf32>,
    return
  }
}

</mosaic_0001>

<llo_original>
// kernel: diffusion_transformer.1
$region0: #{diffusion_transformer.1}
  #allocation0 [shape = 'u32[]', space=smem, size = 0x4, offset = 0x4, fixed_abs, tag = 'smem constant byte address 0x4 - core index']
  #allocation1 [shape = 'u32[144,128]{1,0:T(1,128)}', space=vmem, size = 0x12000, scoped, tag = 'internal scratch']
  %s0 = inlined_call_operand.vmem [shape: f32[8,2,32], index: 0, kind: input, shape index: {}]
  %s1 = inlined_call_operand.vmem [shape: f32[32,192], index: 1, kind: input, shape index: {}]
  %s2 = inlined_call_operand.vmem [shape: f32[10,96], index: 2, kind: input, shape index: {}]
  %s3 = inlined_call_operand.hbm [shape: f32[8,2,32], index: 3, kind: output, shape index: {}]
  %s4 = sld [smem:[#allocation0]]
  $region22: #{diffusion_transformer.1} parent=0
    _
  %s6 = ssub.s32 1, %s4
  %s7 = scalar_select 0, %s6, %s4
  $region1: #{diffusion_transformer.1} parent=0
    #allocation2 [shape = 'u8[8192]{0}', space=vmem, size = 0x2000, scoped, tag = 'output window, operand 0, single buffered']
    #allocation3 [shape = 's32[1]{0}', space=sflag, size = 0x4, scoped, tag = 'scoped memory for diffusion_transformer.1']
    %8 = vsyncpa [#allocation3], 0
    // Predicated region
    $region2: #{diffusion_transformer.1} parent=1 // pred_check
      _
    $region3: #{diffusion_transformer.1} parent=1 // pred_check_branch
      %10 = sbr.rel (0) target = $region5
    $region4: #{diffusion_transformer.1} parent=1 // pred_region
      _
    $region5: #{diffusion_transformer.1} parent=1 // pred_fallthru
      _
    // Predicated region
    $region6: #{diffusion_transformer.1} parent=1 // pred_check
      _
    $region7: #{diffusion_transformer.1} parent=1 // pred_check_branch
      %12 = sbr.rel (0) target = $region9
    $region8: #{diffusion_transformer.1} parent=1 // pred_region
      _
    $region9: #{diffusion_transformer.1} parent=1 // pred_fallthru
      _
    // Predicated region
    $region10: #{diffusion_transformer.1} parent=1 // pred_check
      _
    $region11: #{diffusion_transformer.1} parent=1 // pred_check_branch
      %14 = sbr.rel (0) target = $region13
    $region12: #{diffusion_transformer.1} parent=1 // pred_region
      _
    $region13: #{diffusion_transformer.1} parent=1 // pred_fallthru
      _
    %v15 = vld [vmem:[%s0] sm:$0x3]
    %v16 = vld [vmem:[%s0 + $0x2] sm:$0x3]
    %v17 = vld [vmem:[%s0 + $0x4] sm:$0x3]
    %v18 = vld [vmem:[%s0 + $0x6] sm:$0x3]
    %v19 = vld [vmem:[%s0 + $0x8] sm:$0x3]
    %v20 = vld [vmem:[%s0 + $0xa] sm:$0x3]
    %v21 = vld [vmem:[%s0 + $0xc] sm:$0x3]
    %v22 = vld [vmem:[%s0 + $0xe] sm:$0x3]
    %v23 = vld [vmem:[%s1] sm:$0xff]
    %v24 = vld [vmem:[%s1 + $0x10] sm:$0xff]
    %v25 = vld [vmem:[%s1 + $0x20] sm:$0xff]
    %v26 = vld [vmem:[%s1 + $0x30] sm:$0xff]
    %v27 = vld [vmem:[%s2] sm:$0x1]
    %v28 = vlaneseq
    %v29 = vshrl.u32 %v28, 7
    %v30 = vsub.s32 0, %v29
    %v31 = vrot.slane %v27, %v30
    %v40 = vcombine.low %v15, %v16
    %v41 = vcombine.low %v17, %v18
    %v43 = vunpack.c.l.s4 1983009808
    %v44 = vunpack.c.0.s8 %v43
    %v45 = vlaneseq
    %v46 = vshrl.u32 %v45, 7
    %v47 = vsub.s32 %v44, %v46
    %v48 = vrot.slane %v40, %v47
    %v50 = vunpack.c.l.s4 1983009808
    %v51 = vunpack.c.0.s8 %v50
    %v52 = vlaneseq
    %v53 = vshrl.u32 %v52, 7
    %v54 = vsub.s32 %v51, %v53
    %v55 = vrot.slane %v41, %v54
    %v56 = vcombine.low %v48, %v55
    %v57 = vcombine.low %v19, %v20
    %v58 = vcombine.low %v21, %v22
    %v60 = vunpack.c.l.s4 1983009808
    %v61 = vunpack.c.0.s8 %v60
    %v62 = vlaneseq
    %v63 = vshrl.u32 %v62, 7
    %v64 = vsub.s32 %v61, %v63
    %v65 = vrot.slane %v57, %v64
    %v67 = vunpack.c.l.s4 1983009808
    %v68 = vunpack.c.0.s8 %v67
    %v69 = vlaneseq
    %v70 = vshrl.u32 %v69, 7
    %v71 = vsub.s32 %v68, %v70
    %v72 = vrot.slane %v58, %v71
    %v73 = vcombine.low %v65, %v72
    %vm74 = vcmask 261120
    %v75 = vsel %vm74, %v56, 0
    %v77 = vsel %vm74, %v73, 0
    %79 = vmatprep.subr.mxu0 0.0
    %80 = vmatpush1.msra.mxu0 %v23
    %81 = vmatprep.subr.mxu0 0.0
    %82 = vmatpush1.msra.mxu0 %v24
    %83 = vmatprep.subr.mxu0 0.0
    %84 = vmatpush1.msra.mxu0 %v25
    %85 = vmatprep.subr.mxu0 0.0
    %86 = vmatpush1.msra.mxu0 %v26
    %87 = vmatprep.subr.mxu0 0.0
    %88 = vmatpush1.msra.mxu0 0.0
    %89 = vmatprep.subr.mxu0 0.0
    %90 = vmatpush1.msra.mxu0 0.0
    %91 = vmatprep.subr.mxu0 0.0
    %92 = vmatpush1.msra.mxu0 0.0
    %93 = vmatprep.subr.mxu0 0.0
    %94 = vmatpush1.msra.mxu0 0.0
    %95 = vmatprep.subr.mxu0 0.0
    %96 = vmatpush1.msra.mxu0 0.0
    %97 = vmatprep.subr.mxu0 0.0
    %98 = vmatpush1.msra.mxu0 0.0
    %99 = vmatprep.subr.mxu0 0.0
    %100 = vmatpush1.msra.mxu0 0.0
    %101 = vmatprep.subr.mxu0 0.0
    %102 = vmatpush1.msra.mxu0 0.0
    %103 = vmatprep.subr.mxu0 0.0
    %104 = vmatpush1.msra.mxu0 0.0
    %105 = vmatprep.subr.mxu0 0.0
    %106 = vmatpush1.msra.mxu0 0.0
    %107 = vmatprep.subr.mxu0 0.0
    %108 = vmatpush1.msra.mxu0 0.0
    %109 = vmatprep.subr.mxu0 0.0
    %110 = vmatpush1.msra.mxu0 0.0
    %111 = vmatprep.subr.mxu0 0.0
    %112 = vmatpush1.msra.mxu0 0.0
    %113 = vmatprep.subr.mxu0 0.0
    %114 = vmatpush1.msra.mxu0 0.0
    %115 = vmatprep.subr.mxu0 0.0
    %116 = vmatpush1.msra.mxu0 0.0
    %117 = vmatprep.subr.mxu0 0.0
    %118 = vmatpush1.msra.mxu0 0.0
    %119 = vmatprep.subr.mxu0 0.0
    %120 = vmatpush1.msra.mxu0 0.0
    %121 = vmatprep.subr.mxu0 0.0
    %122 = vmatpush1.msra.mxu0 0.0
    %123 = vmatprep.subr.mxu0 0.0
    %124 = vmatpush1.msra.mxu0 0.0
    %125 = vmatprep.subr.mxu0 0.0
    %126 = vmatpush1.msra.mxu0 0.0
    %127 = vmatprep.subr.mxu0 0.0
    %128 = vmatpush1.msra.mxu0 0.0
    %129 = vmatprep.subr.mxu0 0.0
    %130 = vmatpush1.msra.mxu0 0.0
    %131 = vmatprep.subr.mxu0 0.0
    %132 = vmatpush1.msra.mxu0 0.0
    %133 = vmatprep.subr.mxu0 0.0
    %134 = vmatpush1.msra.mxu0 0.0
    %135 = vmatprep.subr.mxu0 0.0
    %136 = vmatpush1.msra.mxu0 0.0
    %137 = vmatprep.subr.mxu0 0.0
    %138 = vmatpush1.msra.mxu0 0.0
    %139 = vmatprep.subr.mxu0 0.0
    %140 = vmatpush1.msra.mxu0 0.0
    %141 = vmatprep.subr.mxu0 0.0
    %142 = vmatpush1.msra.mxu0 0.0
    %143 = vmatprep.mubr.f32.mxu0 0.0
    %144 = vmatmul.mubr.f32.gmra.mrb[0].mxu0 %v75
    %v145 = vpop.f32.mrb[0].mxu0
    %v146 = vadd.f32 %v31, %v145
    %v147 = vpop.f32.mrb[0].mxu0
    %148 = vmatprep.mubr.f32.mxu0 0.0
    %149 = vmatmul.mubr.f32.gmra.mrb[0].mxu0 %v77
    %v150 = vpop.f32.mrb[0].mxu0
    %v151 = vadd.f32 %v31, %v150
    %v152 = vpop.f32.mrb[0].mxu0
    %153 = vdwg.mxu0
    %v156 = vcombine.high %v146, %v146
    %v158 = vunpack.c.l.s4 1983009808
    %v159 = vunpack.c.0.s8 %v158
    %v160 = vlaneseq
    %v161 = vshrl.u32 %v160, 7
    %v162 = vsub.s32 %v159, %v161
    %v163 = vrot.slane %v146, %v162
    %v165 = vunpack.c.l.s4 1983009808
    %v166 = vunpack.c.0.s8 %v165
    %v167 = vlaneseq
    %v168 = vshrl.u32 %v167, 7
    %v169 = vsub.s32 %v166, %v168
    %v170 = vrot.slane %v156, %v169
    %v171 = vcombine.high %v163, %v163
    %v172 = vcombine.high %v170, %v170
    %v173 = vcombine.high %v151, %v151
    %v175 = vunpack.c.l.s4 1983009808
    %v176 = vunpack.c.0.s8 %v175
    %v177 = vlaneseq
    %v178 = vshrl.u32 %v177, 7
    %v179 = vsub.s32 %v176, %v178
    %v180 = vrot.slane %v151, %v179
    %v182 = vunpack.c.l.s4 1983009808
    %v183 = vunpack.c.0.s8 %v182
    %v184 = vlaneseq
    %v185 = vshrl.u32 %v184, 7
    %v186 = vsub.s32 %v183, %v185
    %v187 = vrot.slane %v173, %v186
    %v188 = vcombine.high %v180, %v180
    %v189 = vcombine.high %v187, %v187
    %v190 = vld [vmem:[%s1] sm:$0xff]
    %v191 = vld [vmem:[%s1 + $0x10] sm:$0xff]
    %v192 = vld [vmem:[%s1 + $0x20] sm:$0xff]
    %v193 = vld [vmem:[%s1 + $0x30] sm:$0xff]
    %v194 = vlaneseq
    %v195 = vshrl.u32 %v194, 7
    %v196 = vsub.s32 0, %v195
    %v197 = vrot.slane %v163, %v196
    %v198 = vlaneseq
    %v199 = vshrl.u32 %v198, 7
    %v200 = vsub.s32 0, %v199
    %v201 = vrot.slane %v171, %v200
    %v202 = vlaneseq
    %v203 = vshrl.u32 %v202, 7
    %v204 = vsub.s32 0, %v203
    %v205 = vrot.slane %v170, %v204
    %v206 = vlaneseq
    %v207 = vshrl.u32 %v206, 7
    %v208 = vsub.s32 0, %v207
    %v209 = vrot.slane %v172, %v208
    %v210 = vlaneseq
    %v211 = vshrl.u32 %v210, 7
    %v212 = vsub.s32 0, %v211
    %v213 = vrot.slane %v180, %v212
    %v214 = vlaneseq
    %v215 = vshrl.u32 %v214, 7
    %v216 = vsub.s32 0, %v215
    %v217 = vrot.slane %v188, %v216
    %v218 = vlaneseq
    %v219 = vshrl.u32 %v218, 7
    %v220 = vsub.s32 0, %v219
    %v221 = vrot.slane %v187, %v220
    %v222 = vlaneseq
    %v223 = vshrl.u32 %v222, 7
    %v224 = vsub.s32 0, %v223
    %v225 = vrot.slane %v189, %v224
    %vm226 = vcmask 1041409
    %v227 = vsel %vm226, %v201, %v197
    %vm228 = vcmask 1042434
    %v229 = vsel %vm228, %v205, %v227
    %vm230 = vcmask 1043459
    %v231 = vsel %vm230, %v209, %v229
    %vm232 = vcmask 1044484
    %v233 = vsel %vm232, %v213, %v231
    %vm234 = vcmask 1045509
    %v235 = vsel %vm234, %v217, %v233
    %vm236 = vcmask 1046534
    %v237 = vsel %vm236, %v221, %v235
    %vm238 = vcmask 1047559
    %v239 = vsel %vm238, %v225, %v237
    %240 = vrot.lane.b32.xlu0 %v239, 96
    %v241 = vpop.permute.xlu0 %240
    %vm242 = vcmask 64512
    %v243 = vsel %vm242, %v239, 0
    %v245 = vsel %vm242, %v241, 0
    %247 = vmatprep.subr.mxu0 0.0
    %248 = vmatpush1.xpose.msra.mxu0 %v245
    %249 = vmatprep.subr.mxu0 0.0
    %250 = vmatpush1.xpose.msra.mxu0 0.0
    %251 = vmatprep.subr.mxu0 0.0
    %252 = vmatpush1.xpose.msra.mxu0 0.0
    %253 = vmatprep.subr.mxu0 0.0
    %254 = vmatpush1.xpose.msra.mxu0 0.0
    %255 = vmatprep.subr.mxu0 0.0
    %256 = vmatpush1.xpose.msra.mxu0 0.0
    %257 = vmatprep.subr.mxu0 0.0
    %258 = vmatpush1.xpose.msra.mxu0 0.0
    %259 = vmatprep.subr.mxu0 0.0
    %260 = vmatpush1.xpose.msra.mxu0 0.0
    %261 = vmatprep.subr.mxu0 0.0
    %262 = vmatpush1.xpose.msra.mxu0 0.0
    %263 = vmatprep.subr.mxu0 0.0
    %264 = vmatpush1.xpose.msra.mxu0 0.0
    %265 = vmatprep.subr.mxu0 0.0
    %266 = vmatpush1.xpose.msra.mxu0 0.0
    %267 = vmatprep.subr.mxu0 0.0
    %268 = vmatpush1.xpose.msra.mxu0 0.0
    %269 = vmatprep.subr.mxu0 0.0
    %270 = vmatpush1.xpose.msra.mxu0 0.0
    %271 = vmatprep.subr.mxu0 0.0
    %272 = vmatpush1.xpose.msra.mxu0 0.0
    %273 = vmatprep.subr.mxu0 0.0
    %274 = vmatpush1.xpose.msra.mxu0 0.0
    %275 = vmatprep.subr.mxu0 0.0
    %276 = vmatpush1.xpose.msra.mxu0 0.0
    %277 = vmatprep.subr.mxu0 0.0
    %278 = vmatpush1.xpose.msra.mxu0 0.0
    %279 = vmatprep.subr.mxu0 0.0
    %280 = vmatpush1.xpose.msra.mxu0 0.0
    %281 = vmatprep.subr.mxu0 0.0
    %282 = vmatpush1.xpose.msra.mxu0 0.0
    %283 = vmatprep.subr.mxu0 0.0
    %284 = vmatpush1.xpose.msra.mxu0 0.0
    %285 = vmatprep.subr.mxu0 0.0
    %286 = vmatpush1.xpose.msra.mxu0 0.0
    %287 = vmatprep.subr.mxu0 0.0
    %288 = vmatpush1.xpose.msra.mxu0 0.0
    %289 = vmatprep.subr.mxu0 0.0
    %290 = vmatpush1.xpose.msra.mxu0 0.0
    %291 = vmatprep.subr.mxu0 0.0
    %292 = vmatpush1.xpose.msra.mxu0 0.0
    %293 = vmatprep.subr.mxu0 0.0
    %294 = vmatpush1.xpose.msra.mxu0 0.0
    %295 = vmatprep.subr.mxu0 0.0
    %296 = vmatpush1.xpose.msra.mxu0 0.0
    %297 = vmatprep.subr.mxu0 0.0
    %298 = vmatpush1.xpose.msra.mxu0 0.0
    %299 = vmatprep.subr.mxu0 0.0
    %300 = vmatpush1.xpose.msra.mxu0 0.0
    %301 = vmatprep.subr.mxu0 0.0
    %302 = vmatpush1.xpose.msra.mxu0 0.0
    %303 = vmatprep.subr.mxu0 0.0
    %304 = vmatpush1.xpose.msra.mxu0 0.0
    %305 = vmatprep.subr.mxu0 0.0
    %306 = vmatpush1.xpose.msra.mxu0 0.0
    %307 = vmatprep.subr.mxu0 0.0
    %308 = vmatpush1.xpose.msra.mxu0 0.0
    %309 = vmatprep.subr.mxu0 0.0
    %310 = vmatpush1.xpose.msra.mxu0 0.0
    %311 = vmatprep.mubr.f32.mxu0 0.0
    %312 = vmatmul.mubr.f32.gmra.mrb[0].mxu0 %v243
    %v313 = vpop.f32.mrb[0].mxu0
    %v314 = vadd.f32 0.0, %v313
    %v315 = vpop.f32.mrb[0].mxu0
    %316 = vdwg.mxu0
    %v317 = vmul.f32 %v314, 0.35355338
    %v318 = vsel %vm242, %v317, -inf
    %319 = vmax.xlane.f32.xlu0 %v318
    %v320 = vpop.xlane.xlu0 %319
    %v321 = vsub.f32 %v317, %v320
    %v322 = vmul.f32 %v321, 1.442695
    %v323 = vpow.pop %v322
    %v324 = vsel %vm242, %v323, 0.0
    %325 = vadd.xlane.f32.xlu0 %v324
    %v326 = vpop.xlane.xlu0 %325
    %327 = vrot.lane.b32.xlu0 %v239, 64
    %v328 = vpop.permute.xlu0 %327
    %v331 = vsel %vm242, %v323, 0
    %333 = vmatprep.subr.mxu0 0.0
    %334 = vmatpush1.msra.mxu0 %v328
    %335 = vmatprep.subr.mxu0 0.0
    %336 = vmatpush1.msra.mxu0 0.0
    %337 = vmatprep.subr.mxu0 0.0
    %338 = vmatpush1.msra.mxu0 0.0
    %339 = vmatprep.subr.mxu0 0.0
    %340 = vmatpush1.msra.mxu0 0.0
    %341 = vmatprep.subr.mxu0 0.0
    %342 = vmatpush1.msra.mxu0 0.0
    %343 = vmatprep.subr.mxu0 0.0
    %344 = vmatpush1.msra.mxu0 0.0
    %345 = vmatprep.subr.mxu0 0.0
    %346 = vmatpush1.msra.mxu0 0.0
    %347 = vmatprep.subr.mxu0 0.0
    %348 = vmatpush1.msra.mxu0 0.0
    %349 = vmatprep.subr.mxu0 0.0
    %350 = vmatpush1.msra.mxu0 0.0
    %351 = vmatprep.subr.mxu0 0.0
    %352 = vmatpush1.msra.mxu0 0.0
    %353 = vmatprep.subr.mxu0 0.0
    %354 = vmatpush1.msra.mxu0 0.0
    %355 = vmatprep.subr.mxu0 0.0
    %356 = vmatpush1.msra.mxu0 0.0
    %357 = vmatprep.subr.mxu0 0.0
    %358 = vmatpush1.msra.mxu0 0.0
    %359 = vmatprep.subr.mxu0 0.0
    %360 = vmatpush1.msra.mxu0 0.0
    %361 = vmatprep.subr.mxu0 0.0
    %362 = vmatpush1.msra.mxu0 0.0
    %363 = vmatprep.subr.mxu0 0.0
    %364 = vmatpush1.msra.mxu0 0.0
    %365 = vmatprep.subr.mxu0 0.0
    %366 = vmatpush1.msra.mxu0 0.0
    %367 = vmatprep.subr.mxu0 0.0
    %368 = vmatpush1.msra.mxu0 0.0
    %369 = vmatprep.subr.mxu0 0.0
    %370 = vmatpush1.msra.mxu0 0.0
    %371 = vmatprep.subr.mxu0 0.0
    %372 = vmatpush1.msra.mxu0 0.0
    %373 = vmatprep.subr.mxu0 0.0
    %374 = vmatpush1.msra.mxu0 0.0
    %375 = vmatprep.subr.mxu0 0.0
    %376 = vmatpush1.msra.mxu0 0.0
    %377 = vmatprep.subr.mxu0 0.0
    %378 = vmatpush1.msra.mxu0 0.0
    %379 = vmatprep.subr.mxu0 0.0
    %380 = vmatpush1.msra.mxu0 0.0
    %381 = vmatprep.subr.mxu0 0.0
    %382 = vmatpush1.msra.mxu0 0.0
    %383 = vmatprep.subr.mxu0 0.0
    %384 = vmatpush1.msra.mxu0 0.0
    %385 = vmatprep.subr.mxu0 0.0
    %386 = vmatpush1.msra.mxu0 0.0
    %387 = vmatprep.subr.mxu0 0.0
    %388 = vmatpush1.msra.mxu0 0.0
    %389 = vmatprep.subr.mxu0 0.0
    %390 = vmatpush1.msra.mxu0 0.0
    %391 = vmatprep.subr.mxu0 0.0
    %392 = vmatpush1.msra.mxu0 0.0
    %393 = vmatprep.subr.mxu0 0.0
    %394 = vmatpush1.msra.mxu0 0.0
    %395 = vmatprep.subr.mxu0 0.0
    %396 = vmatpush1.msra.mxu0 0.0
    %397 = vmatprep.mubr.f32.mxu0 0.0
    %398 = vmatmul.mubr.f32.gmra.mrb[0].mxu0 %v331
    %v399 = vpop.f32.mrb[0].mxu0
    %v400 = vadd.f32 0.0, %v399
    %v401 = vpop.f32.mrb[0].mxu0
    %402 = vdwg.mxu0
    %v403 = vrcp.pop %v326
    %v404 = vmul.f32 %v400, %v403
    %405 = vrot.lane.b32.xlu0 %v239, 120
    %v406 = vpop.permute.xlu0 %405
    %407 = vrot.lane.b32.xlu0 %v239, 88
    %v408 = vpop.permute.xlu0 %407
    %v409 = vsel %vm242, %v406, 0
    %v411 = vsel %vm242, %v408, 0
    %413 = vmatprep.subr.mxu0 0.0
    %414 = vmatpush1.xpose.msra.mxu0 %v411
    %415 = vmatprep.subr.mxu0 0.0
    %416 = vmatpush1.xpose.msra.mxu0 0.0
    %417 = vmatprep.subr.mxu0 0.0
    %418 = vmatpush1.xpose.msra.mxu0 0.0
    %419 = vmatprep.subr.mxu0 0.0
    %420 = vmatpush1.xpose.msra.mxu0 0.0
    %421 = vmatprep.subr.mxu0 0.0
    %422 = vmatpush1.xpose.msra.mxu0 0.0
    %423 = vmatprep.subr.mxu0 0.0
    %424 = vmatpush1.xpose.msra.mxu0 0.0
    %425 = vmatprep.subr.mxu0 0.0
    %426 = vmatpush1.xpose.msra.mxu0 0.0
    %427 = vmatprep.subr.mxu0 0.0
    %428 = vmatpush1.xpose.msra.mxu0 0.0
    %429 = vmatprep.subr.mxu0 0.0
    %430 = vmatpush1.xpose.msra.mxu0 0.0
    %431 = vmatprep.subr.mxu0 0.0
    %432 = vmatpush1.xpose.msra.mxu0 0.0
    %433 = vmatprep.subr.mxu0 0.0
    %434 = vmatpush1.xpose.msra.mxu0 0.0
    %435 = vmatprep.subr.mxu0 0.0
    %436 = vmatpush1.xpose.msra.mxu0 0.0
    %437 = vmatprep.subr.mxu0 0.0
    %438 = vmatpush1.xpose.msra.mxu0 0.0
    %439 = vmatprep.subr.mxu0 0.0
    %440 = vmatpush1.xpose.msra.mxu0 0.0
    %441 = vmatprep.subr.mxu0 0.0
    %442 = vmatpush1.xpose.msra.mxu0 0.0
    %443 = vmatprep.subr.mxu0 0.0
    %444 = vmatpush1.xpose.msra.mxu0 0.0
    %445 = vmatprep.subr.mxu0 0.0
    %446 = vmatpush1.xpose.msra.mxu0 0.0
    %447 = vmatprep.subr.mxu0 0.0
    %448 = vmatpush1.xpose.msra.mxu0 0.0
    %449 = vmatprep.subr.mxu0 0.0
    %450 = vmatpush1.xpose.msra.mxu0 0.0
    %451 = vmatprep.subr.mxu0 0.0
    %452 = vmatpush1.xpose.msra.mxu0 0.0
    %453 = vmatprep.subr.mxu0 0.0
    %454 = vmatpush1.xpose.msra.mxu0 0.0
    %455 = vmatprep.subr.mxu0 0.0
    %456 = vmatpush1.xpose.msra.mxu0 0.0
    %457 = vmatprep.subr.mxu0 0.0
    %458 = vmatpush1.xpose.msra.mxu0 0.0
    %459 = vmatprep.subr.mxu0 0.0
    %460 = vmatpush1.xpose.msra.mxu0 0.0
    %461 = vmatprep.subr.mxu0 0.0
    %462 = vmatpush1.xpose.msra.mxu0 0.0
    %463 = vmatprep.subr.mxu0 0.0
    %464 = vmatpush1.xpose.msra.mxu0 0.0
    %465 = vmatprep.subr.mxu0 0.0
    %466 = vmatpush1.xpose.msra.mxu0 0.0
    %467 = vmatprep.subr.mxu0 0.0
    %468 = vmatpush1.xpose.msra.mxu0 0.0
    %469 = vmatprep.subr.mxu0 0.0
    %470 = vmatpush1.xpose.msra.mxu0 0.0
    %471 = vmatprep.subr.mxu0 0.0
    %472 = vmatpush1.xpose.msra.mxu0 0.0
    %473 = vmatprep.subr.mxu0 0.0
    %474 = vmatpush1.xpose.msra.mxu0 0.0
    %475 = vmatprep.subr.mxu0 0.0
    %476 = vmatpush1.xpose.msra.mxu0 0.0
    %477 = vmatprep.mubr.f32.mxu0 0.0
    %478 = vmatmul.mubr.f32.gmra.mrb[0].mxu0 %v409
    %v479 = vpop.f32.mrb[0].mxu0
    %v480 = vadd.f32 0.0, %v479
    %v481 = vpop.f32.mrb[0].mxu0
    %482 = vdwg.mxu0
    %v483 = vmul.f32 %v480, 0.35355338
    %v484 = vsel %vm242, %v483, -inf
    %485 = vmax.xlane.f32.xlu0 %v484
    %v486 = vpop.xlane.xlu0 %485
    %v487 = vsub.f32 %v483, %v486
    %v488 = vmul.f32 %v487, 1.442695
    %v489 = vpow.pop %v488
    %v490 = vsel %vm242, %v489, 0.0
    %491 = vadd.xlane.f32.xlu0 %v490
    %v492 = vpop.xlane.xlu0 %491
    %493 = vrot.lane.b32.xlu0 %v239, 56
    %v494 = vpop.permute.xlu0 %493
    %v497 = vsel %vm242, %v489, 0
    %499 = vmatprep.subr.mxu0 0.0
    %500 = vmatpush1.msra.mxu0 %v494
    %501 = vmatprep.subr.mxu0 0.0
    %502 = vmatpush1.msra.mxu0 0.0
    %503 = vmatprep.subr.mxu0 0.0
    %504 = vmatpush1.msra.mxu0 0.0
    %505 = vmatprep.subr.mxu0 0.0
    %506 = vmatpush1.msra.mxu0 0.0
    %507 = vmatprep.subr.mxu0 0.0
    %508 = vmatpush1.msra.mxu0 0.0
    %509 = vmatprep.subr.mxu0 0.0
    %510 = vmatpush1.msra.mxu0 0.0
    %511 = vmatprep.subr.mxu0 0.0
    %512 = vmatpush1.msra.mxu0 0.0
    %513 = vmatprep.subr.mxu0 0.0
    %514 = vmatpush1.msra.mxu0 0.0
    %515 = vmatprep.subr.mxu0 0.0
    %516 = vmatpush1.msra.mxu0 0.0
    %517 = vmatprep.subr.mxu0 0.0
    %518 = vmatpush1.msra.mxu0 0.0
    %519 = vmatprep.subr.mxu0 0.0
    %520 = vmatpush1.msra.mxu0 0.0
    %521 = vmatprep.subr.mxu0 0.0
    %522 = vmatpush1.msra.mxu0 0.0
    %523 = vmatprep.subr.mxu0 0.0
    %524 = vmatpush1.msra.mxu0 0.0
    %525 = vmatprep.subr.mxu0 0.0
    %526 = vmatpush1.msra.mxu0 0.0
    %527 = vmatprep.subr.mxu0 0.0
    %528 = vmatpush1.msra.mxu0 0.0
    %529 = vmatprep.subr.mxu0 0.0
    %530 = vmatpush1.msra.mxu0 0.0
    %531 = vmatprep.subr.mxu0 0.0
    %532 = vmatpush1.msra.mxu0 0.0
    %533 = vmatprep.subr.mxu0 0.0
    %534 = vmatpush1.msra.mxu0 0.0
    %535 = vmatprep.subr.mxu0 0.0
    %536 = vmatpush1.msra.mxu0 0.0
    %537 = vmatprep.subr.mxu0 0.0
    %538 = vmatpush1.msra.mxu0 0.0
    %539 = vmatprep.subr.mxu0 0.0
    %540 = vmatpush1.msra.mxu0 0.0
    %541 = vmatprep.subr.mxu0 0.0
    %542 = vmatpush1.msra.mxu0 0.0
    %543 = vmatprep.subr.mxu0 0.0
    %544 = vmatpush1.msra.mxu0 0.0
    %545 = vmatprep.subr.mxu0 0.0
    %546 = vmatpush1.msra.mxu0 0.0
    %547 = vmatprep.subr.mxu0 0.0
    %548 = vmatpush1.msra.mxu0 0.0
    %549 = vmatprep.subr.mxu0 0.0
    %550 = vmatpush1.msra.mxu0 0.0
    %551 = vmatprep.subr.mxu0 0.0
    %552 = vmatpush1.msra.mxu0 0.0
    %553 = vmatprep.subr.mxu0 0.0
    %554 = vmatpush1.msra.mxu0 0.0
    %555 = vmatprep.subr.mxu0 0.0
    %556 = vmatpush1.msra.mxu0 0.0
    %557 = vmatprep.subr.mxu0 0.0
    %558 = vmatpush1.msra.mxu0 0.0
    %559 = vmatprep.subr.mxu0 0.0
    %560 = vmatpush1.msra.mxu0 0.0
    %561 = vmatprep.subr.mxu0 0.0
    %562 = vmatpush1.msra.mxu0 0.0
    %563 = vmatprep.mubr.f32.mxu0 0.0
    %564 = vmatmul.mubr.f32.gmra.mrb[0].mxu0 %v497
    %v565 = vpop.f32.mrb[0].mxu0
    %v566 = vadd.f32 0.0, %v565
    %v567 = vpop.f32.mrb[0].mxu0
    %568 = vdwg.mxu0
    %v569 = vrcp.pop %v492
    %v570 = vmul.f32 %v566, %v569
    %572 = vrot.lane.b32.xlu0 %v191, 32
    %v573 = vpop.permute.xlu0 %572
    %v576 = vsel %vm242, %v570, 0
    %578 = vmatprep.subr.mxu0 0.0
    %579 = vmatpush1.msra.mxu0 %v573
    %580 = vmatprep.subr.mxu0 0.0
    %581 = vmatpush1.msra.mxu0 0.0
    %582 = vmatprep.subr.mxu0 0.0
    %583 = vmatpush1.msra.mxu0 0.0
    %584 = vmatprep.subr.mxu0 0.0
    %585 = vmatpush1.msra.mxu0 0.0
    %586 = vmatprep.subr.mxu0 0.0
    %587 = vmatpush1.msra.mxu0 0.0
    %588 = vmatprep.subr.mxu0 0.0
    %589 = vmatpush1.msra.mxu0 0.0
    %590 = vmatprep.subr.mxu0 0.0
    %591 = vmatpush1.msra.mxu0 0.0
    %592 = vmatprep.subr.mxu0 0.0
    %593 = vmatpush1.msra.mxu0 0.0
    %594 = vmatprep.subr.mxu0 0.0
    %595 = vmatpush1.msra.mxu0 0.0
    %596 = vmatprep.subr.mxu0 0.0
    %597 = vmatpush1.msra.mxu0 0.0
    %598 = vmatprep.subr.mxu0 0.0
    %599 = vmatpush1.msra.mxu0 0.0
    %600 = vmatprep.subr.mxu0 0.0
    %601 = vmatpush1.msra.mxu0 0.0
    %602 = vmatprep.subr.mxu0 0.0
    %603 = vmatpush1.msra.mxu0 0.0
    %604 = vmatprep.subr.mxu0 0.0
    %605 = vmatpush1.msra.mxu0 0.0
    %606 = vmatprep.subr.mxu0 0.0
    %607 = vmatpush1.msra.mxu0 0.0
    %608 = vmatprep.subr.mxu0 0.0
    %609 = vmatpush1.msra.mxu0 0.0
    %610 = vmatprep.subr.mxu0 0.0
    %611 = vmatpush1.msra.mxu0 0.0
    %612 = vmatprep.subr.mxu0 0.0
    %613 = vmatpush1.msra.mxu0 0.0
    %614 = vmatprep.subr.mxu0 0.0
    %615 = vmatpush1.msra.mxu0 0.0
    %616 = vmatprep.subr.mxu0 0.0
    %617 = vmatpush1.msra.mxu0 0.0
    %618 = vmatprep.subr.mxu0 0.0
    %619 = vmatpush1.msra.mxu0 0.0
    %620 = vmatprep.subr.mxu0 0.0
    %621 = vmatpush1.msra.mxu0 0.0
    %622 = vmatprep.subr.mxu0 0.0
    %623 = vmatpush1.msra.mxu0 0.0
    %624 = vmatprep.subr.mxu0 0.0
    %625 = vmatpush1.msra.mxu0 0.0
    %626 = vmatprep.subr.mxu0 0.0
    %627 = vmatpush1.msra.mxu0 0.0
    %628 = vmatprep.subr.mxu0 0.0
    %629 = vmatpush1.msra.mxu0 0.0
    %630 = vmatprep.subr.mxu0 0.0
    %631 = vmatpush1.msra.mxu0 0.0
    %632 = vmatprep.subr.mxu0 0.0
    %633 = vmatpush1.msra.mxu0 0.0
    %634 = vmatprep.subr.mxu0 0.0
    %635 = vmatpush1.msra.mxu0 0.0
    %636 = vmatprep.subr.mxu0 0.0
    %637 = vmatpush1.msra.mxu0 0.0
    %638 = vmatprep.subr.mxu0 0.0
    %639 = vmatpush1.msra.mxu0 0.0
    %640 = vmatprep.subr.mxu0 0.0
    %641 = vmatpush1.msra.mxu0 0.0
    %642 = vmatprep.mubr.f32.mxu0 0.0
    %643 = vmatmul.mubr.f32.gmra.mrb[0].mxu0 %v576
    %v644 = vpop.f32.mrb[0].mxu0
    %v645 = vadd.f32 0.0, %v644
    %v646 = vpop.f32.mrb[0].mxu0
    %647 = vdwg.mxu0
    %649 = vrot.lane.b32.xlu0 %v190, 32
    %v650 = vpop.permute.xlu0 %649
    %v653 = vsel %vm242, %v404, 0
    %655 = vmatprep.subr.mxu0 0.0
    %656 = vmatpush1.msra.mxu0 %v650
    %657 = vmatprep.subr.mxu0 0.0
    %658 = vmatpush1.msra.mxu0 0.0
    %659 = vmatprep.subr.mxu0 0.0
    %660 = vmatpush1.msra.mxu0 0.0
    %661 = vmatprep.subr.mxu0 0.0
    %662 = vmatpush1.msra.mxu0 0.0
    %663 = vmatprep.subr.mxu0 0.0
    %664 = vmatpush1.msra.mxu0 0.0
    %665 = vmatprep.subr.mxu0 0.0
    %666 = vmatpush1.msra.mxu0 0.0
    %667 = vmatprep.subr.mxu0 0.0
    %668 = vmatpush1.msra.mxu0 0.0
    %669 = vmatprep.subr.mxu0 0.0
    %670 = vmatpush1.msra.mxu0 0.0
    %671 = vmatprep.subr.mxu0 0.0
    %672 = vmatpush1.msra.mxu0 0.0
    %673 = vmatprep.subr.mxu0 0.0
    %674 = vmatpush1.msra.mxu0 0.0
    %675 = vmatprep.subr.mxu0 0.0
    %676 = vmatpush1.msra.mxu0 0.0
    %677 = vmatprep.subr.mxu0 0.0
    %678 = vmatpush1.msra.mxu0 0.0
    %679 = vmatprep.subr.mxu0 0.0
    %680 = vmatpush1.msra.mxu0 0.0
    %681 = vmatprep.subr.mxu0 0.0
    %682 = vmatpush1.msra.mxu0 0.0
    %683 = vmatprep.subr.mxu0 0.0
    %684 = vmatpush1.msra.mxu0 0.0
    %685 = vmatprep.subr.mxu0 0.0
    %686 = vmatpush1.msra.mxu0 0.0
    %687 = vmatprep.subr.mxu0 0.0
    %688 = vmatpush1.msra.mxu0 0.0
    %689 = vmatprep.subr.mxu0 0.0
    %690 = vmatpush1.msra.mxu0 0.0
    %691 = vmatprep.subr.mxu0 0.0
    %692 = vmatpush1.msra.mxu0 0.0
    %693 = vmatprep.subr.mxu0 0.0
    %694 = vmatpush1.msra.mxu0 0.0
    %695 = vmatprep.subr.mxu0 0.0
    %696 = vmatpush1.msra.mxu0 0.0
    %697 = vmatprep.subr.mxu0 0.0
    %698 = vmatpush1.msra.mxu0 0.0
    %699 = vmatprep.subr.mxu0 0.0
    %700 = vmatpush1.msra.mxu0 0.0
    %701 = vmatprep.subr.mxu0 0.0
    %702 = vmatpush1.msra.mxu0 0.0
    %703 = vmatprep.subr.mxu0 0.0
    %704 = vmatpush1.msra.mxu0 0.0
    %705 = vmatprep.subr.mxu0 0.0
    %706 = vmatpush1.msra.mxu0 0.0
    %707 = vmatprep.subr.mxu0 0.0
    %708 = vmatpush1.msra.mxu0 0.0
    %709 = vmatprep.subr.mxu0 0.0
    %710 = vmatpush1.msra.mxu0 0.0
    %711 = vmatprep.subr.mxu0 0.0
    %712 = vmatpush1.msra.mxu0 0.0
    %713 = vmatprep.subr.mxu0 0.0
    %714 = vmatpush1.msra.mxu0 0.0
    %715 = vmatprep.subr.mxu0 0.0
    %716 = vmatpush1.msra.mxu0 0.0
    %717 = vmatprep.subr.mxu0 0.0
    %718 = vmatpush1.msra.mxu0 0.0
    %719 = vmatprep.mubr.f32.mxu0 0.0
    %720 = vmatmul.mubr.f32.gmra.mrb[0].mxu0 %v653
    %v721 = vpop.f32.mrb[0].mxu0
    %v722 = vadd.f32 %v645, %v721
    %v723 = vpop.f32.mrb[0].mxu0
    %724 = vdwg.mxu0
    %725 = vrot.lane.b32.xlu0 %v239, 112
    %v726 = vpop.permute.xlu0 %725
    %727 = vrot.lane.b32.xlu0 %v239, 80
    %v728 = vpop.permute.xlu0 %727
    %v729 = vsel %vm242, %v726, 0
    %v731 = vsel %vm242, %v728, 0
    %733 = vmatprep.subr.mxu0 0.0
    %734 = vmatpush1.xpose.msra.mxu0 %v731
    %735 = vmatprep.subr.mxu0 0.0
    %736 = vmatpush1.xpose.msra.mxu0 0.0
    %737 = vmatprep.subr.mxu0 0.0
    %738 = vmatpush1.xpose.msra.mxu0 0.0
    %739 = vmatprep.subr.mxu0 0.0
    %740 = vmatpush1.xpose.msra.mxu0 0.0
    %741 = vmatprep.subr.mxu0 0.0
    %742 = vmatpush1.xpose.msra.mxu0 0.0
    %743 = vmatprep.subr.mxu0 0.0
    %744 = vmatpush1.xpose.msra.mxu0 0.0
    %745 = vmatprep.subr.mxu0 0.0
    %746 = vmatpush1.xpose.msra.mxu0 0.0
    %747 = vmatprep.subr.mxu0 0.0
    %748 = vmatpush1.xpose.msra.mxu0 0.0
    %749 = vmatprep.subr.mxu0 0.0
    %750 = vmatpush1.xpose.msra.mxu0 0.0
    %751 = vmatprep.subr.mxu0 0.0
    %752 = vmatpush1.xpose.msra.mxu0 0.0
    %753 = vmatprep.subr.mxu0 0.0
    %754 = vmatpush1.xpose.msra.mxu0 0.0
    %755 = vmatprep.subr.mxu0 0.0
    %756 = vmatpush1.xpose.msra.mxu0 0.0
    %757 = vmatprep.subr.mxu0 0.0
    %758 = vmatpush1.xpose.msra.mxu0 0.0
    %759 = vmatprep.subr.mxu0 0.0
    %760 = vmatpush1.xpose.msra.mxu0 0.0
    %761 = vmatprep.subr.mxu0 0.0
    %762 = vmatpush1.xpose.msra.mxu0 0.0
    %763 = vmatprep.subr.mxu0 0.0
    %764 = vmatpush1.xpose.msra.mxu0 0.0
    %765 = vmatprep.subr.mxu0 0.0
    %766 = vmatpush1.xpose.msra.mxu0 0.0
    %767 = vmatprep.subr.mxu0 0.0
    %768 = vmatpush1.xpose.msra.mxu0 0.0
    %769 = vmatprep.subr.mxu0 0.0
    %770 = vmatpush1.xpose.msra.mxu0 0.0
    %771 = vmatprep.subr.mxu0 0.0
    %772 = vmatpush1.xpose.msra.mxu0 0.0
    %773 = vmatprep.subr.mxu0 0.0
    %774 = vmatpush1.xpose.msra.mxu0 0.0
    %775 = vmatprep.subr.mxu0 0.0
    %776 = vmatpush1.xpose.msra.mxu0 0.0
    %777 = vmatprep.subr.mxu0 0.0
    %778 = vmatpush1.xpose.msra.mxu0 0.0
    %779 = vmatprep.subr.mxu0 0.0
    %780 = vmatpush1.xpose.msra.mxu0 0.0
    %781 = vmatprep.subr.mxu0 0.0
    %782 = vmatpush1.xpose.msra.mxu0 0.0
    %783 = vmatprep.subr.mxu0 0.0
    %784 = vmatpush1.xpose.msra.mxu0 0.0
    %785 = vmatprep.subr.mxu0 0.0
    %786 = vmatpush1.xpose.msra.mxu0 0.0
    %787 = vmatprep.subr.mxu0 0.0
    %788 = vmatpush1.xpose.msra.mxu0 0.0
    %789 = vmatprep.subr.mxu0 0.0
    %790 = vmatpush1.xpose.msra.mxu0 0.0
    %791 = vmatprep.subr.mxu0 0.0
    %792 = vmatpush1.xpose.msra.mxu0 0.0
    %793 = vmatprep.subr.mxu0 0.0
    %794 = vmatpush1.xpose.msra.mxu0 0.0
    %795 = vmatprep.subr.mxu0 0.0
    %796 = vmatpush1.xpose.msra.mxu0 0.0
    %797 = vmatprep.mubr.f32.mxu0 0.0
    %798 = vmatmul.mubr.f32.gmra.mrb[0].mxu0 %v729
    %v799 = vpop.f32.mrb[0].mxu0
    %v800 = vadd.f32 0.0, %v799
    %v801 = vpop.f32.mrb[0].mxu0
    %802 = vdwg.mxu0
    %v803 = vmul.f32 %v800, 0.35355338
    %v804 = vsel %vm242, %v803, -inf
    %805 = vmax.xlane.f32.xlu0 %v804
    %v806 = vpop.xlane.xlu0 %805
    %v807 = vsub.f32 %v803, %v806
    %v808 = vmul.f32 %v807, 1.442695
    %v809 = vpow.pop %v808
    %v810 = vsel %vm242, %v809, 0.0
    %811 = vadd.xlane.f32.xlu0 %v810
    %v812 = vpop.xlane.xlu0 %811
    %813 = vrot.lane.b32.xlu0 %v239, 48
    %v814 = vpop.permute.xlu0 %813
    %v817 = vsel %vm242, %v809, 0
    %819 = vmatprep.subr.mxu0 0.0
    %820 = vmatpush1.msra.mxu0 %v814
    %821 = vmatprep.subr.mxu0 0.0
    %822 = vmatpush1.msra.mxu0 0.0
    %823 = vmatprep.subr.mxu0 0.0
    %824 = vmatpush1.msra.mxu0 0.0
    %825 = vmatprep.subr.mxu0 0.0
    %826 = vmatpush1.msra.mxu0 0.0
    %827 = vmatprep.subr.mxu0 0.0
    %828 = vmatpush1.msra.mxu0 0.0
    %829 = vmatprep.subr.mxu0 0.0
    %830 = vmatpush1.msra.mxu0 0.0
    %831 = vmatprep.subr.mxu0 0.0
    %832 = vmatpush1.msra.mxu0 0.0
    %833 = vmatprep.subr.mxu0 0.0
    %834 = vmatpush1.msra.mxu0 0.0
    %835 = vmatprep.subr.mxu0 0.0
    %836 = vmatpush1.msra.mxu0 0.0
    %837 = vmatprep.subr.mxu0 0.0
    %838 = vmatpush1.msra.mxu0 0.0
    %839 = vmatprep.subr.mxu0 0.0
    %840 = vmatpush1.msra.mxu0 0.0
    %841 = vmatprep.subr.mxu0 0.0
    %842 = vmatpush1.msra.mxu0 0.0
    %843 = vmatprep.subr.mxu0 0.0
    %844 = vmatpush1.msra.mxu0 0.0
    %845 = vmatprep.subr.mxu0 0.0
    %846 = vmatpush1.msra.mxu0 0.0
    %847 = vmatprep.subr.mxu0 0.0
    %848 = vmatpush1.msra.mxu0 0.0
    %849 = vmatprep.subr.mxu0 0.0
    %850 = vmatpush1.msra.mxu0 0.0
    %851 = vmatprep.subr.mxu0 0.0
    %852 = vmatpush1.msra.mxu0 0.0
    %853 = vmatprep.subr.mxu0 0.0
    %854 = vmatpush1.msra.mxu0 0.0
    %855 = vmatprep.subr.mxu0 0.0
    %856 = vmatpush1.msra.mxu0 0.0
    %857 = vmatprep.subr.mxu0 0.0
    %858 = vmatpush1.msra.mxu0 0.0
    %859 = vmatprep.subr.mxu0 0.0
    %860 = vmatpush1.msra.mxu0 0.0
    %861 = vmatprep.subr.mxu0 0.0
    %862 = vmatpush1.msra.mxu0 0.0
    %863 = vmatprep.subr.mxu0 0.0
    %864 = vmatpush1.msra.mxu0 0.0
    %865 = vmatprep.subr.mxu0 0.0
    %866 = vmatpush1.msra.mxu0 0.0
    %867 = vmatprep.subr.mxu0 0.0
    %868 = vmatpush1.msra.mxu0 0.0
    %869 = vmatprep.subr.mxu0 0.0
    %870 = vmatpush1.msra.mxu0 0.0
    %871 = vmatprep.subr.mxu0 0.0
    %872 = vmatpush1.msra.mxu0 0.0
    %873 = vmatprep.subr.mxu0 0.0
    %874 = vmatpush1.msra.mxu0 0.0
    %875 = vmatprep.subr.mxu0 0.0
    %876 = vmatpush1.msra.mxu0 0.0
    %877 = vmatprep.subr.mxu0 0.0
    %878 = vmatpush1.msra.mxu0 0.0
    %879 = vmatprep.subr.mxu0 0.0
    %880 = vmatpush1.msra.mxu0 0.0
    %881 = vmatprep.subr.mxu0 0.0
    %882 = vmatpush1.msra.mxu0 0.0
    %883 = vmatprep.mubr.f32.mxu0 0.0
    %884 = vmatmul.mubr.f32.gmra.mrb[0].mxu0 %v817
    %v885 = vpop.f32.mrb[0].mxu0
    %v886 = vadd.f32 0.0, %v885
    %v887 = vpop.f32.mrb[0].mxu0
    %888 = vdwg.mxu0
    %v889 = vrcp.pop %v812
    %v890 = vmul.f32 %v886, %v889
    %892 = vrot.lane.b32.xlu0 %v192, 32
    %v893 = vpop.permute.xlu0 %892
    %v896 = vsel %vm242, %v890, 0
    %898 = vmatprep.subr.mxu0 0.0
    %899 = vmatpush1.msra.mxu0 %v893
    %900 = vmatprep.subr.mxu0 0.0
    %901 = vmatpush1.msra.mxu0 0.0
    %902 = vmatprep.subr.mxu0 0.0
    %903 = vmatpush1.msra.mxu0 0.0
    %904 = vmatprep.subr.mxu0 0.0
    %905 = vmatpush1.msra.mxu0 0.0
    %906 = vmatprep.subr.mxu0 0.0
    %907 = vmatpush1.msra.mxu0 0.0
    %908 = vmatprep.subr.mxu0 0.0
    %909 = vmatpush1.msra.mxu0 0.0
    %910 = vmatprep.subr.mxu0 0.0
    %911 = vmatpush1.msra.mxu0 0.0
    %912 = vmatprep.subr.mxu0 0.0
    %913 = vmatpush1.msra.mxu0 0.0
    %914 = vmatprep.subr.mxu0 0.0
    %915 = vmatpush1.msra.mxu0 0.0
    %916 = vmatprep.subr.mxu0 0.0
    %917 = vmatpush1.msra.mxu0 0.0
    %918 = vmatprep.subr.mxu0 0.0
    %919 = vmatpush1.msra.mxu0 0.0
    %920 = vmatprep.subr.mxu0 0.0
    %921 = vmatpush1.msra.mxu0 0.0
    %922 = vmatprep.subr.mxu0 0.0
    %923 = vmatpush1.msra.mxu0 0.0
    %924 = vmatprep.subr.mxu0 0.0
    %925 = vmatpush1.msra.mxu0 0.0
    %926 = vmatprep.subr.mxu0 0.0
    %927 = vmatpush1.msra.mxu0 0.0
    %928 = vmatprep.subr.mxu0 0.0
    %929 = vmatpush1.msra.mxu0 0.0
    %930 = vmatprep.subr.mxu0 0.0
    %931 = vmatpush1.msra.mxu0 0.0
    %932 = vmatprep.subr.mxu0 0.0
    %933 = vmatpush1.msra.mxu0 0.0
    %934 = vmatprep.subr.mxu0 0.0
    %935 = vmatpush1.msra.mxu0 0.0
    %936 = vmatprep.subr.mxu0 0.0
    %937 = vmatpush1.msra.mxu0 0.0
    %938 = vmatprep.subr.mxu0 0.0
    %939 = vmatpush1.msra.mxu0 0.0
    %940 = vmatprep.subr.mxu0 0.0
    %941 = vmatpush1.msra.mxu0 0.0
    %942 = vmatprep.subr.mxu0 0.0
    %943 = vmatpush1.msra.mxu0 0.0
    %944 = vmatprep.subr.mxu0 0.0
    %945 = vmatpush1.msra.mxu0 0.0
    %946 = vmatprep.subr.mxu0 0.0
    %947 = vmatpush1.msra.mxu0 0.0
    %948 = vmatprep.subr.mxu0 0.0
    %949 = vmatpush1.msra.mxu0 0.0
    %950 = vmatprep.subr.mxu0 0.0
    %951 = vmatpush1.msra.mxu0 0.0
    %952 = vmatprep.subr.mxu0 0.0
    %953 = vmatpush1.msra.mxu0 0.0
    %954 = vmatprep.subr.mxu0 0.0
    %955 = vmatpush1.msra.mxu0 0.0
    %956 = vmatprep.subr.mxu0 0.0
    %957 = vmatpush1.msra.mxu0 0.0
    %958 = vmatprep.subr.mxu0 0.0
    %959 = vmatpush1.msra.mxu0 0.0
    %960 = vmatprep.subr.mxu0 0.0
    %961 = vmatpush1.msra.mxu0 0.0
    %962 = vmatprep.mubr.f32.mxu0 0.0
    %963 = vmatmul.mubr.f32.gmra.mrb[0].mxu0 %v896
    %v964 = vpop.f32.mrb[0].mxu0
    %v965 = vadd.f32 0.0, %v964
    %v966 = vpop.f32.mrb[0].mxu0
    %967 = vdwg.mxu0
    %v968 = vadd.f32 %v722, %v965
    %969 = vrot.lane.b32.xlu0 %v239, 104
    %v970 = vpop.permute.xlu0 %969
    %971 = vrot.lane.b32.xlu0 %v239, 72
    %v972 = vpop.permute.xlu0 %971
    %v973 = vsel %vm242, %v970, 0
    %v975 = vsel %vm242, %v972, 0
    %977 = vmatprep.subr.mxu0 0.0
    %978 = vmatpush1.xpose.msra.mxu0 %v975
    %979 = vmatprep.subr.mxu0 0.0
    %980 = vmatpush1.xpose.msra.mxu0 0.0
    %981 = vmatprep.subr.mxu0 0.0
    %982 = vmatpush1.xpose.msra.mxu0 0.0
    %983 = vmatprep.subr.mxu0 0.0
    %984 = vmatpush1.xpose.msra.mxu0 0.0
    %985 = vmatprep.subr.mxu0 0.0
    %986 = vmatpush1.xpose.msra.mxu0 0.0
    %987 = vmatprep.subr.mxu0 0.0
    %988 = vmatpush1.xpose.msra.mxu0 0.0
    %989 = vmatprep.subr.mxu0 0.0
    %990 = vmatpush1.xpose.msra.mxu0 0.0
    %991 = vmatprep.subr.mxu0 0.0
    %992 = vmatpush1.xpose.msra.mxu0 0.0
    %993 = vmatprep.subr.mxu0 0.0
    %994 = vmatpush1.xpose.msra.mxu0 0.0
    %995 = vmatprep.subr.mxu0 0.0
    %996 = vmatpush1.xpose.msra.mxu0 0.0
    %997 = vmatprep.subr.mxu0 0.0
    %998 = vmatpush1.xpose.msra.mxu0 0.0
    %999 = vmatprep.subr.mxu0 0.0
    %1000 = vmatpush1.xpose.msra.mxu0 0.0
    %1001 = vmatprep.subr.mxu0 0.0
    %1002 = vmatpush1.xpose.msra.mxu0 0.0
    %1003 = vmatprep.subr.mxu0 0.0
    %1004 = vmatpush1.xpose.msra.mxu0 0.0
    %1005 = vmatprep.subr.mxu0 0.0
    %1006 = vmatpush1.xpose.msra.mxu0 0.0
    %1007 = vmatprep.subr.mxu0 0.0
    %1008 = vmatpush1.xpose.msra.mxu0 0.0
    %1009 = vmatprep.subr.mxu0 0.0
    %1010 = vmatpush1.xpose.msra.mxu0 0.0
    %1011 = vmatprep.subr.mxu0 0.0
    %1012 = vmatpush1.xpose.msra.mxu0 0.0
    %1013 = vmatprep.subr.mxu0 0.0
    %1014 = vmatpush1.xpose.msra.mxu0 0.0
    %1015 = vmatprep.subr.mxu0 0.0
    %1016 = vmatpush1.xpose.msra.mxu0 0.0
    %1017 = vmatprep.subr.mxu0 0.0
    %1018 = vmatpush1.xpose.msra.mxu0 0.0
    %1019 = vmatprep.subr.mxu0 0.0
    %1020 = vmatpush1.xpose.msra.mxu0 0.0
    %1021 = vmatprep.subr.mxu0 0.0
    %1022 = vmatpush1.xpose.msra.mxu0 0.0
    %1023 = vmatprep.subr.mxu0 0.0
    %1024 = vmatpush1.xpose.msra.mxu0 0.0
    %1025 = vmatprep.subr.mxu0 0.0
    %1026 = vmatpush1.xpose.msra.mxu0 0.0
    %1027 = vmatprep.subr.mxu0 0.0
    %1028 = vmatpush1.xpose.msra.mxu0 0.0
    %1029 = vmatprep.subr.mxu0 0.0
    %1030 = vmatpush1.xpose.msra.mxu0 0.0
    %1031 = vmatprep.subr.mxu0 0.0
    %1032 = vmatpush1.xpose.msra.mxu0 0.0
    %1033 = vmatprep.subr.mxu0 0.0
    %1034 = vmatpush1.xpose.msra.mxu0 0.0
    %1035 = vmatprep.subr.mxu0 0.0
    %1036 = vmatpush1.xpose.msra.mxu0 0.0
    %1037 = vmatprep.subr.mxu0 0.0
    %1038 = vmatpush1.xpose.msra.mxu0 0.0
    %1039 = vmatprep.subr.mxu0 0.0
    %1040 = vmatpush1.xpose.msra.mxu0 0.0
    %1041 = vmatprep.mubr.f32.mxu0 0.0
    %1042 = vmatmul.mubr.f32.gmra.mrb[0].mxu0 %v973
    %v1043 = vpop.f32.mrb[0].mxu0
    %v1044 = vadd.f32 0.0, %v1043
    %v1045 = vpop.f32.mrb[0].mxu0
    %1046 = vdwg.mxu0
    %v1047 = vmul.f32 %v1044, 0.35355338
    %v1048 = vsel %vm242, %v1047, -inf
    %1049 = vmax.xlane.f32.xlu0 %v1048
    %v1050 = vpop.xlane.xlu0 %1049
    %v1051 = vsub.f32 %v1047, %v1050
    %v1052 = vmul.f32 %v1051, 1.442695
    %v1053 = vpow.pop %v1052
    %v1054 = vsel %vm242, %v1053, 0.0
    %1055 = vadd.xlane.f32.xlu0 %v1054
    %v1056 = vpop.xlane.xlu0 %1055
    %1057 = vrot.lane.b32.xlu0 %v239, 40
    %v1058 = vpop.permute.xlu0 %1057
    %v1061 = vsel %vm242, %v1053, 0
    %1063 = vmatprep.subr.mxu0 0.0
    %1064 = vmatpush1.msra.mxu0 %v1058
    %1065 = vmatprep.subr.mxu0 0.0
    %1066 = vmatpush1.msra.mxu0 0.0
    %1067 = vmatprep.subr.mxu0 0.0
    %1068 = vmatpush1.msra.mxu0 0.0
    %1069 = vmatprep.subr.mxu0 0.0
    %1070 = vmatpush1.msra.mxu0 0.0
    %1071 = vmatprep.subr.mxu0 0.0
    %1072 = vmatpush1.msra.mxu0 0.0
    %1073 = vmatprep.subr.mxu0 0.0
    %1074 = vmatpush1.msra.mxu0 0.0
    %1075 = vmatprep.subr.mxu0 0.0
    %1076 = vmatpush1.msra.mxu0 0.0
    %1077 = vmatprep.subr.mxu0 0.0
    %1078 = vmatpush1.msra.mxu0 0.0
    %1079 = vmatprep.subr.mxu0 0.0
    %1080 = vmatpush1.msra.mxu0 0.0
    %1081 = vmatprep.subr.mxu0 0.0
    %1082 = vmatpush1.msra.mxu0 0.0
    %1083 = vmatprep.subr.mxu0 0.0
    %1084 = vmatpush1.msra.mxu0 0.0
    %1085 = vmatprep.subr.mxu0 0.0
    %1086 = vmatpush1.msra.mxu0 0.0
    %1087 = vmatprep.subr.mxu0 0.0
    %1088 = vmatpush1.msra.mxu0 0.0
    %1089 = vmatprep.subr.mxu0 0.0
    %1090 = vmatpush1.msra.mxu0 0.0
    %1091 = vmatprep.subr.mxu0 0.0
    %1092 = vmatpush1.msra.mxu0 0.0
    %1093 = vmatprep.subr.mxu0 0.0
    %1094 = vmatpush1.msra.mxu0 0.0
    %1095 = vmatprep.subr.mxu0 0.0
    %1096 = vmatpush1.msra.mxu0 0.0
    %1097 = vmatprep.subr.mxu0 0.0
    %1098 = vmatpush1.msra.mxu0 0.0
    %1099 = vmatprep.subr.mxu0 0.0
    %1100 = vmatpush1.msra.mxu0 0.0
    %1101 = vmatprep.subr.mxu0 0.0
    %1102 = vmatpush1.msra.mxu0 0.0
    %1103 = vmatprep.subr.mxu0 0.0
    %1104 = vmatpush1.msra.mxu0 0.0
    %1105 = vmatprep.subr.mxu0 0.0
    %1106 = vmatpush1.msra.mxu0 0.0
    %1107 = vmatprep.subr.mxu0 0.0
    %1108 = vmatpush1.msra.mxu0 0.0
    %1109 = vmatprep.subr.mxu0 0.0
    %1110 = vmatpush1.msra.mxu0 0.0
    %1111 = vmatprep.subr.mxu0 0.0
    %1112 = vmatpush1.msra.mxu0 0.0
    %1113 = vmatprep.subr.mxu0 0.0
    %1114 = vmatpush1.msra.mxu0 0.0
    %1115 = vmatprep.subr.mxu0 0.0
    %1116 = vmatpush1.msra.mxu0 0.0
    %1117 = vmatprep.subr.mxu0 0.0
    %1118 = vmatpush1.msra.mxu0 0.0
    %1119 = vmatprep.subr.mxu0 0.0
    %1120 = vmatpush1.msra.mxu0 0.0
    %1121 = vmatprep.subr.mxu0 0.0
    %1122 = vmatpush1.msra.mxu0 0.0
    %1123 = vmatprep.subr.mxu0 0.0
    %1124 = vmatpush1.msra.mxu0 0.0
    %1125 = vmatprep.subr.mxu0 0.0
    %1126 = vmatpush1.msra.mxu0 0.0
    %1127 = vmatprep.mubr.f32.mxu0 0.0
    %1128 = vmatmul.mubr.f32.gmra.mrb[0].mxu0 %v1061
    %v1129 = vpop.f32.mrb[0].mxu0
    %v1130 = vadd.f32 0.0, %v1129
    %v1131 = vpop.f32.mrb[0].mxu0
    %1132 = vdwg.mxu0
    %v1133 = vrcp.pop %v1056
    %v1134 = vmul.f32 %v1130, %v1133
    %1136 = vrot.lane.b32.xlu0 %v193, 32
    %v1137 = vpop.permute.xlu0 %1136
    %v1140 = vsel %vm242, %v1134, 0
    %1142 = vmatprep.subr.mxu0 0.0
    %1143 = vmatpush1.msra.mxu0 %v1137
    %1144 = vmatprep.subr.mxu0 0.0
    %1145 = vmatpush1.msra.mxu0 0.0
    %1146 = vmatprep.subr.mxu0 0.0
    %1147 = vmatpush1.msra.mxu0 0.0
    %1148 = vmatprep.subr.mxu0 0.0
    %1149 = vmatpush1.msra.mxu0 0.0
    %1150 = vmatprep.subr.mxu0 0.0
    %1151 = vmatpush1.msra.mxu0 0.0
    %1152 = vmatprep.subr.mxu0 0.0
    %1153 = vmatpush1.msra.mxu0 0.0
    %1154 = vmatprep.subr.mxu0 0.0
    %1155 = vmatpush1.msra.mxu0 0.0
    %1156 = vmatprep.subr.mxu0 0.0
    %1157 = vmatpush1.msra.mxu0 0.0
    %1158 = vmatprep.subr.mxu0 0.0
    %1159 = vmatpush1.msra.mxu0 0.0
    %1160 = vmatprep.subr.mxu0 0.0
    %1161 = vmatpush1.msra.mxu0 0.0
    %1162 = vmatprep.subr.mxu0 0.0
    %1163 = vmatpush1.msra.mxu0 0.0
    %1164 = vmatprep.subr.mxu0 0.0
    %1165 = vmatpush1.msra.mxu0 0.0
    %1166 = vmatprep.subr.mxu0 0.0
    %1167 = vmatpush1.msra.mxu0 0.0
    %1168 = vmatprep.subr.mxu0 0.0
    %1169 = vmatpush1.msra.mxu0 0.0
    %1170 = vmatprep.subr.mxu0 0.0
    %1171 = vmatpush1.msra.mxu0 0.0
    %1172 = vmatprep.subr.mxu0 0.0
    %1173 = vmatpush1.msra.mxu0 0.0
    %1174 = vmatprep.subr.mxu0 0.0
    %1175 = vmatpush1.msra.mxu0 0.0
    %1176 = vmatprep.subr.mxu0 0.0
    %1177 = vmatpush1.msra.mxu0 0.0
    %1178 = vmatprep.subr.mxu0 0.0
    %1179 = vmatpush1.msra.mxu0 0.0
    %1180 = vmatprep.subr.mxu0 0.0
    %1181 = vmatpush1.msra.mxu0 0.0
    %1182 = vmatprep.subr.mxu0 0.0
    %1183 = vmatpush1.msra.mxu0 0.0
    %1184 = vmatprep.subr.mxu0 0.0
    %1185 = vmatpush1.msra.mxu0 0.0
    %1186 = vmatprep.subr.mxu0 0.0
    %1187 = vmatpush1.msra.mxu0 0.0
    %1188 = vmatprep.subr.mxu0 0.0
    %1189 = vmatpush1.msra.mxu0 0.0
    %1190 = vmatprep.subr.mxu0 0.0
    %1191 = vmatpush1.msra.mxu0 0.0
    %1192 = vmatprep.subr.mxu0 0.0
    %1193 = vmatpush1.msra.mxu0 0.0
    %1194 = vmatprep.subr.mxu0 0.0
    %1195 = vmatpush1.msra.mxu0 0.0
    %1196 = vmatprep.subr.mxu0 0.0
    %1197 = vmatpush1.msra.mxu0 0.0
    %1198 = vmatprep.subr.mxu0 0.0
    %1199 = vmatpush1.msra.mxu0 0.0
    %1200 = vmatprep.subr.mxu0 0.0
    %1201 = vmatpush1.msra.mxu0 0.0
    %1202 = vmatprep.subr.mxu0 0.0
    %1203 = vmatpush1.msra.mxu0 0.0
    %1204 = vmatprep.subr.mxu0 0.0
    %1205 = vmatpush1.msra.mxu0 0.0
    %1206 = vmatprep.mubr.f32.mxu0 0.0
    %1207 = vmatmul.mubr.f32.gmra.mrb[0].mxu0 %v1140
    %v1208 = vpop.f32.mrb[0].mxu0
    %v1209 = vadd.f32 0.0, %v1208
    %v1210 = vpop.f32.mrb[0].mxu0
    %1211 = vdwg.mxu0
    %v1212 = vadd.f32 %v968, %v1209
    %v1213 = vlaneseq
    %v1214 = vshrl.u32 %v1213, 7
    %v1215 = vsub.s32 1, %v1214
    %v1216 = vrot.slane %v163, %v1215
    %v1217 = vlaneseq
    %v1218 = vshrl.u32 %v1217, 7
    %v1219 = vsub.s32 1, %v1218
    %v1220 = vrot.slane %v171, %v1219
    %v1221 = vlaneseq
    %v1222 = vshrl.u32 %v1221, 7
    %v1223 = vsub.s32 1, %v1222
    %v1224 = vrot.slane %v170, %v1223
    %v1225 = vlaneseq
    %v1226 = vshrl.u32 %v1225, 7
    %v1227 = vsub.s32 1, %v1226
    %v1228 = vrot.slane %v172, %v1227
    %v1229 = vlaneseq
    %v1230 = vshrl.u32 %v1229, 7
    %v1231 = vsub.s32 1, %v1230
    %v1232 = vrot.slane %v180, %v1231
    %v1233 = vlaneseq
    %v1234 = vshrl.u32 %v1233, 7
    %v1235 = vsub.s32 1, %v1234
    %v1236 = vrot.slane %v188, %v1235
    %v1237 = vlaneseq
    %v1238 = vshrl.u32 %v1237, 7
    %v1239 = vsub.s32 1, %v1238
    %v1240 = vrot.slane %v187, %v1239
    %v1241 = vlaneseq
    %v1242 = vshrl.u32 %v1241, 7
    %v1243 = vsub.s32 1, %v1242
    %v1244 = vrot.slane %v189, %v1243
    %v1245 = vsel %vm226, %v1220, %v1216
    %v1246 = vsel %vm228, %v1224, %v1245
    %v1247 = vsel %vm230, %v1228, %v1246
    %v1248 = vsel %vm232, %v1232, %v1247
    %v1249 = vsel %vm234, %v1236, %v1248
    %v1250 = vsel %vm236, %v1240, %v1249
    %v1251 = vsel %vm238, %v1244, %v1250
    %1252 = vrot.lane.b32.xlu0 %v1251, 96
    %v1253 = vpop.permute.xlu0 %1252
    %v1254 = vsel %vm242, %v1251, 0
    %v1256 = vsel %vm242, %v1253, 0
    %1258 = vmatprep.subr.mxu0 0.0
    %1259 = vmatpush1.xpose.msra.mxu0 %v1256
    %1260 = vmatprep.subr.mxu0 0.0
    %1261 = vmatpush1.xpose.msra.mxu0 0.0
    %1262 = vmatprep.subr.mxu0 0.0
    %1263 = vmatpush1.xpose.msra.mxu0 0.0
    %1264 = vmatprep.subr.mxu0 0.0
    %1265 = vmatpush1.xpose.msra.mxu0 0.0
    %1266 = vmatprep.subr.mxu0 0.0
    %1267 = vmatpush1.xpose.msra.mxu0 0.0
    %1268 = vmatprep.subr.mxu0 0.0
    %1269 = vmatpush1.xpose.msra.mxu0 0.0
    %1270 = vmatprep.subr.mxu0 0.0
    %1271 = vmatpush1.xpose.msra.mxu0 0.0
    %1272 = vmatprep.subr.mxu0 0.0
    %1273 = vmatpush1.xpose.msra.mxu0 0.0
    %1274 = vmatprep.subr.mxu0 0.0
    %1275 = vmatpush1.xpose.msra.mxu0 0.0
    %1276 = vmatprep.subr.mxu0 0.0
    %1277 = vmatpush1.xpose.msra.mxu0 0.0
    %1278 = vmatprep.subr.mxu0 0.0
    %1279 = vmatpush1.xpose.msra.mxu0 0.0
    %1280 = vmatprep.subr.mxu0 0.0
    %1281 = vmatpush1.xpose.msra.mxu0 0.0
    %1282 = vmatprep.subr.mxu0 0.0
    %1283 = vmatpush1.xpose.msra.mxu0 0.0
    %1284 = vmatprep.subr.mxu0 0.0
    %1285 = vmatpush1.xpose.msra.mxu0 0.0
    %1286 = vmatprep.subr.mxu0 0.0
    %1287 = vmatpush1.xpose.msra.mxu0 0.0
    %1288 = vmatprep.subr.mxu0 0.0
    %1289 = vmatpush1.xpose.msra.mxu0 0.0
    %1290 = vmatprep.subr.mxu0 0.0
    %1291 = vmatpush1.xpose.msra.mxu0 0.0
    %1292 = vmatprep.subr.mxu0 0.0
    %1293 = vmatpush1.xpose.msra.mxu0 0.0
    %1294 = vmatprep.subr.mxu0 0.0
    %1295 = vmatpush1.xpose.msra.mxu0 0.0
    %1296 = vmatprep.subr.mxu0 0.0
    %1297 = vmatpush1.xpose.msra.mxu0 0.0
    %1298 = vmatprep.subr.mxu0 0.0
    %1299 = vmatpush1.xpose.msra.mxu0 0.0
    %1300 = vmatprep.subr.mxu0 0.0
    %1301 = vmatpush1.xpose.msra.mxu0 0.0
    %1302 = vmatprep.subr.mxu0 0.0
    %1303 = vmatpush1.xpose.msra.mxu0 0.0
    %1304 = vmatprep.subr.mxu0 0.0
    %1305 = vmatpush1.xpose.msra.mxu0 0.0
    %1306 = vmatprep.subr.mxu0 0.0
    %1307 = vmatpush1.xpose.msra.mxu0 0.0
    %1308 = vmatprep.subr.mxu0 0.0
    %1309 = vmatpush1.xpose.msra.mxu0 0.0
    %1310 = vmatprep.subr.mxu0 0.0
    %1311 = vmatpush1.xpose.msra.mxu0 0.0
    %1312 = vmatprep.subr.mxu0 0.0
    %1313 = vmatpush1.xpose.msra.mxu0 0.0
    %1314 = vmatprep.subr.mxu0 0.0
    %1315 = vmatpush1.xpose.msra.mxu0 0.0
    %1316 = vmatprep.subr.mxu0 0.0
    %1317 = vmatpush1.xpose.msra.mxu0 0.0
    %1318 = vmatprep.subr.mxu0 0.0
    %1319 = vmatpush1.xpose.msra.mxu0 0.0
    %1320 = vmatprep.subr.mxu0 0.0
    %1321 = vmatpush1.xpose.msra.mxu0 0.0
    %1322 = vmatprep.mubr.f32.mxu0 0.0
    %1323 = vmatmul.mubr.f32.gmra.mrb[0].mxu0 %v1254
    %v1324 = vpop.f32.mrb[0].mxu0
    %v1325 = vadd.f32 0.0, %v1324
    %v1326 = vpop.f32.mrb[0].mxu0
    %1327 = vdwg.mxu0
    %v1328 = vmul.f32 %v1325, 0.35355338
    %v1329 = vsel %vm242, %v1328, -inf
    %1330 = vmax.xlane.f32.xlu0 %v1329
    %v1331 = vpop.xlane.xlu0 %1330
    %v1332 = vsub.f32 %v1328, %v1331
    %v1333 = vmul.f32 %v1332, 1.442695
    %v1334 = vpow.pop %v1333
    %v1335 = vsel %vm242, %v1334, 0.0
    %1336 = vadd.xlane.f32.xlu0 %v1335
    %v1337 = vpop.xlane.xlu0 %1336
    %1338 = vrot.lane.b32.xlu0 %v1251, 64
    %v1339 = vpop.permute.xlu0 %1338
    %v1342 = vsel %vm242, %v1334, 0
    %1344 = vmatprep.subr.mxu0 0.0
    %1345 = vmatpush1.msra.mxu0 %v1339
    %1346 = vmatprep.subr.mxu0 0.0
    %1347 = vmatpush1.msra.mxu0 0.0
    %1348 = vmatprep.subr.mxu0 0.0
    %1349 = vmatpush1.msra.mxu0 0.0
    %1350 = vmatprep.subr.mxu0 0.0
    %1351 = vmatpush1.msra.mxu0 0.0
    %1352 = vmatprep.subr.mxu0 0.0
    %1353 = vmatpush1.msra.mxu0 0.0
    %1354 = vmatprep.subr.mxu0 0.0
    %1355 = vmatpush1.msra.mxu0 0.0
    %1356 = vmatprep.subr.mxu0 0.0
    %1357 = vmatpush1.msra.mxu0 0.0
    %1358 = vmatprep.subr.mxu0 0.0
    %1359 = vmatpush1.msra.mxu0 0.0
    %1360 = vmatprep.subr.mxu0 0.0
    %1361 = vmatpush1.msra.mxu0 0.0
    %1362 = vmatprep.subr.mxu0 0.0
    %1363 = vmatpush1.msra.mxu0 0.0
    %1364 = vmatprep.subr.mxu0 0.0
    %1365 = vmatpush1.msra.mxu0 0.0
    %1366 = vmatprep.subr.mxu0 0.0
    %1367 = vmatpush1.msra.mxu0 0.0
    %1368 = vmatprep.subr.mxu0 0.0
    %1369 = vmatpush1.msra.mxu0 0.0
    %1370 = vmatprep.subr.mxu0 0.0
    %1371 = vmatpush1.msra.mxu0 0.0
    %1372 = vmatprep.subr.mxu0 0.0
    %1373 = vmatpush1.msra.mxu0 0.0
    %1374 = vmatprep.subr.mxu0 0.0
    %1375 = vmatpush1.msra.mxu0 0.0
    %1376 = vmatprep.subr.mxu0 0.0
    %1377 = vmatpush1.msra.mxu0 0.0
    %1378 = vmatprep.subr.mxu0 0.0
    %1379 = vmatpush1.msra.mxu0 0.0
    %1380 = vmatprep.subr.mxu0 0.0
    %1381 = vmatpush1.msra.mxu0 0.0
    %1382 = vmatprep.subr.mxu0 0.0
    %1383 = vmatpush1.msra.mxu0 0.0
    %1384 = vmatprep.subr.mxu0 0.0
    %1385 = vmatpush1.msra.mxu0 0.0
    %1386 = vmatprep.subr.mxu0 0.0
    %1387 = vmatpush1.msra.mxu0 0.0
    %1388 = vmatprep.subr.mxu0 0.0
    %1389 = vmatpush1.msra.mxu0 0.0
    %1390 = vmatprep.subr.mxu0 0.0
    %1391 = vmatpush1.msra.mxu0 0.0
    %1392 = vmatprep.subr.mxu0 0.0
    %1393 = vmatpush1.msra.mxu0 0.0
    %1394 = vmatprep.subr.mxu0 0.0
    %1395 = vmatpush1.msra.mxu0 0.0
    %1396 = vmatprep.subr.mxu0 0.0
    %1397 = vmatpush1.msra.mxu0 0.0
    %1398 = vmatprep.subr.mxu0 0.0
    %1399 = vmatpush1.msra.mxu0 0.0
    %1400 = vmatprep.subr.mxu0 0.0
    %1401 = vmatpush1.msra.mxu0 0.0
    %1402 = vmatprep.subr.mxu0 0.0
    %1403 = vmatpush1.msra.mxu0 0.0
    %1404 = vmatprep.subr.mxu0 0.0
    %1405 = vmatpush1.msra.mxu0 0.0
    %1406 = vmatprep.subr.mxu0 0.0
    %1407 = vmatpush1.msra.mxu0 0.0
    %1408 = vmatprep.mubr.f32.mxu0 0.0
    %1409 = vmatmul.mubr.f32.gmra.mrb[0].mxu0 %v1342
    %v1410 = vpop.f32.mrb[0].mxu0
    %v1411 = vadd.f32 0.0, %v1410
    %v1412 = vpop.f32.mrb[0].mxu0
    %1413 = vdwg.mxu0
    %v1414 = vrcp.pop %v1337
    %v1415 = vmul.f32 %v1411, %v1414
    %1416 = vrot.lane.b32.xlu0 %v1251, 120
    %v1417 = vpop.permute.xlu0 %1416
    %1418 = vrot.lane.b32.xlu0 %v1251, 88
    %v1419 = vpop.permute.xlu0 %1418
    %v1420 = vsel %vm242, %v1417, 0
    %v1422 = vsel %vm242, %v1419, 0
    %1424 = vmatprep.subr.mxu0 0.0
    %1425 = vmatpush1.xpose.msra.mxu0 %v1422
    %1426 = vmatprep.subr.mxu0 0.0
    %1427 = vmatpush1.xpose.msra.mxu0 0.0
    %1428 = vmatprep.subr.mxu0 0.0
    %1429 = vmatpush1.xpose.msra.mxu0 0.0
    %1430 = vmatprep.subr.mxu0 0.0
    %1431 = vmatpush1.xpose.msra.mxu0 0.0
    %1432 = vmatprep.subr.mxu0 0.0
    %1433 = vmatpush1.xpose.msra.mxu0 0.0
    %1434 = vmatprep.subr.mxu0 0.0
    %1435 = vmatpush1.xpose.msra.mxu0 0.0
    %1436 = vmatprep.subr.mxu0 0.0
    %1437 = vmatpush1.xpose.msra.mxu0 0.0
    %1438 = vmatprep.subr.mxu0 0.0
    %1439 = vmatpush1.xpose.msra.mxu0 0.0
    %1440 = vmatprep.subr.mxu0 0.0
    %1441 = vmatpush1.xpose.msra.mxu0 0.0
    %1442 = vmatprep.subr.mxu0 0.0
    %1443 = vmatpush1.xpose.msra.mxu0 0.0
    %1444 = vmatprep.subr.mxu0 0.0
    %1445 = vmatpush1.xpose.msra.mxu0 0.0
    %1446 = vmatprep.subr.mxu0 0.0
    %1447 = vmatpush1.xpose.msra.mxu0 0.0
    %1448 = vmatprep.subr.mxu0 0.0
    %1449 = vmatpush1.xpose.msra.mxu0 0.0
    %1450 = vmatprep.subr.mxu0 0.0
    %1451 = vmatpush1.xpose.msra.mxu0 0.0
    %1452 = vmatprep.subr.mxu0 0.0
    %1453 = vmatpush1.xpose.msra.mxu0 0.0
    %1454 = vmatprep.subr.mxu0 0.0
    %1455 = vmatpush1.xpose.msra.mxu0 0.0
    %1456 = vmatprep.subr.mxu0 0.0
    %1457 = vmatpush1.xpose.msra.mxu0 0.0
    %1458 = vmatprep.subr.mxu0 0.0
    %1459 = vmatpush1.xpose.msra.mxu0 0.0
    %1460 = vmatprep.subr.mxu0 0.0
    %1461 = vmatpush1.xpose.msra.mxu0 0.0
    %1462 = vmatprep.subr.mxu0 0.0
    %1463 = vmatpush1.xpose.msra.mxu0 0.0
    %1464 = vmatprep.subr.mxu0 0.0
    %1465 = vmatpush1.xpose.msra.mxu0 0.0
    %1466 = vmatprep.subr.mxu0 0.0
    %1467 = vmatpush1.xpose.msra.mxu0 0.0
    %1468 = vmatprep.subr.mxu0 0.0
    %1469 = vmatpush1.xpose.msra.mxu0 0.0
    %1470 = vmatprep.subr.mxu0 0.0
    %1471 = vmatpush1.xpose.msra.mxu0 0.0
    %1472 = vmatprep.subr.mxu0 0.0
    %1473 = vmatpush1.xpose.msra.mxu0 0.0
    %1474 = vmatprep.subr.mxu0 0.0
    %1475 = vmatpush1.xpose.msra.mxu0 0.0
    %1476 = vmatprep.subr.mxu0 0.0
    %1477 = vmatpush1.xpose.msra.mxu0 0.0
    %1478 = vmatprep.subr.mxu0 0.0
    %1479 = vmatpush1.xpose.msra.mxu0 0.0
    %1480 = vmatprep.subr.mxu0 0.0
    %1481 = vmatpush1.xpose.msra.mxu0 0.0
    %1482 = vmatprep.subr.mxu0 0.0
    %1483 = vmatpush1.xpose.msra.mxu0 0.0
    %1484 = vmatprep.subr.mxu0 0.0
    %1485 = vmatpush1.xpose.msra.mxu0 0.0
    %1486 = vmatprep.subr.mxu0 0.0
    %1487 = vmatpush1.xpose.msra.mxu0 0.0
    %1488 = vmatprep.mubr.f32.mxu0 0.0
    %1489 = vmatmul.mubr.f32.gmra.mrb[0].mxu0 %v1420
    %v1490 = vpop.f32.mrb[0].mxu0
    %v1491 = vadd.f32 0.0, %v1490
    %v1492 = vpop.f32.mrb[0].mxu0
    %1493 = vdwg.mxu0
    %v1494 = vmul.f32 %v1491, 0.35355338
    %v1495 = vsel %vm242, %v1494, -inf
    %1496 = vmax.xlane.f32.xlu0 %v1495
    %v1497 = vpop.xlane.xlu0 %1496
    %v1498 = vsub.f32 %v1494, %v1497
    %v1499 = vmul.f32 %v1498, 1.442695
    %v1500 = vpow.pop %v1499
    %v1501 = vsel %vm242, %v1500, 0.0
    %1502 = vadd.xlane.f32.xlu0 %v1501
    %v1503 = vpop.xlane.xlu0 %1502
    %1504 = vrot.lane.b32.xlu0 %v1251, 56
    %v1505 = vpop.permute.xlu0 %1504
    %v1508 = vsel %vm242, %v1500, 0
    %1510 = vmatprep.subr.mxu0 0.0
    %1511 = vmatpush1.msra.mxu0 %v1505
    %1512 = vmatprep.subr.mxu0 0.0
    %1513 = vmatpush1.msra.mxu0 0.0
    %1514 = vmatprep.subr.mxu0 0.0
    %1515 = vmatpush1.msra.mxu0 0.0
    %1516 = vmatprep.subr.mxu0 0.0
    %1517 = vmatpush1.msra.mxu0 0.0
    %1518 = vmatprep.subr.mxu0 0.0
    %1519 = vmatpush1.msra.mxu0 0.0
    %1520 = vmatprep.subr.mxu0 0.0
    %1521 = vmatpush1.msra.mxu0 0.0
    %1522 = vmatprep.subr.mxu0 0.0
    %1523 = vmatpush1.msra.mxu0 0.0
    %1524 = vmatprep.subr.mxu0 0.0
    %1525 = vmatpush1.msra.mxu0 0.0
    %1526 = vmatprep.subr.mxu0 0.0
    %1527 = vmatpush1.msra.mxu0 0.0
    %1528 = vmatprep.subr.mxu0 0.0
    %1529 = vmatpush1.msra.mxu0 0.0
    %1530 = vmatprep.subr.mxu0 0.0
    %1531 = vmatpush1.msra.mxu0 0.0
    %1532 = vmatprep.subr.mxu0 0.0
    %1533 = vmatpush1.msra.mxu0 0.0
    %1534 = vmatprep.subr.mxu0 0.0
    %1535 = vmatpush1.msra.mxu0 0.0
    %1536 = vmatprep.subr.mxu0 0.0
    %1537 = vmatpush1.msra.mxu0 0.0
    %1538 = vmatprep.subr.mxu0 0.0
    %1539 = vmatpush1.msra.mxu0 0.0
    %1540 = vmatprep.subr.mxu0 0.0
    %1541 = vmatpush1.msra.mxu0 0.0
    %1542 = vmatprep.subr.mxu0 0.0
    %1543 = vmatpush1.msra.mxu0 0.0
    %1544 = vmatprep.subr.mxu0 0.0
    %1545 = vmatpush1.msra.mxu0 0.0
    %1546 = vmatprep.subr.mxu0 0.0
    %1547 = vmatpush1.msra.mxu0 0.0
    %1548 = vmatprep.subr.mxu0 0.0
    %1549 = vmatpush1.msra.mxu0 0.0
    %1550 = vmatprep.subr.mxu0 0.0
    %1551 = vmatpush1.msra.mxu0 0.0
    %1552 = vmatprep.subr.mxu0 0.0
    %1553 = vmatpush1.msra.mxu0 0.0
    %1554 = vmatprep.subr.mxu0 0.0
    %1555 = vmatpush1.msra.mxu0 0.0
    %1556 = vmatprep.subr.mxu0 0.0
    %1557 = vmatpush1.msra.mxu0 0.0
    %1558 = vmatprep.subr.mxu0 0.0
    %1559 = vmatpush1.msra.mxu0 0.0
    %1560 = vmatprep.subr.mxu0 0.0
    %1561 = vmatpush1.msra.mxu0 0.0
    %1562 = vmatprep.subr.mxu0 0.0
    %1563 = vmatpush1.msra.mxu0 0.0
    %1564 = vmatprep.subr.mxu0 0.0
    %1565 = vmatpush1.msra.mxu0 0.0
    %1566 = vmatprep.subr.mxu0 0.0
    %1567 = vmatpush1.msra.mxu0 0.0
    %1568 = vmatprep.subr.mxu0 0.0
    %1569 = vmatpush1.msra.mxu0 0.0
    %1570 = vmatprep.subr.mxu0 0.0
    %1571 = vmatpush1.msra.mxu0 0.0
    %1572 = vmatprep.subr.mxu0 0.0
    %1573 = vmatpush1.msra.mxu0 0.0
    %1574 = vmatprep.mubr.f32.mxu0 0.0
    %1575 = vmatmul.mubr.f32.gmra.mrb[0].mxu0 %v1508
    %v1576 = vpop.f32.mrb[0].mxu0
    %v1577 = vadd.f32 0.0, %v1576
    %v1578 = vpop.f32.mrb[0].mxu0
    %1579 = vdwg.mxu0
    %v1580 = vrcp.pop %v1503
    %v1581 = vmul.f32 %v1577, %v1580
    %v1583 = vsel %vm242, %v1581, 0
    %1585 = vmatprep.subr.mxu0 0.0
    %1586 = vmatpush1.msra.mxu0 %v573
    %1587 = vmatprep.subr.mxu0 0.0
    %1588 = vmatpush1.msra.mxu0 0.0
    %1589 = vmatprep.subr.mxu0 0.0
    %1590 = vmatpush1.msra.mxu0 0.0
    %1591 = vmatprep.subr.mxu0 0.0
    %1592 = vmatpush1.msra.mxu0 0.0
    %1593 = vmatprep.subr.mxu0 0.0
    %1594 = vmatpush1.msra.mxu0 0.0
    %1595 = vmatprep.subr.mxu0 0.0
    %1596 = vmatpush1.msra.mxu0 0.0
    %1597 = vmatprep.subr.mxu0 0.0
    %1598 = vmatpush1.msra.mxu0 0.0
    %1599 = vmatprep.subr.mxu0 0.0
    %1600 = vmatpush1.msra.mxu0 0.0
    %1601 = vmatprep.subr.mxu0 0.0
    %1602 = vmatpush1.msra.mxu0 0.0
    %1603 = vmatprep.subr.mxu0 0.0
    %1604 = vmatpush1.msra.mxu0 0.0
    %1605 = vmatprep.subr.mxu0 0.0
    %1606 = vmatpush1.msra.mxu0 0.0
    %1607 = vmatprep.subr.mxu0 0.0
    %1608 = vmatpush1.msra.mxu0 0.0
    %1609 = vmatprep.subr.mxu0 0.0
    %1610 = vmatpush1.msra.mxu0 0.0
    %1611 = vmatprep.subr.mxu0 0.0
    %1612 = vmatpush1.msra.mxu0 0.0
    %1613 = vmatprep.subr.mxu0 0.0
    %1614 = vmatpush1.msra.mxu0 0.0
    %1615 = vmatprep.subr.mxu0 0.0
    %1616 = vmatpush1.msra.mxu0 0.0
    %1617 = vmatprep.subr.mxu0 0.0
    %1618 = vmatpush1.msra.mxu0 0.0
    %1619 = vmatprep.subr.mxu0 0.0
    %1620 = vmatpush1.msra.mxu0 0.0
    %1621 = vmatprep.subr.mxu0 0.0
    %1622 = vmatpush1.msra.mxu0 0.0
    %1623 = vmatprep.subr.mxu0 0.0
    %1624 = vmatpush1.msra.mxu0 0.0
    %1625 = vmatprep.subr.mxu0 0.0
    %1626 = vmatpush1.msra.mxu0 0.0
    %1627 = vmatprep.subr.mxu0 0.0
    %1628 = vmatpush1.msra.mxu0 0.0
    %1629 = vmatprep.subr.mxu0 0.0
    %1630 = vmatpush1.msra.mxu0 0.0
    %1631 = vmatprep.subr.mxu0 0.0
    %1632 = vmatpush1.msra.mxu0 0.0
    %1633 = vmatprep.subr.mxu0 0.0
    %1634 = vmatpush1.msra.mxu0 0.0
    %1635 = vmatprep.subr.mxu0 0.0
    %1636 = vmatpush1.msra.mxu0 0.0
    %1637 = vmatprep.subr.mxu0 0.0
    %1638 = vmatpush1.msra.mxu0 0.0
    %1639 = vmatprep.subr.mxu0 0.0
    %1640 = vmatpush1.msra.mxu0 0.0
    %1641 = vmatprep.subr.mxu0 0.0
    %1642 = vmatpush1.msra.mxu0 0.0
    %1643 = vmatprep.subr.mxu0 0.0
    %1644 = vmatpush1.msra.mxu0 0.0
    %1645 = vmatprep.subr.mxu0 0.0
    %1646 = vmatpush1.msra.mxu0 0.0
    %1647 = vmatprep.subr.mxu0 0.0
    %1648 = vmatpush1.msra.mxu0 0.0
    %1649 = vmatprep.mubr.f32.mxu0 0.0
    %1650 = vmatmul.mubr.f32.gmra.mrb[0].mxu0 %v1583
    %v1651 = vpop.f32.mrb[0].mxu0
    %v1652 = vadd.f32 0.0, %v1651
    %v1653 = vpop.f32.mrb[0].mxu0
    %1654 = vdwg.mxu0
    %v1656 = vsel %vm242, %v1415, 0
    %1658 = vmatprep.subr.mxu0 0.0
    %1659 = vmatpush1.msra.mxu0 %v650
    %1660 = vmatprep.subr.mxu0 0.0
    %1661 = vmatpush1.msra.mxu0 0.0
    %1662 = vmatprep.subr.mxu0 0.0
    %1663 = vmatpush1.msra.mxu0 0.0
    %1664 = vmatprep.subr.mxu0 0.0
    %1665 = vmatpush1.msra.mxu0 0.0
    %1666 = vmatprep.subr.mxu0 0.0
    %1667 = vmatpush1.msra.mxu0 0.0
    %1668 = vmatprep.subr.mxu0 0.0
    %1669 = vmatpush1.msra.mxu0 0.0
    %1670 = vmatprep.subr.mxu0 0.0
    %1671 = vmatpush1.msra.mxu0 0.0
    %1672 = vmatprep.subr.mxu0 0.0
    %1673 = vmatpush1.msra.mxu0 0.0
    %1674 = vmatprep.subr.mxu0 0.0
    %1675 = vmatpush1.msra.mxu0 0.0
    %1676 = vmatprep.subr.mxu0 0.0
    %1677 = vmatpush1.msra.mxu0 0.0
    %1678 = vmatprep.subr.mxu0 0.0
    %1679 = vmatpush1.msra.mxu0 0.0
    %1680 = vmatprep.subr.mxu0 0.0
    %1681 = vmatpush1.msra.mxu0 0.0
    %1682 = vmatprep.subr.mxu0 0.0
    %1683 = vmatpush1.msra.mxu0 0.0
    %1684 = vmatprep.subr.mxu0 0.0
    %1685 = vmatpush1.msra.mxu0 0.0
    %1686 = vmatprep.subr.mxu0 0.0
    %1687 = vmatpush1.msra.mxu0 0.0
    %1688 = vmatprep.subr.mxu0 0.0
    %1689 = vmatpush1.msra.mxu0 0.0
    %1690 = vmatprep.subr.mxu0 0.0
    %1691 = vmatpush1.msra.mxu0 0.0
    %1692 = vmatprep.subr.mxu0 0.0
    %1693 = vmatpush1.msra.mxu0 0.0
    %1694 = vmatprep.subr.mxu0 0.0
    %1695 = vmatpush1.msra.mxu0 0.0
    %1696 = vmatprep.subr.mxu0 0.0
    %1697 = vmatpush1.msra.mxu0 0.0
    %1698 = vmatprep.subr.mxu0 0.0
    %1699 = vmatpush1.msra.mxu0 0.0
    %1700 = vmatprep.subr.mxu0 0.0
    %1701 = vmatpush1.msra.mxu0 0.0
    %1702 = vmatprep.subr.mxu0 0.0
    %1703 = vmatpush1.msra.mxu0 0.0
    %1704 = vmatprep.subr.mxu0 0.0
    %1705 = vmatpush1.msra.mxu0 0.0
    %1706 = vmatprep.subr.mxu0 0.0
    %1707 = vmatpush1.msra.mxu0 0.0
    %1708 = vmatprep.subr.mxu0 0.0
    %1709 = vmatpush1.msra.mxu0 0.0
    %1710 = vmatprep.subr.mxu0 0.0
    %1711 = vmatpush1.msra.mxu0 0.0
    %1712 = vmatprep.subr.mxu0 0.0
    %1713 = vmatpush1.msra.mxu0 0.0
    %1714 = vmatprep.subr.mxu0 0.0
    %1715 = vmatpush1.msra.mxu0 0.0
    %1716 = vmatprep.subr.mxu0 0.0
    %1717 = vmatpush1.msra.mxu0 0.0
    %1718 = vmatprep.subr.mxu0 0.0
    %1719 = vmatpush1.msra.mxu0 0.0
    %1720 = vmatprep.subr.mxu0 0.0
    %1721 = vmatpush1.msra.mxu0 0.0
    %1722 = vmatprep.mubr.f32.mxu0 0.0
    %1723 = vmatmul.mubr.f32.gmra.mrb[0].mxu0 %v1656
    %v1724 = vpop.f32.mrb[0].mxu0
    %v1725 = vadd.f32 %v1652, %v1724
    %v1726 = vpop.f32.mrb[0].mxu0
    %1727 = vdwg.mxu0
    %1728 = vrot.lane.b32.xlu0 %v1251, 112
    %v1729 = vpop.permute.xlu0 %1728
    %1730 = vrot.lane.b32.xlu0 %v1251, 80
    %v1731 = vpop.permute.xlu0 %1730
    %v1732 = vsel %vm242, %v1729, 0
    %v1734 = vsel %vm242, %v1731, 0
    %1736 = vmatprep.subr.mxu0 0.0
    %1737 = vmatpush1.xpose.msra.mxu0 %v1734
    %1738 = vmatprep.subr.mxu0 0.0
    %1739 = vmatpush1.xpose.msra.mxu0 0.0
    %1740 = vmatprep.subr.mxu0 0.0
    %1741 = vmatpush1.xpose.msra.mxu0 0.0
    %1742 = vmatprep.subr.mxu0 0.0
    %1743 = vmatpush1.xpose.msra.mxu0 0.0
    %1744 = vmatprep.subr.mxu0 0.0
    %1745 = vmatpush1.xpose.msra.mxu0 0.0
    %1746 = vmatprep.subr.mxu0 0.0
    %1747 = vmatpush1.xpose.msra.mxu0 0.0
    %1748 = vmatprep.subr.mxu0 0.0
    %1749 = vmatpush1.xpose.msra.mxu0 0.0
    %1750 = vmatprep.subr.mxu0 0.0
    %1751 = vmatpush1.xpose.msra.mxu0 0.0
    %1752 = vmatprep.subr.mxu0 0.0
    %1753 = vmatpush1.xpose.msra.mxu0 0.0
    %1754 = vmatprep.subr.mxu0 0.0
    %1755 = vmatpush1.xpose.msra.mxu0 0.0
    %1756 = vmatprep.subr.mxu0 0.0
    %1757 = vmatpush1.xpose.msra.mxu0 0.0
    %1758 = vmatprep.subr.mxu0 0.0
    %1759 = vmatpush1.xpose.msra.mxu0 0.0
    %1760 = vmatprep.subr.mxu0 0.0
    %1761 = vmatpush1.xpose.msra.mxu0 0.0
    %1762 = vmatprep.subr.mxu0 0.0
    %1763 = vmatpush1.xpose.msra.mxu0 0.0
    %1764 = vmatprep.subr.mxu0 0.0
    %1765 = vmatpush1.xpose.msra.mxu0 0.0
    %1766 = vmatprep.subr.mxu0 0.0
    %1767 = vmatpush1.xpose.msra.mxu0 0.0
    %1768 = vmatprep.subr.mxu0 0.0
    %1769 = vmatpush1.xpose.msra.mxu0 0.0
    %1770 = vmatprep.subr.mxu0 0.0
    %1771 = vmatpush1.xpose.msra.mxu0 0.0
    %1772 = vmatprep.subr.mxu0 0.0
    %1773 = vmatpush1.xpose.msra.mxu0 0.0
    %1774 = vmatprep.subr.mxu0 0.0
    %1775 = vmatpush1.xpose.msra.mxu0 0.0
    %1776 = vmatprep.subr.mxu0 0.0
    %1777 = vmatpush1.xpose.msra.mxu0 0.0
    %1778 = vmatprep.subr.mxu0 0.0
    %1779 = vmatpush1.xpose.msra.mxu0 0.0
    %1780 = vmatprep.subr.mxu0 0.0
    %1781 = vmatpush1.xpose.msra.mxu0 0.0
    %1782 = vmatprep.subr.mxu0 0.0
    %1783 = vmatpush1.xpose.msra.mxu0 0.0
    %1784 = vmatprep.subr.mxu0 0.0
    %1785 = vmatpush1.xpose.msra.mxu0 0.0
    %1786 = vmatprep.subr.mxu0 0.0
    %1787 = vmatpush1.xpose.msra.mxu0 0.0
    %1788 = vmatprep.subr.mxu0 0.0
    %1789 = vmatpush1.xpose.msra.mxu0 0.0
    %1790 = vmatprep.subr.mxu0 0.0
    %1791 = vmatpush1.xpose.msra.mxu0 0.0
    %1792 = vmatprep.subr.mxu0 0.0
    %1793 = vmatpush1.xpose.msra.mxu0 0.0
    %1794 = vmatprep.subr.mxu0 0.0
    %1795 = vmatpush1.xpose.msra.mxu0 0.0
    %1796 = vmatprep.subr.mxu0 0.0
    %1797 = vmatpush1.xpose.msra.mxu0 0.0
    %1798 = vmatprep.subr.mxu0 0.0
    %1799 = vmatpush1.xpose.msra.mxu0 0.0
    %1800 = vmatprep.mubr.f32.mxu0 0.0
    %1801 = vmatmul.mubr.f32.gmra.mrb[0].mxu0 %v1732
    %v1802 = vpop.f32.mrb[0].mxu0
    %v1803 = vadd.f32 0.0, %v1802
    %v1804 = vpop.f32.mrb[0].mxu0
    %1805 = vdwg.mxu0
    %v1806 = vmul.f32 %v1803, 0.35355338
    %v1807 = vsel %vm242, %v1806, -inf
    %1808 = vmax.xlane.f32.xlu0 %v1807
    %v1809 = vpop.xlane.xlu0 %1808
    %v1810 = vsub.f32 %v1806, %v1809
    %v1811 = vmul.f32 %v1810, 1.442695
    %v1812 = vpow.pop %v1811
    %v1813 = vsel %vm242, %v1812, 0.0
    %1814 = vadd.xlane.f32.xlu0 %v1813
    %v1815 = vpop.xlane.xlu0 %1814
    %1816 = vrot.lane.b32.xlu0 %v1251, 48
    %v1817 = vpop.permute.xlu0 %1816
    %v1820 = vsel %vm242, %v1812, 0
    %1822 = vmatprep.subr.mxu0 0.0
    %1823 = vmatpush1.msra.mxu0 %v1817
    %1824 = vmatprep.subr.mxu0 0.0
    %1825 = vmatpush1.msra.mxu0 0.0
    %1826 = vmatprep.subr.mxu0 0.0
    %1827 = vmatpush1.msra.mxu0 0.0
    %1828 = vmatprep.subr.mxu0 0.0
    %1829 = vmatpush1.msra.mxu0 0.0
    %1830 = vmatprep.subr.mxu0 0.0
    %1831 = vmatpush1.msra.mxu0 0.0
    %1832 = vmatprep.subr.mxu0 0.0
    %1833 = vmatpush1.msra.mxu0 0.0
    %1834 = vmatprep.subr.mxu0 0.0
    %1835 = vmatpush1.msra.mxu0 0.0
    %1836 = vmatprep.subr.mxu0 0.0
    %1837 = vmatpush1.msra.mxu0 0.0
    %1838 = vmatprep.subr.mxu0 0.0
    %1839 = vmatpush1.msra.mxu0 0.0
    %1840 = vmatprep.subr.mxu0 0.0
    %1841 = vmatpush1.msra.mxu0 0.0
    %1842 = vmatprep.subr.mxu0 0.0
    %1843 = vmatpush1.msra.mxu0 0.0
    %1844 = vmatprep.subr.mxu0 0.0
    %1845 = vmatpush1.msra.mxu0 0.0
    %1846 = vmatprep.subr.mxu0 0.0
    %1847 = vmatpush1.msra.mxu0 0.0
    %1848 = vmatprep.subr.mxu0 0.0
    %1849 = vmatpush1.msra.mxu0 0.0
    %1850 = vmatprep.subr.mxu0 0.0
    %1851 = vmatpush1.msra.mxu0 0.0
    %1852 = vmatprep.subr.mxu0 0.0
    %1853 = vmatpush1.msra.mxu0 0.0
    %1854 = vmatprep.subr.mxu0 0.0
    %1855 = vmatpush1.msra.mxu0 0.0
    %1856 = vmatprep.subr.mxu0 0.0
    %1857 = vmatpush1.msra.mxu0 0.0
    %1858 = vmatprep.subr.mxu0 0.0
    %1859 = vmatpush1.msra.mxu0 0.0
    %1860 = vmatprep.subr.mxu0 0.0
    %1861 = vmatpush1.msra.mxu0 0.0
    %1862 = vmatprep.subr.mxu0 0.0
    %1863 = vmatpush1.msra.mxu0 0.0
    %1864 = vmatprep.subr.mxu0 0.0
    %1865 = vmatpush1.msra.mxu0 0.0
    %1866 = vmatprep.subr.mxu0 0.0
    %1867 = vmatpush1.msra.mxu0 0.0
    %1868 = vmatprep.subr.mxu0 0.0
    %1869 = vmatpush1.msra.mxu0 0.0
    %1870 = vmatprep.subr.mxu0 0.0
    %1871 = vmatpush1.msra.mxu0 0.0
    %1872 = vmatprep.subr.mxu0 0.0
    %1873 = vmatpush1.msra.mxu0 0.0
    %1874 = vmatprep.subr.mxu0 0.0
    %1875 = vmatpush1.msra.mxu0 0.0
    %1876 = vmatprep.subr.mxu0 0.0
    %1877 = vmatpush1.msra.mxu0 0.0
    %1878 = vmatprep.subr.mxu0 0.0
    %1879 = vmatpush1.msra.mxu0 0.0
    %1880 = vmatprep.subr.mxu0 0.0
    %1881 = vmatpush1.msra.mxu0 0.0
    %1882 = vmatprep.subr.mxu0 0.0
    %1883 = vmatpush1.msra.mxu0 0.0
    %1884 = vmatprep.subr.mxu0 0.0
    %1885 = vmatpush1.msra.mxu0 0.0
    %1886 = vmatprep.mubr.f32.mxu0 0.0
    %1887 = vmatmul.mubr.f32.gmra.mrb[0].mxu0 %v1820
    %v1888 = vpop.f32.mrb[0].mxu0
    %v1889 = vadd.f32 0.0, %v1888
    %v1890 = vpop.f32.mrb[0].mxu0
    %1891 = vdwg.mxu0
    %v1892 = vrcp.pop %v1815
    %v1893 = vmul.f32 %v1889, %v1892
    %v1895 = vsel %vm242, %v1893, 0
    %1897 = vmatprep.subr.mxu0 0.0
    %1898 = vmatpush1.msra.mxu0 %v893
    %1899 = vmatprep.subr.mxu0 0.0
    %1900 = vmatpush1.msra.mxu0 0.0
    %1901 = vmatprep.subr.mxu0 0.0
    %1902 = vmatpush1.msra.mxu0 0.0
    %1903 = vmatprep.subr.mxu0 0.0
    %1904 = vmatpush1.msra.mxu0 0.0
    %1905 = vmatprep.subr.mxu0 0.0
    %1906 = vmatpush1.msra.mxu0 0.0
    %1907 = vmatprep.subr.mxu0 0.0
    %1908 = vmatpush1.msra.mxu0 0.0
    %1909 = vmatprep.subr.mxu0 0.0
    %1910 = vmatpush1.msra.mxu0 0.0
    %1911 = vmatprep.subr.mxu0 0.0
    %1912 = vmatpush1.msra.mxu0 0.0
    %1913 = vmatprep.subr.mxu0 0.0
    %1914 = vmatpush1.msra.mxu0 0.0
    %1915 = vmatprep.subr.mxu0 0.0
    %1916 = vmatpush1.msra.mxu0 0.0
    %1917 = vmatprep.subr.mxu0 0.0
    %1918 = vmatpush1.msra.mxu0 0.0
    %1919 = vmatprep.subr.mxu0 0.0
    %1920 = vmatpush1.msra.mxu0 0.0
    %1921 = vmatprep.subr.mxu0 0.0
    %1922 = vmatpush1.msra.mxu0 0.0
    %1923 = vmatprep.subr.mxu0 0.0
    %1924 = vmatpush1.msra.mxu0 0.0
    %1925 = vmatprep.subr.mxu0 0.0
    %1926 = vmatpush1.msra.mxu0 0.0
    %1927 = vmatprep.subr.mxu0 0.0
    %1928 = vmatpush1.msra.mxu0 0.0
    %1929 = vmatprep.subr.mxu0 0.0
    %1930 = vmatpush1.msra.mxu0 0.0
    %1931 = vmatprep.subr.mxu0 0.0
    %1932 = vmatpush1.msra.mxu0 0.0
    %1933 = vmatprep.subr.mxu0 0.0
    %1934 = vmatpush1.msra.mxu0 0.0
    %1935 = vmatprep.subr.mxu0 0.0
    %1936 = vmatpush1.msra.mxu0 0.0
    %1937 = vmatprep.subr.mxu0 0.0
    %1938 = vmatpush1.msra.mxu0 0.0
    %1939 = vmatprep.subr.mxu0 0.0
    %1940 = vmatpush1.msra.mxu0 0.0
    %1941 = vmatprep.subr.mxu0 0.0
    %1942 = vmatpush1.msra.mxu0 0.0
    %1943 = vmatprep.subr.mxu0 0.0
    %1944 = vmatpush1.msra.mxu0 0.0
    %1945 = vmatprep.subr.mxu0 0.0
    %1946 = vmatpush1.msra.mxu0 0.0
    %1947 = vmatprep.subr.mxu0 0.0
    %1948 = vmatpush1.msra.mxu0 0.0
    %1949 = vmatprep.subr.mxu0 0.0
    %1950 = vmatpush1.msra.mxu0 0.0
    %1951 = vmatprep.subr.mxu0 0.0
    %1952 = vmatpush1.msra.mxu0 0.0
    %1953 = vmatprep.subr.mxu0 0.0
    %1954 = vmatpush1.msra.mxu0 0.0
    %1955 = vmatprep.subr.mxu0 0.0
    %1956 = vmatpush1.msra.mxu0 0.0
    %1957 = vmatprep.subr.mxu0 0.0
    %1958 = vmatpush1.msra.mxu0 0.0
    %1959 = vmatprep.subr.mxu0 0.0
    %1960 = vmatpush1.msra.mxu0 0.0
    %1961 = vmatprep.mubr.f32.mxu0 0.0
    %1962 = vmatmul.mubr.f32.gmra.mrb[0].mxu0 %v1895
    %v1963 = vpop.f32.mrb[0].mxu0
    %v1964 = vadd.f32 0.0, %v1963
    %v1965 = vpop.f32.mrb[0].mxu0
    %1966 = vdwg.mxu0
    %v1967 = vadd.f32 %v1725, %v1964
    %1968 = vrot.lane.b32.xlu0 %v1251, 104
    %v1969 = vpop.permute.xlu0 %1968
    %1970 = vrot.lane.b32.xlu0 %v1251, 72
    %v1971 = vpop.permute.xlu0 %1970
    %v1972 = vsel %vm242, %v1969, 0
    %v1974 = vsel %vm242, %v1971, 0
    %1976 = vmatprep.subr.mxu0 0.0
    %1977 = vmatpush1.xpose.msra.mxu0 %v1974
    %1978 = vmatprep.subr.mxu0 0.0
    %1979 = vmatpush1.xpose.msra.mxu0 0.0
    %1980 = vmatprep.subr.mxu0 0.0
    %1981 = vmatpush1.xpose.msra.mxu0 0.0
    %1982 = vmatprep.subr.mxu0 0.0
    %1983 = vmatpush1.xpose.msra.mxu0 0.0
    %1984 = vmatprep.subr.mxu0 0.0
    %1985 = vmatpush1.xpose.msra.mxu0 0.0
    %1986 = vmatprep.subr.mxu0 0.0
    %1987 = vmatpush1.xpose.msra.mxu0 0.0
    %1988 = vmatprep.subr.mxu0 0.0
    %1989 = vmatpush1.xpose.msra.mxu0 0.0
    %1990 = vmatprep.subr.mxu0 0.0
    %1991 = vmatpush1.xpose.msra.mxu0 0.0
    %1992 = vmatprep.subr.mxu0 0.0
    %1993 = vmatpush1.xpose.msra.mxu0 0.0
    %1994 = vmatprep.subr.mxu0 0.0
    %1995 = vmatpush1.xpose.msra.mxu0 0.0
    %1996 = vmatprep.subr.mxu0 0.0
    %1997 = vmatpush1.xpose.msra.mxu0 0.0
    %1998 = vmatprep.subr.mxu0 0.0
    %1999 = vmatpush1.xpose.msra.mxu0 0.0
    %2000 = vmatprep.subr.mxu0 0.0
    %2001 = vmatpush1.xpose.msra.mxu0 0.0
    %2002 = vmatprep.subr.mxu0 0.0
    %2003 = vmatpush1.xpose.msra.mxu0 0.0
    %2004 = vmatprep.subr.mxu0 0.0
    %2005 = vmatpush1.xpose.msra.mxu0 0.0
    %2006 = vmatprep.subr.mxu0 0.0
    %2007 = vmatpush1.xpose.msra.mxu0 0.0
    %2008 = vmatprep.subr.mxu0 0.0
    %2009 = vmatpush1.xpose.msra.mxu0 0.0
    %2010 = vmatprep.subr.mxu0 0.0
    %2011 = vmatpush1.xpose.msra.mxu0 0.0
    %2012 = vmatprep.subr.mxu0 0.0
    %2013 = vmatpush1.xpose.msra.mxu0 0.0
    %2014 = vmatprep.subr.mxu0 0.0
    %2015 = vmatpush1.xpose.msra.mxu0 0.0
    %2016 = vmatprep.subr.mxu0 0.0
    %2017 = vmatpush1.xpose.msra.mxu0 0.0
    %2018 = vmatprep.subr.mxu0 0.0
    %2019 = vmatpush1.xpose.msra.mxu0 0.0
    %2020 = vmatprep.subr.mxu0 0.0
    %2021 = vmatpush1.xpose.msra.mxu0 0.0
    %2022 = vmatprep.subr.mxu0 0.0
    %2023 = vmatpush1.xpose.msra.mxu0 0.0
    %2024 = vmatprep.subr.mxu0 0.0
    %2025 = vmatpush1.xpose.msra.mxu0 0.0
    %2026 = vmatprep.subr.mxu0 0.0
    %2027 = vmatpush1.xpose.msra.mxu0 0.0
    %2028 = vmatprep.subr.mxu0 0.0
    %2029 = vmatpush1.xpose.msra.mxu0 0.0
    %2030 = vmatprep.subr.mxu0 0.0
    %2031 = vmatpush1.xpose.msra.mxu0 0.0
    %2032 = vmatprep.subr.mxu0 0.0
    %2033 = vmatpush1.xpose.msra.mxu0 0.0
    %2034 = vmatprep.subr.mxu0 0.0
    %2035 = vmatpush1.xpose.msra.mxu0 0.0
    %2036 = vmatprep.subr.mxu0 0.0
    %2037 = vmatpush1.xpose.msra.mxu0 0.0
    %2038 = vmatprep.subr.mxu0 0.0
    %2039 = vmatpush1.xpose.msra.mxu0 0.0
    %2040 = vmatprep.mubr.f32.mxu0 0.0
    %2041 = vmatmul.mubr.f32.gmra.mrb[0].mxu0 %v1972
    %v2042 = vpop.f32.mrb[0].mxu0
    %v2043 = vadd.f32 0.0, %v2042
    %v2044 = vpop.f32.mrb[0].mxu0
    %2045 = vdwg.mxu0
    %v2046 = vmul.f32 %v2043, 0.35355338
    %v2047 = vsel %vm242, %v2046, -inf
    %2048 = vmax.xlane.f32.xlu0 %v2047
    %v2049 = vpop.xlane.xlu0 %2048
    %v2050 = vsub.f32 %v2046, %v2049
    %v2051 = vmul.f32 %v2050, 1.442695
    %v2052 = vpow.pop %v2051
    %v2053 = vsel %vm242, %v2052, 0.0
    %2054 = vadd.xlane.f32.xlu0 %v2053
    %v2055 = vpop.xlane.xlu0 %2054
    %2056 = vrot.lane.b32.xlu0 %v1251, 40
    %v2057 = vpop.permute.xlu0 %2056
    %v2060 = vsel %vm242, %v2052, 0
    %2062 = vmatprep.subr.mxu0 0.0
    %2063 = vmatpush1.msra.mxu0 %v2057
    %2064 = vmatprep.subr.mxu0 0.0
    %2065 = vmatpush1.msra.mxu0 0.0
    %2066 = vmatprep.subr.mxu0 0.0
    %2067 = vmatpush1.msra.mxu0 0.0
    %2068 = vmatprep.subr.mxu0 0.0
    %2069 = vmatpush1.msra.mxu0 0.0
    %2070 = vmatprep.subr.mxu0 0.0
    %2071 = vmatpush1.msra.mxu0 0.0
    %2072 = vmatprep.subr.mxu0 0.0
    %2073 = vmatpush1.msra.mxu0 0.0
    %2074 = vmatprep.subr.mxu0 0.0
    %2075 = vmatpush1.msra.mxu0 0.0
    %2076 = vmatprep.subr.mxu0 0.0
    %2077 = vmatpush1.msra.mxu0 0.0
    %2078 = vmatprep.subr.mxu0 0.0
    %2079 = vmatpush1.msra.mxu0 0.0
    %2080 = vmatprep.subr.mxu0 0.0
    %2081 = vmatpush1.msra.mxu0 0.0
    %2082 = vmatprep.subr.mxu0 0.0
    %2083 = vmatpush1.msra.mxu0 0.0
    %2084 = vmatprep.subr.mxu0 0.0
    %2085 = vmatpush1.msra.mxu0 0.0
    %2086 = vmatprep.subr.mxu0 0.0
    %2087 = vmatpush1.msra.mxu0 0.0
    %2088 = vmatprep.subr.mxu0 0.0
    %2089 = vmatpush1.msra.mxu0 0.0
    %2090 = vmatprep.subr.mxu0 0.0
    %2091 = vmatpush1.msra.mxu0 0.0
    %2092 = vmatprep.subr.mxu0 0.0
    %2093 = vmatpush1.msra.mxu0 0.0
    %2094 = vmatprep.subr.mxu0 0.0
    %2095 = vmatpush1.msra.mxu0 0.0
    %2096 = vmatprep.subr.mxu0 0.0
    %2097 = vmatpush1.msra.mxu0 0.0
    %2098 = vmatprep.subr.mxu0 0.0
    %2099 = vmatpush1.msra.mxu0 0.0
    %2100 = vmatprep.subr.mxu0 0.0
    %2101 = vmatpush1.msra.mxu0 0.0
    %2102 = vmatprep.subr.mxu0 0.0
    %2103 = vmatpush1.msra.mxu0 0.0
    %2104 = vmatprep.subr.mxu0 0.0
    %2105 = vmatpush1.msra.mxu0 0.0
    %2106 = vmatprep.subr.mxu0 0.0
    %2107 = vmatpush1.msra.mxu0 0.0
    %2108 = vmatprep.subr.mxu0 0.0
    %2109 = vmatpush1.msra.mxu0 0.0
    %2110 = vmatprep.subr.mxu0 0.0
    %2111 = vmatpush1.msra.mxu0 0.0
    %2112 = vmatprep.subr.mxu0 0.0
    %2113 = vmatpush1.msra.mxu0 0.0
    %2114 = vmatprep.subr.mxu0 0.0
    %2115 = vmatpush1.msra.mxu0 0.0
    %2116 = vmatprep.subr.mxu0 0.0
    %2117 = vmatpush1.msra.mxu0 0.0
    %2118 = vmatprep.subr.mxu0 0.0
    %2119 = vmatpush1.msra.mxu0 0.0
    %2120 = vmatprep.subr.mxu0 0.0
    %2121 = vmatpush1.msra.mxu0 0.0
    %2122 = vmatprep.subr.mxu0 0.0
    %2123 = vmatpush1.msra.mxu0 0.0
    %2124 = vmatprep.subr.mxu0 0.0
    %2125 = vmatpush1.msra.mxu0 0.0
    %2126 = vmatprep.mubr.f32.mxu0 0.0
    %2127 = vmatmul.mubr.f32.gmra.mrb[0].mxu0 %v2060
    %v2128 = vpop.f32.mrb[0].mxu0
    %v2129 = vadd.f32 0.0, %v2128
    %v2130 = vpop.f32.mrb[0].mxu0
    %2131 = vdwg.mxu0
    %v2132 = vrcp.pop %v2055
    %v2133 = vmul.f32 %v2129, %v2132
    %v2135 = vsel %vm242, %v2133, 0
    %2137 = vmatprep.subr.mxu0 0.0
    %2138 = vmatpush1.msra.mxu0 %v1137
    %2139 = vmatprep.subr.mxu0 0.0
    %2140 = vmatpush1.msra.mxu0 0.0
    %2141 = vmatprep.subr.mxu0 0.0
    %2142 = vmatpush1.msra.mxu0 0.0
    %2143 = vmatprep.subr.mxu0 0.0
    %2144 = vmatpush1.msra.mxu0 0.0
    %2145 = vmatprep.subr.mxu0 0.0
    %2146 = vmatpush1.msra.mxu0 0.0
    %2147 = vmatprep.subr.mxu0 0.0
    %2148 = vmatpush1.msra.mxu0 0.0
    %2149 = vmatprep.subr.mxu0 0.0
    %2150 = vmatpush1.msra.mxu0 0.0
    %2151 = vmatprep.subr.mxu0 0.0
    %2152 = vmatpush1.msra.mxu0 0.0
    %2153 = vmatprep.subr.mxu0 0.0
    %2154 = vmatpush1.msra.mxu0 0.0
    %2155 = vmatprep.subr.mxu0 0.0
    %2156 = vmatpush1.msra.mxu0 0.0
    %2157 = vmatprep.subr.mxu0 0.0
    %2158 = vmatpush1.msra.mxu0 0.0
    %2159 = vmatprep.subr.mxu0 0.0
    %2160 = vmatpush1.msra.mxu0 0.0
    %2161 = vmatprep.subr.mxu0 0.0
    %2162 = vmatpush1.msra.mxu0 0.0
    %2163 = vmatprep.subr.mxu0 0.0
    %2164 = vmatpush1.msra.mxu0 0.0
    %2165 = vmatprep.subr.mxu0 0.0
    %2166 = vmatpush1.msra.mxu0 0.0
    %2167 = vmatprep.subr.mxu0 0.0
    %2168 = vmatpush1.msra.mxu0 0.0
    %2169 = vmatprep.subr.mxu0 0.0
    %2170 = vmatpush1.msra.mxu0 0.0
    %2171 = vmatprep.subr.mxu0 0.0
    %2172 = vmatpush1.msra.mxu0 0.0
    %2173 = vmatprep.subr.mxu0 0.0
    %2174 = vmatpush1.msra.mxu0 0.0
    %2175 = vmatprep.subr.mxu0 0.0
    %2176 = vmatpush1.msra.mxu0 0.0
    %2177 = vmatprep.subr.mxu0 0.0
    %2178 = vmatpush1.msra.mxu0 0.0
    %2179 = vmatprep.subr.mxu0 0.0
    %2180 = vmatpush1.msra.mxu0 0.0
    %2181 = vmatprep.subr.mxu0 0.0
    %2182 = vmatpush1.msra.mxu0 0.0
    %2183 = vmatprep.subr.mxu0 0.0
    %2184 = vmatpush1.msra.mxu0 0.0
    %2185 = vmatprep.subr.mxu0 0.0
    %2186 = vmatpush1.msra.mxu0 0.0
    %2187 = vmatprep.subr.mxu0 0.0
    %2188 = vmatpush1.msra.mxu0 0.0
    %2189 = vmatprep.subr.mxu0 0.0
    %2190 = vmatpush1.msra.mxu0 0.0
    %2191 = vmatprep.subr.mxu0 0.0
    %2192 = vmatpush1.msra.mxu0 0.0
    %2193 = vmatprep.subr.mxu0 0.0
    %2194 = vmatpush1.msra.mxu0 0.0
    %2195 = vmatprep.subr.mxu0 0.0
    %2196 = vmatpush1.msra.mxu0 0.0
    %2197 = vmatprep.subr.mxu0 0.0
    %2198 = vmatpush1.msra.mxu0 0.0
    %2199 = vmatprep.subr.mxu0 0.0
    %2200 = vmatpush1.msra.mxu0 0.0
    %2201 = vmatprep.mubr.f32.mxu0 0.0
    %2202 = vmatmul.mubr.f32.gmra.mrb[0].mxu0 %v2135
    %v2203 = vpop.f32.mrb[0].mxu0
    %v2204 = vadd.f32 0.0, %v2203
    %v2205 = vpop.f32.mrb[0].mxu0
    %2206 = vdwg.mxu0
    %v2207 = vadd.f32 %v1967, %v2204
    %v2209 = vcombine.high %v1212, %v1212
    %v2211 = vunpack.c.l.s4 1966171168
    %v2212 = vunpack.c.0.s8 %v2211
    %v2213 = vlaneseq
    %v2214 = vshrl.u32 %v2213, 7
    %v2215 = vsub.s32 %v2212, %v2214
    %v2216 = vrot.slane %v1212, %v2215
    %v2218 = vunpack.c.l.s4 1966171168
    %v2219 = vunpack.c.0.s8 %v2218
    %v2220 = vlaneseq
    %v2221 = vshrl.u32 %v2220, 7
    %v2222 = vsub.s32 %v2219, %v2221
    %v2223 = vrot.slane %v2209, %v2222
    %v2224 = vcombine.high %v2216, %v2216
    %v2225 = vcombine.high %v2223, %v2223
    %v2227 = vunpack.c.l.s4 1966171168
    %v2228 = vunpack.c.0.s8 %v2227
    %v2229 = vlaneseq
    %v2230 = vshrl.u32 %v2229, 7
    %v2231 = vsub.s32 %v2228, %v2230
    %v2232 = vrot.slane %v2216, %v2231
    %v2234 = vunpack.c.l.s4 1966171168
    %v2235 = vunpack.c.0.s8 %v2234
    %v2236 = vlaneseq
    %v2237 = vshrl.u32 %v2236, 7
    %v2238 = vsub.s32 %v2235, %v2237
    %v2239 = vrot.slane %v2223, %v2238
    %v2241 = vunpack.c.l.s4 1966171168
    %v2242 = vunpack.c.0.s8 %v2241
    %v2243 = vlaneseq
    %v2244 = vshrl.u32 %v2243, 7
    %v2245 = vsub.s32 %v2242, %v2244
    %v2246 = vrot.slane %v2224, %v2245
    %v2248 = vunpack.c.l.s4 1966171168
    %v2249 = vunpack.c.0.s8 %v2248
    %v2250 = vlaneseq
    %v2251 = vshrl.u32 %v2250, 7
    %v2252 = vsub.s32 %v2249, %v2251
    %v2253 = vrot.slane %v2225, %v2252
    %v2254 = vcombine.high %v2232, %v2232
    %v2255 = vcombine.high %v2239, %v2239
    %v2256 = vcombine.high %v2246, %v2246
    %v2257 = vcombine.high %v2253, %v2253
    %v2267 = vcombine.high %v2207, %v2207
    %v2269 = vunpack.c.l.s4 1966171168
    %v2270 = vunpack.c.0.s8 %v2269
    %v2271 = vlaneseq
    %v2272 = vshrl.u32 %v2271, 7
    %v2273 = vsub.s32 %v2270, %v2272
    %v2274 = vrot.slane %v2207, %v2273
    %v2276 = vunpack.c.l.s4 1966171168
    %v2277 = vunpack.c.0.s8 %v2276
    %v2278 = vlaneseq
    %v2279 = vshrl.u32 %v2278, 7
    %v2280 = vsub.s32 %v2277, %v2279
    %v2281 = vrot.slane %v2267, %v2280
    %v2282 = vcombine.high %v2274, %v2274
    %v2283 = vcombine.high %v2281, %v2281
    %v2285 = vunpack.c.l.s4 1966171168
    %v2286 = vunpack.c.0.s8 %v2285
    %v2287 = vlaneseq
    %v2288 = vshrl.u32 %v2287, 7
    %v2289 = vsub.s32 %v2286, %v2288
    %v2290 = vrot.slane %v2274, %v2289
    %v2292 = vunpack.c.l.s4 1966171168
    %v2293 = vunpack.c.0.s8 %v2292
    %v2294 = vlaneseq
    %v2295 = vshrl.u32 %v2294, 7
    %v2296 = vsub.s32 %v2293, %v2295
    %v2297 = vrot.slane %v2281, %v2296
    %v2299 = vunpack.c.l.s4 1966171168
    %v2300 = vunpack.c.0.s8 %v2299
    %v2301 = vlaneseq
    %v2302 = vshrl.u32 %v2301, 7
    %v2303 = vsub.s32 %v2300, %v2302
    %v2304 = vrot.slane %v2282, %v2303
    %v2306 = vunpack.c.l.s4 1966171168
    %v2307 = vunpack.c.0.s8 %v2306
    %v2308 = vlaneseq
    %v2309 = vshrl.u32 %v2308, 7
    %v2310 = vsub.s32 %v2307, %v2309
    %v2311 = vrot.slane %v2283, %v2310
    %v2312 = vcombine.high %v2290, %v2290
    %v2313 = vcombine.high %v2297, %v2297
    %v2314 = vcombine.high %v2304, %v2304
    %v2315 = vcombine.high %v2311, %v2311
    %v2316 = vlaneseq
    %v2317 = vshrl.u32 %v2316, 7
    %v2318 = vsub.s32 0, %v2317
    %v2319 = vrot.slane %v2290, %v2318
    %v2320 = vlaneseq
    %v2321 = vshrl.u32 %v2320, 7
    %v2322 = vsub.s32 0, %v2321
    %v2323 = vrot.slane %v2304, %v2322
    %v2324 = vlaneseq
    %v2325 = vshrl.u32 %v2324, 7
    %v2326 = vsub.s32 0, %v2325
    %v2327 = vrot.slane %v2312, %v2326
    %v2328 = vlaneseq
    %v2329 = vshrl.u32 %v2328, 7
    %v2330 = vsub.s32 0, %v2329
    %v2331 = vrot.slane %v2314, %v2330
    %v2332 = vlaneseq
    %v2333 = vshrl.u32 %v2332, 7
    %v2334 = vsub.s32 0, %v2333
    %v2335 = vrot.slane %v2297, %v2334
    %v2336 = vlaneseq
    %v2337 = vshrl.u32 %v2336, 7
    %v2338 = vsub.s32 0, %v2337
    %v2339 = vrot.slane %v2311, %v2338
    %v2340 = vlaneseq
    %v2341 = vshrl.u32 %v2340, 7
    %v2342 = vsub.s32 0, %v2341
    %v2343 = vrot.slane %v2313, %v2342
    %v2344 = vlaneseq
    %v2345 = vshrl.u32 %v2344, 7
    %v2346 = vsub.s32 0, %v2345
    %v2347 = vrot.slane %v2315, %v2346
    %vm2356 = vcmask 1040384
    %v2357 = vsel %vm2356, %v2232, %v2319
    %v2358 = vsel %vm2356, %v2246, %v2323
    %v2359 = vsel %vm2356, %v2254, %v2327
    %v2360 = vsel %vm2356, %v2256, %v2331
    %v2361 = vsel %vm2356, %v2239, %v2335
    %v2362 = vsel %vm2356, %v2253, %v2339
    %v2363 = vsel %vm2356, %v2255, %v2343
    %v2364 = vsel %vm2356, %v2257, %v2347
    %v2365 = vld [vmem:[%s2 + $0x1] sm:$0x1]
    %v2366 = vlaneseq
    %v2367 = vshrl.u32 %v2366, 7
    %v2368 = vsub.s32 0, %v2367
    %v2369 = vrot.slane %v2365, %v2368
    %v2371 = vcombine.high %v2369, %v2369
    %v2373 = vunpack.c.l.s4 1983009808
    %v2374 = vunpack.c.0.s8 %v2373
    %v2375 = vlaneseq
    %v2376 = vshrl.u32 %v2375, 7
    %v2377 = vsub.s32 %v2374, %v2376
    %v2378 = vrot.slane %v2369, %v2377
    %v2380 = vunpack.c.l.s4 1983009808
    %v2381 = vunpack.c.0.s8 %v2380
    %v2382 = vlaneseq
    %v2383 = vshrl.u32 %v2382, 7
    %v2384 = vsub.s32 %v2381, %v2383
    %v2385 = vrot.slane %v2371, %v2384
    %v2386 = vcombine.high %v2378, %v2378
    %v2387 = vcombine.high %v2385, %v2385
    %v2392 = vadd.f32 %v2357, %v2378
    %v2393 = vadd.f32 %v2358, %v2386
    %v2394 = vadd.f32 %v2359, %v2385
    %v2395 = vadd.f32 %v2360, %v2387
    %v2396 = vadd.f32 %v2361, %v2378
    %v2397 = vadd.f32 %v2362, %v2386
    %v2398 = vadd.f32 %v2363, %v2385
    %v2399 = vadd.f32 %v2364, %v2387
    %v2400 = vadd.f32 %v15, %v2392
    %v2401 = vadd.f32 %v16, %v2393
    %v2402 = vadd.f32 %v17, %v2394
    %v2403 = vadd.f32 %v18, %v2395
    %v2404 = vadd.f32 %v19, %v2396
    %v2405 = vadd.f32 %v20, %v2397
    %v2406 = vadd.f32 %v21, %v2398
    %v2407 = vadd.f32 %v22, %v2399
    %v2408 = vld [vmem:[%s2 + $0x4] sm:$0x1]
    %v2409 = vld [vmem:[%s2 + $0x5] sm:$0x1]
    %v2418 = vcombine.low %v2400, %v2401
    %v2419 = vcombine.low %v2402, %v2403
    %v2421 = vunpack.c.l.s4 1983009808
    %v2422 = vunpack.c.0.s8 %v2421
    %v2423 = vlaneseq
    %v2424 = vshrl.u32 %v2423, 7
    %v2425 = vsub.s32 %v2422, %v2424
    %v2426 = vrot.slane %v2418, %v2425
    %v2428 = vunpack.c.l.s4 1983009808
    %v2429 = vunpack.c.0.s8 %v2428
    %v2430 = vlaneseq
    %v2431 = vshrl.u32 %v2430, 7
    %v2432 = vsub.s32 %v2429, %v2431
    %v2433 = vrot.slane %v2419, %v2432
    %v2434 = vcombine.low %v2426, %v2433
    %v2435 = vcombine.low %v2404, %v2405
    %v2436 = vcombine.low %v2406, %v2407
    %v2438 = vunpack.c.l.s4 1983009808
    %v2439 = vunpack.c.0.s8 %v2438
    %v2440 = vlaneseq
    %v2441 = vshrl.u32 %v2440, 7
    %v2442 = vsub.s32 %v2439, %v2441
    %v2443 = vrot.slane %v2435, %v2442
    %v2445 = vunpack.c.l.s4 1983009808
    %v2446 = vunpack.c.0.s8 %v2445
    %v2447 = vlaneseq
    %v2448 = vshrl.u32 %v2447, 7
    %v2449 = vsub.s32 %v2446, %v2448
    %v2450 = vrot.slane %v2436, %v2449
    %v2451 = vcombine.low %v2443, %v2450
    %v2454 = vsel %vm74, %v2434, 0.0
    %2455 = vadd.xlane.f32.xlu0 %v2454
    %v2456 = vpop.xlane.xlu0 %2455
    %v2457 = vsel %vm74, %v2451, 0.0
    %2458 = vadd.xlane.f32.xlu0 %v2457
    %v2459 = vpop.xlane.xlu0 %2458
    %v2460 = vrcp.pop 32.0
    %v2461 = vmul.f32 %v2456, %v2460
    %v2462 = vmul.f32 %v2459, %v2460
    %v2466 = vunpack.c.l.s4 269488144
    %v2467 = vunpack.c.0.s8 %v2466
    %v2468 = vlaneseq
    %v2469 = vshrl.u32 %v2468, 7
    %v2470 = vsub.s32 %v2467, %v2469
    %v2471 = vrot.slane %v2461, %v2470
    %v2473 = vunpack.c.l.s4 842150450
    %v2474 = vunpack.c.0.s8 %v2473
    %v2475 = vlaneseq
    %v2476 = vshrl.u32 %v2475, 7
    %v2477 = vsub.s32 %v2474, %v2476
    %v2478 = vrot.slane %v2461, %v2477
    %v2480 = vunpack.c.l.s4 1414812756
    %v2481 = vunpack.c.0.s8 %v2480
    %v2482 = vlaneseq
    %v2483 = vshrl.u32 %v2482, 7
    %v2484 = vsub.s32 %v2481, %v2483
    %v2485 = vrot.slane %v2461, %v2484
    %v2487 = vunpack.c.l.s4 1987475062
    %v2488 = vunpack.c.0.s8 %v2487
    %v2489 = vlaneseq
    %v2490 = vshrl.u32 %v2489, 7
    %v2491 = vsub.s32 %v2488, %v2490
    %v2492 = vrot.slane %v2461, %v2491
    %v2494 = vunpack.c.l.s4 269488144
    %v2495 = vunpack.c.0.s8 %v2494
    %v2496 = vlaneseq
    %v2497 = vshrl.u32 %v2496, 7
    %v2498 = vsub.s32 %v2495, %v2497
    %v2499 = vrot.slane %v2462, %v2498
    %v2501 = vunpack.c.l.s4 842150450
    %v2502 = vunpack.c.0.s8 %v2501
    %v2503 = vlaneseq
    %v2504 = vshrl.u32 %v2503, 7
    %v2505 = vsub.s32 %v2502, %v2504
    %v2506 = vrot.slane %v2462, %v2505
    %v2508 = vunpack.c.l.s4 1414812756
    %v2509 = vunpack.c.0.s8 %v2508
    %v2510 = vlaneseq
    %v2511 = vshrl.u32 %v2510, 7
    %v2512 = vsub.s32 %v2509, %v2511
    %v2513 = vrot.slane %v2462, %v2512
    %v2515 = vunpack.c.l.s4 1987475062
    %v2516 = vunpack.c.0.s8 %v2515
    %v2517 = vlaneseq
    %v2518 = vshrl.u32 %v2517, 7
    %v2519 = vsub.s32 %v2516, %v2518
    %v2520 = vrot.slane %v2462, %v2519
    %v2529 = vsub.f32 %v2400, %v2471
    %v2530 = vsub.f32 %v2401, %v2478
    %v2531 = vsub.f32 %v2402, %v2485
    %v2532 = vsub.f32 %v2403, %v2492
    %v2533 = vsub.f32 %v2404, %v2499
    %v2534 = vsub.f32 %v2405, %v2506
    %v2535 = vsub.f32 %v2406, %v2513
    %v2536 = vsub.f32 %v2407, %v2520
    %v2537 = vmul.f32 %v2529, %v2529
    %v2538 = vmul.f32 %v2530, %v2530
    %v2539 = vmul.f32 %v2531, %v2531
    %v2540 = vmul.f32 %v2532, %v2532
    %v2541 = vmul.f32 %v2533, %v2533
    %v2542 = vmul.f32 %v2534, %v2534
    %v2543 = vmul.f32 %v2535, %v2535
    %v2544 = vmul.f32 %v2536, %v2536
    %v2553 = vcombine.low %v2537, %v2538
    %v2554 = vcombine.low %v2539, %v2540
    %v2556 = vunpack.c.l.s4 1983009808
    %v2557 = vunpack.c.0.s8 %v2556
    %v2558 = vlaneseq
    %v2559 = vshrl.u32 %v2558, 7
    %v2560 = vsub.s32 %v2557, %v2559
    %v2561 = vrot.slane %v2553, %v2560
    %v2563 = vunpack.c.l.s4 1983009808
    %v2564 = vunpack.c.0.s8 %v2563
    %v2565 = vlaneseq
    %v2566 = vshrl.u32 %v2565, 7
    %v2567 = vsub.s32 %v2564, %v2566
    %v2568 = vrot.slane %v2554, %v2567
    %v2569 = vcombine.low %v2561, %v2568
    %v2570 = vcombine.low %v2541, %v2542
    %v2571 = vcombine.low %v2543, %v2544
    %v2573 = vunpack.c.l.s4 1983009808
    %v2574 = vunpack.c.0.s8 %v2573
    %v2575 = vlaneseq
    %v2576 = vshrl.u32 %v2575, 7
    %v2577 = vsub.s32 %v2574, %v2576
    %v2578 = vrot.slane %v2570, %v2577
    %v2580 = vunpack.c.l.s4 1983009808
    %v2581 = vunpack.c.0.s8 %v2580
    %v2582 = vlaneseq
    %v2583 = vshrl.u32 %v2582, 7
    %v2584 = vsub.s32 %v2581, %v2583
    %v2585 = vrot.slane %v2571, %v2584
    %v2586 = vcombine.low %v2578, %v2585
    %v2589 = vsel %vm74, %v2569, 0.0
    %2590 = vadd.xlane.f32.xlu0 %v2589
    %v2591 = vpop.xlane.xlu0 %2590
    %v2592 = vsel %vm74, %v2586, 0.0
    %2593 = vadd.xlane.f32.xlu0 %v2592
    %v2594 = vpop.xlane.xlu0 %2593
    %v2595 = vmul.f32 %v2591, %v2460
    %v2596 = vmul.f32 %v2594, %v2460
    %v2597 = vadd.f32 %v2595, 1e-05
    %v2598 = vadd.f32 %v2596, 1e-05
    %v2599 = vrsqrt.pop %v2597
    %v2600 = vrsqrt.pop %v2598
    %v2604 = vunpack.c.l.s4 269488144
    %v2605 = vunpack.c.0.s8 %v2604
    %v2606 = vlaneseq
    %v2607 = vshrl.u32 %v2606, 7
    %v2608 = vsub.s32 %v2605, %v2607
    %v2609 = vrot.slane %v2599, %v2608
    %v2611 = vunpack.c.l.s4 842150450
    %v2612 = vunpack.c.0.s8 %v2611
    %v2613 = vlaneseq
    %v2614 = vshrl.u32 %v2613, 7
    %v2615 = vsub.s32 %v2612, %v2614
    %v2616 = vrot.slane %v2599, %v2615
    %v2618 = vunpack.c.l.s4 1414812756
    %v2619 = vunpack.c.0.s8 %v2618
    %v2620 = vlaneseq
    %v2621 = vshrl.u32 %v2620, 7
    %v2622 = vsub.s32 %v2619, %v2621
    %v2623 = vrot.slane %v2599, %v2622
    %v2625 = vunpack.c.l.s4 1987475062
    %v2626 = vunpack.c.0.s8 %v2625
    %v2627 = vlaneseq
    %v2628 = vshrl.u32 %v2627, 7
    %v2629 = vsub.s32 %v2626, %v2628
    %v2630 = vrot.slane %v2599, %v2629
    %v2632 = vunpack.c.l.s4 269488144
    %v2633 = vunpack.c.0.s8 %v2632
    %v2634 = vlaneseq
    %v2635 = vshrl.u32 %v2634, 7
    %v2636 = vsub.s32 %v2633, %v2635
    %v2637 = vrot.slane %v2600, %v2636
    %v2639 = vunpack.c.l.s4 842150450
    %v2640 = vunpack.c.0.s8 %v2639
    %v2641 = vlaneseq
    %v2642 = vshrl.u32 %v2641, 7
    %v2643 = vsub.s32 %v2640, %v2642
    %v2644 = vrot.slane %v2600, %v2643
    %v2646 = vunpack.c.l.s4 1414812756
    %v2647 = vunpack.c.0.s8 %v2646
    %v2648 = vlaneseq
    %v2649 = vshrl.u32 %v2648, 7
    %v2650 = vsub.s32 %v2647, %v2649
    %v2651 = vrot.slane %v2600, %v2650
    %v2653 = vunpack.c.l.s4 1987475062
    %v2654 = vunpack.c.0.s8 %v2653
    %v2655 = vlaneseq
    %v2656 = vshrl.u32 %v2655, 7
    %v2657 = vsub.s32 %v2654, %v2656
    %v2658 = vrot.slane %v2600, %v2657
    %v2667 = vmul.f32 %v2529, %v2609
    %v2668 = vmul.f32 %v2530, %v2616
    %v2669 = vmul.f32 %v2531, %v2623
    %v2670 = vmul.f32 %v2532, %v2630
    %v2671 = vmul.f32 %v2533, %v2637
    %v2672 = vmul.f32 %v2534, %v2644
    %v2673 = vmul.f32 %v2535, %v2651
    %v2674 = vmul.f32 %v2536, %v2658
    %v2675 = vlaneseq
    %v2676 = vshrl.u32 %v2675, 7
    %v2677 = vsub.s32 0, %v2676
    %v2678 = vrot.slane %v2408, %v2677
    %v2680 = vcombine.high %v2678, %v2678
    %v2682 = vunpack.c.l.s4 1983009808
    %v2683 = vunpack.c.0.s8 %v2682
    %v2684 = vlaneseq
    %v2685 = vshrl.u32 %v2684, 7
    %v2686 = vsub.s32 %v2683, %v2685
    %v2687 = vrot.slane %v2678, %v2686
    %v2689 = vunpack.c.l.s4 1983009808
    %v2690 = vunpack.c.0.s8 %v2689
    %v2691 = vlaneseq
    %v2692 = vshrl.u32 %v2691, 7
    %v2693 = vsub.s32 %v2690, %v2692
    %v2694 = vrot.slane %v2680, %v2693
    %v2695 = vcombine.high %v2687, %v2687
    %v2696 = vcombine.high %v2694, %v2694
    %v2701 = vmul.f32 %v2667, %v2687
    %v2702 = vmul.f32 %v2668, %v2695
    %v2703 = vmul.f32 %v2669, %v2694
    %v2704 = vmul.f32 %v2670, %v2696
    %v2705 = vmul.f32 %v2671, %v2687
    %v2706 = vmul.f32 %v2672, %v2695
    %v2707 = vmul.f32 %v2673, %v2694
    %v2708 = vmul.f32 %v2674, %v2696
    %v2709 = vlaneseq
    %v2710 = vshrl.u32 %v2709, 7
    %v2711 = vsub.s32 0, %v2710
    %v2712 = vrot.slane %v2409, %v2711
    %v2714 = vcombine.high %v2712, %v2712
    %v2716 = vunpack.c.l.s4 1983009808
    %v2717 = vunpack.c.0.s8 %v2716
    %v2718 = vlaneseq
    %v2719 = vshrl.u32 %v2718, 7
    %v2720 = vsub.s32 %v2717, %v2719
    %v2721 = vrot.slane %v2712, %v2720
    %v2723 = vunpack.c.l.s4 1983009808
    %v2724 = vunpack.c.0.s8 %v2723
    %v2725 = vlaneseq
    %v2726 = vshrl.u32 %v2725, 7
    %v2727 = vsub.s32 %v2724, %v2726
    %v2728 = vrot.slane %v2714, %v2727
    %v2729 = vcombine.high %v2721, %v2721
    %v2730 = vcombine.high %v2728, %v2728
    %v2735 = vadd.f32 %v2701, %v2721
    %v2736 = vadd.f32 %v2702, %v2729
    %v2737 = vadd.f32 %v2703, %v2728
    %v2738 = vadd.f32 %v2704, %v2730
    %v2739 = vadd.f32 %v2705, %v2721
    %v2740 = vadd.f32 %v2706, %v2729
    %v2741 = vadd.f32 %v2707, %v2728
    %v2742 = vadd.f32 %v2708, %v2730
    %v2743 = vld [vmem:[%s1 + $0x8] sm:$0xff]
    %v2744 = vld [vmem:[%s1 + $0x18] sm:$0xff]
    %v2745 = vld [vmem:[%s1 + $0x28] sm:$0xff]
    %v2746 = vld [vmem:[%s1 + $0x38] sm:$0xff]
    %v2747 = vld [vmem:[%s2 + $0x2] sm:$0x1]
    %v2748 = vlaneseq
    %v2749 = vshrl.u32 %v2748, 7
    %v2750 = vsub.s32 0, %v2749
    %v2751 = vrot.slane %v2747, %v2750
    %v2760 = vcombine.low %v2735, %v2736
    %v2761 = vcombine.low %v2737, %v2738
    %v2763 = vunpack.c.l.s4 1983009808
    %v2764 = vunpack.c.0.s8 %v2763
    %v2765 = vlaneseq
    %v2766 = vshrl.u32 %v2765, 7
    %v2767 = vsub.s32 %v2764, %v2766
    %v2768 = vrot.slane %v2760, %v2767
    %v2770 = vunpack.c.l.s4 1983009808
    %v2771 = vunpack.c.0.s8 %v2770
    %v2772 = vlaneseq
    %v2773 = vshrl.u32 %v2772, 7
    %v2774 = vsub.s32 %v2771, %v2773
    %v2775 = vrot.slane %v2761, %v2774
    %v2776 = vcombine.low %v2768, %v2775
    %v2777 = vcombine.low %v2739, %v2740
    %v2778 = vcombine.low %v2741, %v2742
    %v2780 = vunpack.c.l.s4 1983009808
    %v2781 = vunpack.c.0.s8 %v2780
    %v2782 = vlaneseq
    %v2783 = vshrl.u32 %v2782, 7
    %v2784 = vsub.s32 %v2781, %v2783
    %v2785 = vrot.slane %v2777, %v2784
    %v2787 = vunpack.c.l.s4 1983009808
    %v2788 = vunpack.c.0.s8 %v2787
    %v2789 = vlaneseq
    %v2790 = vshrl.u32 %v2789, 7
    %v2791 = vsub.s32 %v2788, %v2790
    %v2792 = vrot.slane %v2778, %v2791
    %v2793 = vcombine.low %v2785, %v2792
    %v2794 = vsel %vm74, %v2776, 0
    %v2796 = vsel %vm74, %v2793, 0
    %2798 = vmatprep.subr.mxu0 0.0
    %2799 = vmatpush1.msra.mxu0 %v2743
    %2800 = vmatprep.subr.mxu0 0.0
    %2801 = vmatpush1.msra.mxu0 %v2744
    %2802 = vmatprep.subr.mxu0 0.0
    %2803 = vmatpush1.msra.mxu0 %v2745
    %2804 = vmatprep.subr.mxu0 0.0
    %2805 = vmatpush1.msra.mxu0 %v2746
    %2806 = vmatprep.subr.mxu0 0.0
    %2807 = vmatpush1.msra.mxu0 0.0
    %2808 = vmatprep.subr.mxu0 0.0
    %2809 = vmatpush1.msra.mxu0 0.0
    %2810 = vmatprep.subr.mxu0 0.0
    %2811 = vmatpush1.msra.mxu0 0.0
    %2812 = vmatprep.subr.mxu0 0.0
    %2813 = vmatpush1.msra.mxu0 0.0
    %2814 = vmatprep.subr.mxu0 0.0
    %2815 = vmatpush1.msra.mxu0 0.0
    %2816 = vmatprep.subr.mxu0 0.0
    %2817 = vmatpush1.msra.mxu0 0.0
    %2818 = vmatprep.subr.mxu0 0.0
    %2819 = vmatpush1.msra.mxu0 0.0
    %2820 = vmatprep.subr.mxu0 0.0
    %2821 = vmatpush1.msra.mxu0 0.0
    %2822 = vmatprep.subr.mxu0 0.0
    %2823 = vmatpush1.msra.mxu0 0.0
    %2824 = vmatprep.subr.mxu0 0.0
    %2825 = vmatpush1.msra.mxu0 0.0
    %2826 = vmatprep.subr.mxu0 0.0
    %2827 = vmatpush1.msra.mxu0 0.0
    %2828 = vmatprep.subr.mxu0 0.0
    %2829 = vmatpush1.msra.mxu0 0.0
    %2830 = vmatprep.subr.mxu0 0.0
    %2831 = vmatpush1.msra.mxu0 0.0
    %2832 = vmatprep.subr.mxu0 0.0
    %2833 = vmatpush1.msra.mxu0 0.0
    %2834 = vmatprep.subr.mxu0 0.0
    %2835 = vmatpush1.msra.mxu0 0.0
    %2836 = vmatprep.subr.mxu0 0.0
    %2837 = vmatpush1.msra.mxu0 0.0
    %2838 = vmatprep.subr.mxu0 0.0
    %2839 = vmatpush1.msra.mxu0 0.0
    %2840 = vmatprep.subr.mxu0 0.0
    %2841 = vmatpush1.msra.mxu0 0.0
    %2842 = vmatprep.subr.mxu0 0.0
    %2843 = vmatpush1.msra.mxu0 0.0
    %2844 = vmatprep.subr.mxu0 0.0
    %2845 = vmatpush1.msra.mxu0 0.0
    %2846 = vmatprep.subr.mxu0 0.0
    %2847 = vmatpush1.msra.mxu0 0.0
    %2848 = vmatprep.subr.mxu0 0.0
    %2849 = vmatpush1.msra.mxu0 0.0
    %2850 = vmatprep.subr.mxu0 0.0
    %2851 = vmatpush1.msra.mxu0 0.0
    %2852 = vmatprep.subr.mxu0 0.0
    %2853 = vmatpush1.msra.mxu0 0.0
    %2854 = vmatprep.subr.mxu0 0.0
    %2855 = vmatpush1.msra.mxu0 0.0
    %2856 = vmatprep.subr.mxu0 0.0
    %2857 = vmatpush1.msra.mxu0 0.0
    %2858 = vmatprep.subr.mxu0 0.0
    %2859 = vmatpush1.msra.mxu0 0.0
    %2860 = vmatprep.subr.mxu0 0.0
    %2861 = vmatpush1.msra.mxu0 0.0
    %2862 = vmatprep.mubr.f32.mxu0 0.0
    %2863 = vmatmul.mubr.f32.gmra.mrb[0].mxu0 %v2794
    %v2864 = vpop.f32.mrb[0].mxu0
    %v2865 = vadd.f32 %v2751, %v2864
    %v2866 = vpop.f32.mrb[0].mxu0
    %2867 = vmatprep.mubr.f32.mxu0 0.0
    %2868 = vmatmul.mubr.f32.gmra.mrb[0].mxu0 %v2796
    %v2869 = vpop.f32.mrb[0].mxu0
    %v2870 = vadd.f32 %v2751, %v2869
    %v2871 = vpop.f32.mrb[0].mxu0
    %2872 = vdwg.mxu0
    %v2873 = vmax.f32 %v2865, 0.0
    %v2874 = vmax.f32 %v2870, 0.0
    %v2875 = vld [vmem:[%s1 + $0x8] sm:$0xff]
    %v2876 = vld [vmem:[%s1 + $0x18] sm:$0xff]
    %v2877 = vld [vmem:[%s1 + $0x28] sm:$0xff]
    %v2878 = vld [vmem:[%s1 + $0x38] sm:$0xff]
    %v2879 = vld [vmem:[%s2 + $0x3] sm:$0x1]
    %v2880 = vlaneseq
    %v2881 = vshrl.u32 %v2880, 7
    %v2882 = vsub.s32 0, %v2881
    %v2883 = vrot.slane %v2879, %v2882
    %2888 = vrot.lane.b32.xlu0 %v2875, 96
    %v2889 = vpop.permute.xlu0 %2888
    %2890 = vrot.lane.b32.xlu0 %v2876, 96
    %v2891 = vpop.permute.xlu0 %2890
    %2892 = vrot.lane.b32.xlu0 %v2877, 96
    %v2893 = vpop.permute.xlu0 %2892
    %2894 = vrot.lane.b32.xlu0 %v2878, 96
    %v2895 = vpop.permute.xlu0 %2894
    %v2901 = vsel %vm74, %v2873, 0
    %v2904 = vsel %vm74, %v2874, 0
    %2906 = vmatprep.subr.mxu0 0.0
    %2907 = vmatpush1.msra.mxu0 %v2889
    %2908 = vmatprep.subr.mxu0 0.0
    %2909 = vmatpush1.msra.mxu0 %v2891
    %2910 = vmatprep.subr.mxu0 0.0
    %2911 = vmatpush1.msra.mxu0 %v2893
    %2912 = vmatprep.subr.mxu0 0.0
    %2913 = vmatpush1.msra.mxu0 %v2895
    %2914 = vmatprep.subr.mxu0 0.0
    %2915 = vmatpush1.msra.mxu0 0.0
    %2916 = vmatprep.subr.mxu0 0.0
    %2917 = vmatpush1.msra.mxu0 0.0
    %2918 = vmatprep.subr.mxu0 0.0
    %2919 = vmatpush1.msra.mxu0 0.0
    %2920 = vmatprep.subr.mxu0 0.0
    %2921 = vmatpush1.msra.mxu0 0.0
    %2922 = vmatprep.subr.mxu0 0.0
    %2923 = vmatpush1.msra.mxu0 0.0
    %2924 = vmatprep.subr.mxu0 0.0
    %2925 = vmatpush1.msra.mxu0 0.0
    %2926 = vmatprep.subr.mxu0 0.0
    %2927 = vmatpush1.msra.mxu0 0.0
    %2928 = vmatprep.subr.mxu0 0.0
    %2929 = vmatpush1.msra.mxu0 0.0
    %2930 = vmatprep.subr.mxu0 0.0
    %2931 = vmatpush1.msra.mxu0 0.0
    %2932 = vmatprep.subr.mxu0 0.0
    %2933 = vmatpush1.msra.mxu0 0.0
    %2934 = vmatprep.subr.mxu0 0.0
    %2935 = vmatpush1.msra.mxu0 0.0
    %2936 = vmatprep.subr.mxu0 0.0
    %2937 = vmatpush1.msra.mxu0 0.0
    %2938 = vmatprep.subr.mxu0 0.0
    %2939 = vmatpush1.msra.mxu0 0.0
    %2940 = vmatprep.subr.mxu0 0.0
    %2941 = vmatpush1.msra.mxu0 0.0
    %2942 = vmatprep.subr.mxu0 0.0
    %2943 = vmatpush1.msra.mxu0 0.0
    %2944 = vmatprep.subr.mxu0 0.0
    %2945 = vmatpush1.msra.mxu0 0.0
    %2946 = vmatprep.subr.mxu0 0.0
    %2947 = vmatpush1.msra.mxu0 0.0
    %2948 = vmatprep.subr.mxu0 0.0
    %2949 = vmatpush1.msra.mxu0 0.0
    %2950 = vmatprep.subr.mxu0 0.0
    %2951 = vmatpush1.msra.mxu0 0.0
    %2952 = vmatprep.subr.mxu0 0.0
    %2953 = vmatpush1.msra.mxu0 0.0
    %2954 = vmatprep.subr.mxu0 0.0
    %2955 = vmatpush1.msra.mxu0 0.0
    %2956 = vmatprep.subr.mxu0 0.0
    %2957 = vmatpush1.msra.mxu0 0.0
    %2958 = vmatprep.subr.mxu0 0.0
    %2959 = vmatpush1.msra.mxu0 0.0
    %2960 = vmatprep.subr.mxu0 0.0
    %2961 = vmatpush1.msra.mxu0 0.0
    %2962 = vmatprep.subr.mxu0 0.0
    %2963 = vmatpush1.msra.mxu0 0.0
    %2964 = vmatprep.subr.mxu0 0.0
    %2965 = vmatpush1.msra.mxu0 0.0
    %2966 = vmatprep.subr.mxu0 0.0
    %2967 = vmatpush1.msra.mxu0 0.0
    %2968 = vmatprep.subr.mxu0 0.0
    %2969 = vmatpush1.msra.mxu0 0.0
    %2970 = vmatprep.mubr.f32.mxu0 0.0
    %2971 = vmatmul.mubr.f32.gmra.mrb[0].mxu0 %v2901
    %v2972 = vpop.f32.mrb[0].mxu0
    %v2973 = vadd.f32 %v2883, %v2972
    %v2974 = vpop.f32.mrb[0].mxu0
    %2975 = vmatprep.mubr.f32.mxu0 0.0
    %2976 = vmatmul.mubr.f32.gmra.mrb[0].mxu0 %v2904
    %v2977 = vpop.f32.mrb[0].mxu0
    %v2978 = vadd.f32 %v2883, %v2977
    %v2979 = vpop.f32.mrb[0].mxu0
    %2980 = vdwg.mxu0
    %v2983 = vcombine.high %v2973, %v2973
    %v2985 = vunpack.c.l.s4 1983009808
    %v2986 = vunpack.c.0.s8 %v2985
    %v2987 = vlaneseq
    %v2988 = vshrl.u32 %v2987, 7
    %v2989 = vsub.s32 %v2986, %v2988
    %v2990 = vrot.slane %v2973, %v2989
    %v2992 = vunpack.c.l.s4 1983009808
    %v2993 = vunpack.c.0.s8 %v2992
    %v2994 = vlaneseq
    %v2995 = vshrl.u32 %v2994, 7
    %v2996 = vsub.s32 %v2993, %v2995
    %v2997 = vrot.slane %v2983, %v2996
    %v2998 = vcombine.high %v2990, %v2990
    %v2999 = vcombine.high %v2997, %v2997
    %v3000 = vcombine.high %v2978, %v2978
    %v3002 = vunpack.c.l.s4 1983009808
    %v3003 = vunpack.c.0.s8 %v3002
    %v3004 = vlaneseq
    %v3005 = vshrl.u32 %v3004, 7
    %v3006 = vsub.s32 %v3003, %v3005
    %v3007 = vrot.slane %v2978, %v3006
    %v3009 = vunpack.c.l.s4 1983009808
    %v3010 = vunpack.c.0.s8 %v3009
    %v3011 = vlaneseq
    %v3012 = vshrl.u32 %v3011, 7
    %v3013 = vsub.s32 %v3010, %v3012
    %v3014 = vrot.slane %v3000, %v3013
    %v3015 = vcombine.high %v3007, %v3007
    %v3016 = vcombine.high %v3014, %v3014
    %v3025 = vadd.f32 %v2735, %v2990
    %v3026 = vadd.f32 %v2736, %v2998
    %v3027 = vadd.f32 %v2737, %v2997
    %v3028 = vadd.f32 %v2738, %v2999
    %v3029 = vadd.f32 %v2739, %v3007
    %v3030 = vadd.f32 %v2740, %v3015
    %v3031 = vadd.f32 %v2741, %v3014
    %v3032 = vadd.f32 %v2742, %v3016
    %v3033 = vld [vmem:[%s2 + $0x6] sm:$0x1]
    %v3034 = vld [vmem:[%s2 + $0x7] sm:$0x1]
    %v3043 = vcombine.low %v3025, %v3026
    %v3044 = vcombine.low %v3027, %v3028
    %v3046 = vunpack.c.l.s4 1983009808
    %v3047 = vunpack.c.0.s8 %v3046
    %v3048 = vlaneseq
    %v3049 = vshrl.u32 %v3048, 7
    %v3050 = vsub.s32 %v3047, %v3049
    %v3051 = vrot.slane %v3043, %v3050
    %v3053 = vunpack.c.l.s4 1983009808
    %v3054 = vunpack.c.0.s8 %v3053
    %v3055 = vlaneseq
    %v3056 = vshrl.u32 %v3055, 7
    %v3057 = vsub.s32 %v3054, %v3056
    %v3058 = vrot.slane %v3044, %v3057
    %v3059 = vcombine.low %v3051, %v3058
    %v3060 = vcombine.low %v3029, %v3030
    %v3061 = vcombine.low %v3031, %v3032
    %v3063 = vunpack.c.l.s4 1983009808
    %v3064 = vunpack.c.0.s8 %v3063
    %v3065 = vlaneseq
    %v3066 = vshrl.u32 %v3065, 7
    %v3067 = vsub.s32 %v3064, %v3066
    %v3068 = vrot.slane %v3060, %v3067
    %v3070 = vunpack.c.l.s4 1983009808
    %v3071 = vunpack.c.0.s8 %v3070
    %v3072 = vlaneseq
    %v3073 = vshrl.u32 %v3072, 7
    %v3074 = vsub.s32 %v3071, %v3073
    %v3075 = vrot.slane %v3061, %v3074
    %v3076 = vcombine.low %v3068, %v3075
    %v3079 = vsel %vm74, %v3059, 0.0
    %3080 = vadd.xlane.f32.xlu0 %v3079
    %v3081 = vpop.xlane.xlu0 %3080
    %v3082 = vsel %vm74, %v3076, 0.0
    %3083 = vadd.xlane.f32.xlu0 %v3082
    %v3084 = vpop.xlane.xlu0 %3083
    %v3085 = vmul.f32 %v3081, %v2460
    %v3086 = vmul.f32 %v3084, %v2460
    %v3090 = vunpack.c.l.s4 269488144
    %v3091 = vunpack.c.0.s8 %v3090
    %v3092 = vlaneseq
    %v3093 = vshrl.u32 %v3092, 7
    %v3094 = vsub.s32 %v3091, %v3093
    %v3095 = vrot.slane %v3085, %v3094
    %v3097 = vunpack.c.l.s4 842150450
    %v3098 = vunpack.c.0.s8 %v3097
    %v3099 = vlaneseq
    %v3100 = vshrl.u32 %v3099, 7
    %v3101 = vsub.s32 %v3098, %v3100
    %v3102 = vrot.slane %v3085, %v3101
    %v3104 = vunpack.c.l.s4 1414812756
    %v3105 = vunpack.c.0.s8 %v3104
    %v3106 = vlaneseq
    %v3107 = vshrl.u32 %v3106, 7
    %v3108 = vsub.s32 %v3105, %v3107
    %v3109 = vrot.slane %v3085, %v3108
    %v3111 = vunpack.c.l.s4 1987475062
    %v3112 = vunpack.c.0.s8 %v3111
    %v3113 = vlaneseq
    %v3114 = vshrl.u32 %v3113, 7
    %v3115 = vsub.s32 %v3112, %v3114
    %v3116 = vrot.slane %v3085, %v3115
    %v3118 = vunpack.c.l.s4 269488144
    %v3119 = vunpack.c.0.s8 %v3118
    %v3120 = vlaneseq
    %v3121 = vshrl.u32 %v3120, 7
    %v3122 = vsub.s32 %v3119, %v3121
    %v3123 = vrot.slane %v3086, %v3122
    %v3125 = vunpack.c.l.s4 842150450
    %v3126 = vunpack.c.0.s8 %v3125
    %v3127 = vlaneseq
    %v3128 = vshrl.u32 %v3127, 7
    %v3129 = vsub.s32 %v3126, %v3128
    %v3130 = vrot.slane %v3086, %v3129
    %v3132 = vunpack.c.l.s4 1414812756
    %v3133 = vunpack.c.0.s8 %v3132
    %v3134 = vlaneseq
    %v3135 = vshrl.u32 %v3134, 7
    %v3136 = vsub.s32 %v3133, %v3135
    %v3137 = vrot.slane %v3086, %v3136
    %v3139 = vunpack.c.l.s4 1987475062
    %v3140 = vunpack.c.0.s8 %v3139
    %v3141 = vlaneseq
    %v3142 = vshrl.u32 %v3141, 7
    %v3143 = vsub.s32 %v3140, %v3142
    %v3144 = vrot.slane %v3086, %v3143
    %v3153 = vsub.f32 %v3025, %v3095
    %v3154 = vsub.f32 %v3026, %v3102
    %v3155 = vsub.f32 %v3027, %v3109
    %v3156 = vsub.f32 %v3028, %v3116
    %v3157 = vsub.f32 %v3029, %v3123
    %v3158 = vsub.f32 %v3030, %v3130
    %v3159 = vsub.f32 %v3031, %v3137
    %v3160 = vsub.f32 %v3032, %v3144
    %v3161 = vmul.f32 %v3153, %v3153
    %v3162 = vmul.f32 %v3154, %v3154
    %v3163 = vmul.f32 %v3155, %v3155
    %v3164 = vmul.f32 %v3156, %v3156
    %v3165 = vmul.f32 %v3157, %v3157
    %v3166 = vmul.f32 %v3158, %v3158
    %v3167 = vmul.f32 %v3159, %v3159
    %v3168 = vmul.f32 %v3160, %v3160
    %v3177 = vcombine.low %v3161, %v3162
    %v3178 = vcombine.low %v3163, %v3164
    %v3180 = vunpack.c.l.s4 1983009808
    %v3181 = vunpack.c.0.s8 %v3180
    %v3182 = vlaneseq
    %v3183 = vshrl.u32 %v3182, 7
    %v3184 = vsub.s32 %v3181, %v3183
    %v3185 = vrot.slane %v3177, %v3184
    %v3187 = vunpack.c.l.s4 1983009808
    %v3188 = vunpack.c.0.s8 %v3187
    %v3189 = vlaneseq
    %v3190 = vshrl.u32 %v3189, 7
    %v3191 = vsub.s32 %v3188, %v3190
    %v3192 = vrot.slane %v3178, %v3191
    %v3193 = vcombine.low %v3185, %v3192
    %v3194 = vcombine.low %v3165, %v3166
    %v3195 = vcombine.low %v3167, %v3168
    %v3197 = vunpack.c.l.s4 1983009808
    %v3198 = vunpack.c.0.s8 %v3197
    %v3199 = vlaneseq
    %v3200 = vshrl.u32 %v3199, 7
    %v3201 = vsub.s32 %v3198, %v3200
    %v3202 = vrot.slane %v3194, %v3201
    %v3204 = vunpack.c.l.s4 1983009808
    %v3205 = vunpack.c.0.s8 %v3204
    %v3206 = vlaneseq
    %v3207 = vshrl.u32 %v3206, 7
    %v3208 = vsub.s32 %v3205, %v3207
    %v3209 = vrot.slane %v3195, %v3208
    %v3210 = vcombine.low %v3202, %v3209
    %v3213 = vsel %vm74, %v3193, 0.0
    %3214 = vadd.xlane.f32.xlu0 %v3213
    %v3215 = vpop.xlane.xlu0 %3214
    %v3216 = vsel %vm74, %v3210, 0.0
    %3217 = vadd.xlane.f32.xlu0 %v3216
    %v3218 = vpop.xlane.xlu0 %3217
    %v3219 = vmul.f32 %v3215, %v2460
    %v3220 = vmul.f32 %v3218, %v2460
    %v3221 = vadd.f32 %v3219, 1e-05
    %v3222 = vadd.f32 %v3220, 1e-05
    %v3223 = vrsqrt.pop %v3221
    %v3224 = vrsqrt.pop %v3222
    %v3228 = vunpack.c.l.s4 269488144
    %v3229 = vunpack.c.0.s8 %v3228
    %v3230 = vlaneseq
    %v3231 = vshrl.u32 %v3230, 7
    %v3232 = vsub.s32 %v3229, %v3231
    %v3233 = vrot.slane %v3223, %v3232
    %v3235 = vunpack.c.l.s4 842150450
    %v3236 = vunpack.c.0.s8 %v3235
    %v3237 = vlaneseq
    %v3238 = vshrl.u32 %v3237, 7
    %v3239 = vsub.s32 %v3236, %v3238
    %v3240 = vrot.slane %v3223, %v3239
    %v3242 = vunpack.c.l.s4 1414812756
    %v3243 = vunpack.c.0.s8 %v3242
    %v3244 = vlaneseq
    %v3245 = vshrl.u32 %v3244, 7
    %v3246 = vsub.s32 %v3243, %v3245
    %v3247 = vrot.slane %v3223, %v3246
    %v3249 = vunpack.c.l.s4 1987475062
    %v3250 = vunpack.c.0.s8 %v3249
    %v3251 = vlaneseq
    %v3252 = vshrl.u32 %v3251, 7
    %v3253 = vsub.s32 %v3250, %v3252
    %v3254 = vrot.slane %v3223, %v3253
    %v3256 = vunpack.c.l.s4 269488144
    %v3257 = vunpack.c.0.s8 %v3256
    %v3258 = vlaneseq
    %v3259 = vshrl.u32 %v3258, 7
    %v3260 = vsub.s32 %v3257, %v3259
    %v3261 = vrot.slane %v3224, %v3260
    %v3263 = vunpack.c.l.s4 842150450
    %v3264 = vunpack.c.0.s8 %v3263
    %v3265 = vlaneseq
    %v3266 = vshrl.u32 %v3265, 7
    %v3267 = vsub.s32 %v3264, %v3266
    %v3268 = vrot.slane %v3224, %v3267
    %v3270 = vunpack.c.l.s4 1414812756
    %v3271 = vunpack.c.0.s8 %v3270
    %v3272 = vlaneseq
    %v3273 = vshrl.u32 %v3272, 7
    %v3274 = vsub.s32 %v3271, %v3273
    %v3275 = vrot.slane %v3224, %v3274
    %v3277 = vunpack.c.l.s4 1987475062
    %v3278 = vunpack.c.0.s8 %v3277
    %v3279 = vlaneseq
    %v3280 = vshrl.u32 %v3279, 7
    %v3281 = vsub.s32 %v3278, %v3280
    %v3282 = vrot.slane %v3224, %v3281
    %v3291 = vmul.f32 %v3153, %v3233
    %v3292 = vmul.f32 %v3154, %v3240
    %v3293 = vmul.f32 %v3155, %v3247
    %v3294 = vmul.f32 %v3156, %v3254
    %v3295 = vmul.f32 %v3157, %v3261
    %v3296 = vmul.f32 %v3158, %v3268
    %v3297 = vmul.f32 %v3159, %v3275
    %v3298 = vmul.f32 %v3160, %v3282
    %v3299 = vlaneseq
    %v3300 = vshrl.u32 %v3299, 7
    %v3301 = vsub.s32 0, %v3300
    %v3302 = vrot.slane %v3033, %v3301
    %v3304 = vcombine.high %v3302, %v3302
    %v3306 = vunpack.c.l.s4 1983009808
    %v3307 = vunpack.c.0.s8 %v3306
    %v3308 = vlaneseq
    %v3309 = vshrl.u32 %v3308, 7
    %v3310 = vsub.s32 %v3307, %v3309
    %v3311 = vrot.slane %v3302, %v3310
    %v3313 = vunpack.c.l.s4 1983009808
    %v3314 = vunpack.c.0.s8 %v3313
    %v3315 = vlaneseq
    %v3316 = vshrl.u32 %v3315, 7
    %v3317 = vsub.s32 %v3314, %v3316
    %v3318 = vrot.slane %v3304, %v3317
    %v3319 = vcombine.high %v3311, %v3311
    %v3320 = vcombine.high %v3318, %v3318
    %v3325 = vmul.f32 %v3291, %v3311
    %v3326 = vmul.f32 %v3292, %v3319
    %v3327 = vmul.f32 %v3293, %v3318
    %v3328 = vmul.f32 %v3294, %v3320
    %v3329 = vmul.f32 %v3295, %v3311
    %v3330 = vmul.f32 %v3296, %v3319
    %v3331 = vmul.f32 %v3297, %v3318
    %v3332 = vmul.f32 %v3298, %v3320
    %v3333 = vlaneseq
    %v3334 = vshrl.u32 %v3333, 7
    %v3335 = vsub.s32 0, %v3334
    %v3336 = vrot.slane %v3034, %v3335
    %v3338 = vcombine.high %v3336, %v3336
    %v3340 = vunpack.c.l.s4 1983009808
    %v3341 = vunpack.c.0.s8 %v3340
    %v3342 = vlaneseq
    %v3343 = vshrl.u32 %v3342, 7
    %v3344 = vsub.s32 %v3341, %v3343
    %v3345 = vrot.slane %v3336, %v3344
    %v3347 = vunpack.c.l.s4 1983009808
    %v3348 = vunpack.c.0.s8 %v3347
    %v3349 = vlaneseq
    %v3350 = vshrl.u32 %v3349, 7
    %v3351 = vsub.s32 %v3348, %v3350
    %v3352 = vrot.slane %v3338, %v3351
    %v3353 = vcombine.high %v3345, %v3345
    %v3354 = vcombine.high %v3352, %v3352
    %v3359 = vadd.f32 %v3325, %v3345
    %v3360 = vadd.f32 %v3326, %v3353
    %v3361 = vadd.f32 %v3327, %v3352
    %v3362 = vadd.f32 %v3328, %v3354
    %v3363 = vadd.f32 %v3329, %v3345
    %v3364 = vadd.f32 %v3330, %v3353
    %v3365 = vadd.f32 %v3331, %v3352
    %v3366 = vadd.f32 %v3332, %v3354
    %v3367 = vld [vmem:[%s2 + $0x8] sm:$0x1]
    %v3368 = vld [vmem:[%s2 + $0x9] sm:$0x1]
    %v3377 = vcombine.low %v3359, %v3360
    %v3378 = vcombine.low %v3361, %v3362
    %v3380 = vunpack.c.l.s4 1983009808
    %v3381 = vunpack.c.0.s8 %v3380
    %v3382 = vlaneseq
    %v3383 = vshrl.u32 %v3382, 7
    %v3384 = vsub.s32 %v3381, %v3383
    %v3385 = vrot.slane %v3377, %v3384
    %v3387 = vunpack.c.l.s4 1983009808
    %v3388 = vunpack.c.0.s8 %v3387
    %v3389 = vlaneseq
    %v3390 = vshrl.u32 %v3389, 7
    %v3391 = vsub.s32 %v3388, %v3390
    %v3392 = vrot.slane %v3378, %v3391
    %v3393 = vcombine.low %v3385, %v3392
    %v3394 = vcombine.low %v3363, %v3364
    %v3395 = vcombine.low %v3365, %v3366
    %v3397 = vunpack.c.l.s4 1983009808
    %v3398 = vunpack.c.0.s8 %v3397
    %v3399 = vlaneseq
    %v3400 = vshrl.u32 %v3399, 7
    %v3401 = vsub.s32 %v3398, %v3400
    %v3402 = vrot.slane %v3394, %v3401
    %v3404 = vunpack.c.l.s4 1983009808
    %v3405 = vunpack.c.0.s8 %v3404
    %v3406 = vlaneseq
    %v3407 = vshrl.u32 %v3406, 7
    %v3408 = vsub.s32 %v3405, %v3407
    %v3409 = vrot.slane %v3395, %v3408
    %v3410 = vcombine.low %v3402, %v3409
    %v3413 = vsel %vm74, %v3393, 0.0
    %3414 = vadd.xlane.f32.xlu0 %v3413
    %v3415 = vpop.xlane.xlu0 %3414
    %v3416 = vsel %vm74, %v3410, 0.0
    %3417 = vadd.xlane.f32.xlu0 %v3416
    %v3418 = vpop.xlane.xlu0 %3417
    %v3419 = vmul.f32 %v3415, %v2460
    %v3420 = vmul.f32 %v3418, %v2460
    %v3424 = vunpack.c.l.s4 269488144
    %v3425 = vunpack.c.0.s8 %v3424
    %v3426 = vlaneseq
    %v3427 = vshrl.u32 %v3426, 7
    %v3428 = vsub.s32 %v3425, %v3427
    %v3429 = vrot.slane %v3419, %v3428
    %v3431 = vunpack.c.l.s4 842150450
    %v3432 = vunpack.c.0.s8 %v3431
    %v3433 = vlaneseq
    %v3434 = vshrl.u32 %v3433, 7
    %v3435 = vsub.s32 %v3432, %v3434
    %v3436 = vrot.slane %v3419, %v3435
    %v3438 = vunpack.c.l.s4 1414812756
    %v3439 = vunpack.c.0.s8 %v3438
    %v3440 = vlaneseq
    %v3441 = vshrl.u32 %v3440, 7
    %v3442 = vsub.s32 %v3439, %v3441
    %v3443 = vrot.slane %v3419, %v3442
    %v3445 = vunpack.c.l.s4 1987475062
    %v3446 = vunpack.c.0.s8 %v3445
    %v3447 = vlaneseq
    %v3448 = vshrl.u32 %v3447, 7
    %v3449 = vsub.s32 %v3446, %v3448
    %v3450 = vrot.slane %v3419, %v3449
    %v3452 = vunpack.c.l.s4 269488144
    %v3453 = vunpack.c.0.s8 %v3452
    %v3454 = vlaneseq
    %v3455 = vshrl.u32 %v3454, 7
    %v3456 = vsub.s32 %v3453, %v3455
    %v3457 = vrot.slane %v3420, %v3456
    %v3459 = vunpack.c.l.s4 842150450
    %v3460 = vunpack.c.0.s8 %v3459
    %v3461 = vlaneseq
    %v3462 = vshrl.u32 %v3461, 7
    %v3463 = vsub.s32 %v3460, %v3462
    %v3464 = vrot.slane %v3420, %v3463
    %v3466 = vunpack.c.l.s4 1414812756
    %v3467 = vunpack.c.0.s8 %v3466
    %v3468 = vlaneseq
    %v3469 = vshrl.u32 %v3468, 7
    %v3470 = vsub.s32 %v3467, %v3469
    %v3471 = vrot.slane %v3420, %v3470
    %v3473 = vunpack.c.l.s4 1987475062
    %v3474 = vunpack.c.0.s8 %v3473
    %v3475 = vlaneseq
    %v3476 = vshrl.u32 %v3475, 7
    %v3477 = vsub.s32 %v3474, %v3476
    %v3478 = vrot.slane %v3420, %v3477
    %v3487 = vsub.f32 %v3359, %v3429
    %v3488 = vsub.f32 %v3360, %v3436
    %v3489 = vsub.f32 %v3361, %v3443
    %v3490 = vsub.f32 %v3362, %v3450
    %v3491 = vsub.f32 %v3363, %v3457
    %v3492 = vsub.f32 %v3364, %v3464
    %v3493 = vsub.f32 %v3365, %v3471
    %v3494 = vsub.f32 %v3366, %v3478
    %v3495 = vmul.f32 %v3487, %v3487
    %v3496 = vmul.f32 %v3488, %v3488
    %v3497 = vmul.f32 %v3489, %v3489
    %v3498 = vmul.f32 %v3490, %v3490
    %v3499 = vmul.f32 %v3491, %v3491
    %v3500 = vmul.f32 %v3492, %v3492
    %v3501 = vmul.f32 %v3493, %v3493
    %v3502 = vmul.f32 %v3494, %v3494
    %v3511 = vcombine.low %v3495, %v3496
    %v3512 = vcombine.low %v3497, %v3498
    %v3514 = vunpack.c.l.s4 1983009808
    %v3515 = vunpack.c.0.s8 %v3514
    %v3516 = vlaneseq
    %v3517 = vshrl.u32 %v3516, 7
    %v3518 = vsub.s32 %v3515, %v3517
    %v3519 = vrot.slane %v3511, %v3518
    %v3521 = vunpack.c.l.s4 1983009808
    %v3522 = vunpack.c.0.s8 %v3521
    %v3523 = vlaneseq
    %v3524 = vshrl.u32 %v3523, 7
    %v3525 = vsub.s32 %v3522, %v3524
    %v3526 = vrot.slane %v3512, %v3525
    %v3527 = vcombine.low %v3519, %v3526
    %v3528 = vcombine.low %v3499, %v3500
    %v3529 = vcombine.low %v3501, %v3502
    %v3531 = vunpack.c.l.s4 1983009808
    %v3532 = vunpack.c.0.s8 %v3531
    %v3533 = vlaneseq
    %v3534 = vshrl.u32 %v3533, 7
    %v3535 = vsub.s32 %v3532, %v3534
    %v3536 = vrot.slane %v3528, %v3535
    %v3538 = vunpack.c.l.s4 1983009808
    %v3539 = vunpack.c.0.s8 %v3538
    %v3540 = vlaneseq
    %v3541 = vshrl.u32 %v3540, 7
    %v3542 = vsub.s32 %v3539, %v3541
    %v3543 = vrot.slane %v3529, %v3542
    %v3544 = vcombine.low %v3536, %v3543
    %v3547 = vsel %vm74, %v3527, 0.0
    %3548 = vadd.xlane.f32.xlu0 %v3547
    %v3549 = vpop.xlane.xlu0 %3548
    %v3550 = vsel %vm74, %v3544, 0.0
    %3551 = vadd.xlane.f32.xlu0 %v3550
    %v3552 = vpop.xlane.xlu0 %3551
    %v3553 = vmul.f32 %v3549, %v2460
    %v3554 = vmul.f32 %v3552, %v2460
    %v3555 = vadd.f32 %v3553, 1e-05
    %v3556 = vadd.f32 %v3554, 1e-05
    %v3557 = vrsqrt.pop %v3555
    %v3558 = vrsqrt.pop %v3556
    %v3562 = vunpack.c.l.s4 269488144
    %v3563 = vunpack.c.0.s8 %v3562
    %v3564 = vlaneseq
    %v3565 = vshrl.u32 %v3564, 7
    %v3566 = vsub.s32 %v3563, %v3565
    %v3567 = vrot.slane %v3557, %v3566
    %v3569 = vunpack.c.l.s4 842150450
    %v3570 = vunpack.c.0.s8 %v3569
    %v3571 = vlaneseq
    %v3572 = vshrl.u32 %v3571, 7
    %v3573 = vsub.s32 %v3570, %v3572
    %v3574 = vrot.slane %v3557, %v3573
    %v3576 = vunpack.c.l.s4 1414812756
    %v3577 = vunpack.c.0.s8 %v3576
    %v3578 = vlaneseq
    %v3579 = vshrl.u32 %v3578, 7
    %v3580 = vsub.s32 %v3577, %v3579
    %v3581 = vrot.slane %v3557, %v3580
    %v3583 = vunpack.c.l.s4 1987475062
    %v3584 = vunpack.c.0.s8 %v3583
    %v3585 = vlaneseq
    %v3586 = vshrl.u32 %v3585, 7
    %v3587 = vsub.s32 %v3584, %v3586
    %v3588 = vrot.slane %v3557, %v3587
    %v3590 = vunpack.c.l.s4 269488144
    %v3591 = vunpack.c.0.s8 %v3590
    %v3592 = vlaneseq
    %v3593 = vshrl.u32 %v3592, 7
    %v3594 = vsub.s32 %v3591, %v3593
    %v3595 = vrot.slane %v3558, %v3594
    %v3597 = vunpack.c.l.s4 842150450
    %v3598 = vunpack.c.0.s8 %v3597
    %v3599 = vlaneseq
    %v3600 = vshrl.u32 %v3599, 7
    %v3601 = vsub.s32 %v3598, %v3600
    %v3602 = vrot.slane %v3558, %v3601
    %v3604 = vunpack.c.l.s4 1414812756
    %v3605 = vunpack.c.0.s8 %v3604
    %v3606 = vlaneseq
    %v3607 = vshrl.u32 %v3606, 7
    %v3608 = vsub.s32 %v3605, %v3607
    %v3609 = vrot.slane %v3558, %v3608
    %v3611 = vunpack.c.l.s4 1987475062
    %v3612 = vunpack.c.0.s8 %v3611
    %v3613 = vlaneseq
    %v3614 = vshrl.u32 %v3613, 7
    %v3615 = vsub.s32 %v3612, %v3614
    %v3616 = vrot.slane %v3558, %v3615
    %v3625 = vmul.f32 %v3487, %v3567
    %v3626 = vmul.f32 %v3488, %v3574
    %v3627 = vmul.f32 %v3489, %v3581
    %v3628 = vmul.f32 %v3490, %v3588
    %v3629 = vmul.f32 %v3491, %v3595
    %v3630 = vmul.f32 %v3492, %v3602
    %v3631 = vmul.f32 %v3493, %v3609
    %v3632 = vmul.f32 %v3494, %v3616
    %v3633 = vlaneseq
    %v3634 = vshrl.u32 %v3633, 7
    %v3635 = vsub.s32 0, %v3634
    %v3636 = vrot.slane %v3367, %v3635
    %v3638 = vcombine.high %v3636, %v3636
    %v3640 = vunpack.c.l.s4 1983009808
    %v3641 = vunpack.c.0.s8 %v3640
    %v3642 = vlaneseq
    %v3643 = vshrl.u32 %v3642, 7
    %v3644 = vsub.s32 %v3641, %v3643
    %v3645 = vrot.slane %v3636, %v3644
    %v3647 = vunpack.c.l.s4 1983009808
    %v3648 = vunpack.c.0.s8 %v3647
    %v3649 = vlaneseq
    %v3650 = vshrl.u32 %v3649, 7
    %v3651 = vsub.s32 %v3648, %v3650
    %v3652 = vrot.slane %v3638, %v3651
    %v3653 = vcombine.high %v3645, %v3645
    %v3654 = vcombine.high %v3652, %v3652
    %v3659 = vmul.f32 %v3625, %v3645
    %v3660 = vmul.f32 %v3626, %v3653
    %v3661 = vmul.f32 %v3627, %v3652
    %v3662 = vmul.f32 %v3628, %v3654
    %v3663 = vmul.f32 %v3629, %v3645
    %v3664 = vmul.f32 %v3630, %v3653
    %v3665 = vmul.f32 %v3631, %v3652
    %v3666 = vmul.f32 %v3632, %v3654
    %v3667 = vlaneseq
    %v3668 = vshrl.u32 %v3667, 7
    %v3669 = vsub.s32 0, %v3668
    %v3670 = vrot.slane %v3368, %v3669
    %v3672 = vcombine.high %v3670, %v3670
    %v3674 = vunpack.c.l.s4 1983009808
    %v3675 = vunpack.c.0.s8 %v3674
    %v3676 = vlaneseq
    %v3677 = vshrl.u32 %v3676, 7
    %v3678 = vsub.s32 %v3675, %v3677
    %v3679 = vrot.slane %v3670, %v3678
    %v3681 = vunpack.c.l.s4 1983009808
    %v3682 = vunpack.c.0.s8 %v3681
    %v3683 = vlaneseq
    %v3684 = vshrl.u32 %v3683, 7
    %v3685 = vsub.s32 %v3682, %v3684
    %v3686 = vrot.slane %v3672, %v3685
    %v3687 = vcombine.high %v3679, %v3679
    %v3688 = vcombine.high %v3686, %v3686
    %v3693 = vadd.f32 %v3659, %v3679
    %v3694 = vadd.f32 %v3660, %v3687
    %v3695 = vadd.f32 %v3661, %v3686
    %v3696 = vadd.f32 %v3662, %v3688
    %v3697 = vadd.f32 %v3663, %v3679
    %v3698 = vadd.f32 %v3664, %v3687
    %v3699 = vadd.f32 %v3665, %v3686
    %v3700 = vadd.f32 %v3666, %v3688
    %vm3701 = vcmask 254976
    %3702 = vst.msk [vmem:[#allocation2] sm:$0x3] %vm3701, %v3693
    %3703 = vst.msk [vmem:[#allocation2 + $0x2] sm:$0x3] %vm3701, %v3694
    %3704 = vst.msk [vmem:[#allocation2 + $0x4] sm:$0x3] %vm3701, %v3695
    %3705 = vst.msk [vmem:[#allocation2 + $0x6] sm:$0x3] %vm3701, %v3696
    %3706 = vst.msk [vmem:[#allocation2 + $0x8] sm:$0x3] %vm3701, %v3697
    %3707 = vst.msk [vmem:[#allocation2 + $0xa] sm:$0x3] %vm3701, %v3698
    %3708 = vst.msk [vmem:[#allocation2 + $0xc] sm:$0x3] %vm3701, %v3699
    %3709 = vst.msk [vmem:[#allocation2 + $0xe] sm:$0x3] %vm3701, %v3700
    // Predicated region
    $region14: #{diffusion_transformer.1} parent=1 // pred_check
      _
    $region15: #{diffusion_transformer.1} parent=1 // pred_check_branch
      %3711 = sbr.rel (0) target = $region17
    $region16: #{diffusion_transformer.1} parent=1 // pred_region
      %s3713 = ssub.s32 256, 256
      %3714 = vsyncadd [#allocation3], %s3713
      %s3715 = sshll.u32 [#allocation2], 4
      %s3716 = int_to_ptr.vmem [resolvable:$true] %s3715
      %3721 = dma.vmem_to_hbm [thread:$0]  %s3716, 256, %s3, [#allocation3], 32, 32, 2
    $region17: #{diffusion_transformer.1} parent=1 // pred_fallthru
      _
    // Predicated region
    $region18: #{diffusion_transformer.1} parent=1 // pred_check
      _
    $region19: #{diffusion_transformer.1} parent=1 // pred_check_branch
      %3723 = sbr.rel (0) target = $region21
    $region20: #{diffusion_transformer.1} parent=1 // pred_region
      %3724 = dma.done [#allocation3], 256
    $region21: #{diffusion_transformer.1} parent=1 // pred_fallthru
      _
    %3725 = vsyncpa [#allocation3], 1

</llo_original>
